<compile_context>
chip_gen: v7x
topology: tpu7x:2x2x1
jax: 0.10.0
libtpu: 0.0.40
codegen_flags: <defaults>
</compile_context>

<pallas_src>
import math

import jax
import jax.numpy as jnp
import numpy as np
from jax import lax
from jax.experimental import pallas as pl
from jax.experimental.pallas import tpu as pltpu

SQRT2 = math.sqrt(2.0)


def _gelu_exact(u):
    # PyTorch F.gelu default = exact erf-based GELU.
    return 0.5 * u * (1.0 + lax.erf(u / SQRT2))


def _apply_gates(gates, c_prev, H):
    # Gate columns are pre-permuted to (i, f, o | g): sigmoid on the first 3H,
    # tanh on the trailing H only.
    sig = jax.nn.sigmoid(gates[:, :3 * H])
    g_g = jnp.tanh(gates[:, 3 * H:])
    i_g = sig[:, 0 * H:1 * H]
    f_g = sig[:, 1 * H:2 * H]
    o_g = sig[:, 2 * H:3 * H]
    c_new = f_g * c_prev + i_g * g_g
    h_new = o_g * jnp.tanh(c_new)
    return h_new, c_new


def prepare_params(raw_params, matmul_dtype=jnp.bfloat16):
    """One-time parameter algebra, hoisted out of the per-call path.

    raw_params follow the PyTorch module with LSTM weights already transposed
    to [in, 4H] (gate column order i, f, g, o) and biases pre-summed b_ih+b_hh.
    """
    (w0, b0, wsp, w1, b1, wih0, whh0, bl0, wih1, whh1, bl1, w2, b2) = raw_params
    H = whh0.shape[0]

    # fc0 -> SpectralConv1d(mode 0, real) -> fc1 collapses to one affine map
    # (the conv sees length-1 signals, so only Re(weights[:, :, 0]) acts).
    wff = w0 @ wsp @ w1                        # [D_in, C]
    bff = b0 @ wsp @ w1 + b1                   # [1, C]

    # Permute gate columns (i, f, g, o) -> (i, f, o, g) so the kernel can run
    # sigmoid on a contiguous 3H block and tanh on the trailing H block.
    perm = np.concatenate([np.arange(0, 2 * H),
                           np.arange(3 * H, 4 * H),
                           np.arange(2 * H, 3 * H)])
    md = matmul_dtype
    f32 = jnp.float32
    return dict(
        wff=wff.astype(md), bff=bff.astype(f32),
        wih0=wih0[:, perm].astype(md), whh0=whh0[:, perm].astype(md),
        bl0=bl0[:, perm].astype(f32),
        wih1=wih1[:, perm].astype(md), whh1=whh1[:, perm].astype(md),
        bl1=bl1[:, perm].astype(f32),
        w2=w2.astype(md), b2=b2.astype(f32),
    )


@jax.jit
def spectral_conv_lstm(x, fused):
    """x: [B, T, D_in] float32. Returns (out [B, out_dim], hn [2, B, H], cn [2, B, H])."""
    B, T, _ = x.shape
    H = fused["whh0"].shape[0]
    out_dim = fused["w2"].shape[1]
    md = fused["wff"].dtype

    # Time-major flattened activations so the feedforward and the layer-0
    # input projection are each one big MXU matmul over all timesteps.
    x_flat = jnp.transpose(x, (1, 0, 2)).reshape(T * B, -1).astype(md)

    def kernel(x_ref, wff_ref, bff_ref, wih0_ref, whh0_ref, bl0_ref,
               wih1_ref, whh1_ref, bl1_ref, w2_ref, b2_ref,
               out_ref, hn_ref, cn_ref):
        f32 = jnp.float32
        # Time-invariant feedforward for ALL timesteps: one matmul + one GELU.
        feats = _gelu_exact(
            jnp.dot(x_ref[...], wff_ref[...], preferred_element_type=f32)
            + bff_ref[...])                                       # [T*B, C] f32

        # Layer-0 input projection hoisted out of the recurrence (bias folded
        # into the same one-time op).
        xproj0 = (jnp.dot(feats.astype(md), wih0_ref[...],
                          preferred_element_type=f32)
                  + bl0_ref[...])                                 # [T*B, 4H] f32

        # Hoist weight loads and bias broadcasts out of the unrolled time loop
        # (JAX does not CSE broadcast_in_dim).
        whh0v = whh0_ref[...]
        wih1v = wih1_ref[...]
        whh1v = whh1_ref[...]
        bl1b = jnp.broadcast_to(bl1_ref[...], (B, 4 * H))

        h0 = jnp.zeros((B, H), f32)
        c0 = jnp.zeros((B, H), f32)
        h1 = jnp.zeros((B, H), f32)
        c1 = jnp.zeros((B, H), f32)

        # Statically unrolled recurrence over the (short) sequence.  Only the
        # [B,H] x [H,4H] hidden-state matmuls remain on the serial chain.
        for t in range(T):
            gates0 = xproj0[t * B:(t + 1) * B, :] + jnp.dot(
                h0.astype(md), whh0v, preferred_element_type=f32)
            h0, c0 = _apply_gates(gates0, c0, H)
            gates1 = (jnp.dot(h0.astype(md), wih1v, preferred_element_type=f32)
                      + jnp.dot(h1.astype(md), whh1v, preferred_element_type=f32)
                      + bl1b)
            h1, c1 = _apply_gates(gates1, c1, H)
        # Note: wavefront-fusing (layer0, t) with (layer1, t-1) into one
        # block-diagonal matmul could roughly halve the chain on v6e/v7x;
        # deferred until the per-step operand-packing cost is measured.

        out_ref[...] = (jnp.dot(h1.astype(md), w2_ref[...],
                                preferred_element_type=f32) + b2_ref[...])
        hn_ref[0, :, :] = h0
        hn_ref[1, :, :] = h1
        cn_ref[0, :, :] = c0
        cn_ref[1, :, :] = c1

    vmem = pltpu.MemorySpace.VMEM
    out, hn, cn = pl.pallas_call(
        kernel,
        out_shape=(jax.ShapeDtypeStruct((B, out_dim), jnp.float32),
                   jax.ShapeDtypeStruct((2, B, H), jnp.float32),
                   jax.ShapeDtypeStruct((2, B, H), jnp.float32)),
        in_specs=[pl.BlockSpec(memory_space=vmem)] * 11,
        out_specs=(pl.BlockSpec(memory_space=vmem),
                   pl.BlockSpec(memory_space=vmem),
                   pl.BlockSpec(memory_space=vmem)),
    )(x_flat, fused["wff"], fused["bff"],
      fused["wih0"], fused["whh0"], fused["bl0"],
      fused["wih1"], fused["whh1"], fused["bl1"],
      fused["w2"], fused["b2"])
    return out, hn, cn


# ---------------------------------------------------------------------------
# Pure-JAX reference replicating the PyTorch forward (unfused math, original
# gate order, raw parameters).
# ---------------------------------------------------------------------------
def _lstm_cell_ref(inp, h_prev, c_prev, wih, whh, bl, H):
    gates = inp @ wih + h_prev @ whh + bl
    i_g = jax.nn.sigmoid(gates[:, 0 * H:1 * H])
    f_g = jax.nn.sigmoid(gates[:, 1 * H:2 * H])
    g_g = jnp.tanh(gates[:, 2 * H:3 * H])
    o_g = jax.nn.sigmoid(gates[:, 3 * H:4 * H])
    c_new = f_g * c_prev + i_g * g_g
    h_new = o_g * jnp.tanh(c_new)
    return h_new, c_new


def reference(x, raw_params):
    w0, b0, wsp, w1, b1, wih0, whh0, bl0, wih1, whh1, bl1, w2, b2 = raw_params
    B, T, _ = x.shape
    H = whh0.shape[0]
    h = jnp.zeros((2, B, H), jnp.float32)
    c = jnp.zeros((2, B, H), jnp.float32)
    feats = _gelu_exact(((x @ w0 + b0) @ wsp) @ w1 + b1)    # [B, T, C]
    inp = feats[:, 0, :]
    for t in range(T):
        inp = feats[:, t, :]
        hs, cs = [], []
        for l, (wih, whh, bl) in enumerate(((wih0, whh0, bl0), (wih1, whh1, bl1))):
            h_new, c_new = _lstm_cell_ref(inp, h[l], c[l], wih, whh, bl, H)
            hs.append(h_new)
            cs.append(c_new)
            inp = h_new
        h = jnp.stack(hs)
        c = jnp.stack(cs)
    out = inp @ w2 + b2
    return out, h, c


if __name__ == "__main__":
    # Small shapes implied by the forward: x is [batch, seq_len, input_dim].
    B, T, D_in = 2, 8, 4
    C = 32          # hidden_channels
    H = 32          # hidden_dim
    L = 2           # layer_dim
    out_dim = 4     # output_dim

    key = jax.random.PRNGKey(0)
    ks = jax.random.split(key, 20)
    u = lambda k, shape, b: jax.random.uniform(k, shape, jnp.float32, -b, b)

    # Deterministic synthetic parameters (PyTorch-like init ranges).
    w0 = u(ks[0], (D_in, C), 1.0 / math.sqrt(D_in))
    b0 = u(ks[1], (1, C), 1.0 / math.sqrt(D_in))
    # Re(spectral weights[:, :, 0]); torch init: (1/(C*C)) * U[0,1) complex.
    wsp = jax.random.uniform(ks[2], (C, C), jnp.float32, 0.0, 1.0 / (C * C))
    w1 = u(ks[3], (C, C), 1.0 / math.sqrt(C))
    b1 = u(ks[4], (1, C), 1.0 / math.sqrt(C))
    bnd = 1.0 / math.sqrt(H)
    wih0 = u(ks[5], (C, 4 * H), bnd)
    whh0 = u(ks[6], (H, 4 * H), bnd)
    bl0 = u(ks[7], (1, 4 * H), bnd) + u(ks[8], (1, 4 * H), bnd)     # b_ih + b_hh
    wih1 = u(ks[9], (H, 4 * H), bnd)
    whh1 = u(ks[10], (H, 4 * H), bnd)
    bl1 = u(ks[11], (1, 4 * H), bnd) + u(ks[12], (1, 4 * H), bnd)
    w2 = u(ks[13], (H, out_dim), 1.0 / math.sqrt(H))
    b2 = u(ks[14], (1, out_dim), 1.0 / math.sqrt(H))
    raw_params = (w0, b0, wsp, w1, b1, wih0, whh0, bl0, wih1, whh1, bl1, w2, b2)

    x = jax.random.normal(ks[15], (B, T, D_in), jnp.float32)
    out_r, hn_r, cn_r = reference(x, raw_params)

    # --- f32 MXU path: strict check against the unfused reference.
    fused_f32 = prepare_params(raw_params, matmul_dtype=jnp.float32)
    out, hn, cn = jax.block_until_ready(spectral_conv_lstm(x, fused_f32))
    np.testing.assert_allclose(np.asarray(out), np.asarray(out_r), rtol=1e-4, atol=1e-4)
    np.testing.assert_allclose(np.asarray(hn), np.asarray(hn_r), rtol=1e-4, atol=1e-4)
    np.testing.assert_allclose(np.asarray(cn), np.asarray(cn_r), rtol=1e-4, atol=1e-4)

    # --- bf16 MXU-operand path (f32 accumulation, f32 elementwise): sanity
    # check at bf16-operand precision.
    fused_bf16 = prepare_params(raw_params, matmul_dtype=jnp.bfloat16)
    out_b, hn_b, cn_b = jax.block_until_ready(spectral_conv_lstm(x, fused_bf16))
    np.testing.assert_allclose(np.asarray(out_b), np.asarray(out_r), rtol=1e-1, atol=1e-1)
    np.testing.assert_allclose(np.asarray(hn_b), np.asarray(hn_r), rtol=1e-1, atol=1e-1)
    np.testing.assert_allclose(np.asarray(cn_b), np.asarray(cn_r), rtol=1e-1, atol=1e-1)

    print("KERNEL_OK")
</pallas_src>

<mosaic_0001>
module attributes {stable_mosaic.version = 11 : i64} {
  func.func @kernel(%arg0: memref<16x4xf32, #tpu.memory_space<vmem>>, %arg1: memref<4x32xf32, #tpu.memory_space<vmem>>, %arg2: memref<1x32xf32, #tpu.memory_space<vmem>>, %arg3: memref<32x128xf32, #tpu.memory_space<vmem>>, %arg4: memref<32x128xf32, #tpu.memory_space<vmem>>, %arg5: memref<1x128xf32, #tpu.memory_space<vmem>>, %arg6: memref<32x128xf32, #tpu.memory_space<vmem>>, %arg7: memref<32x128xf32, #tpu.memory_space<vmem>>, %arg8: memref<1x128xf32, #tpu.memory_space<vmem>>, %arg9: memref<32x4xf32, #tpu.memory_space<vmem>>, %arg10: memref<1x4xf32, #tpu.memory_space<vmem>>, %arg11: memref<2x4xf32, #tpu.memory_space<vmem>>, %arg12: memref<2x2x32xf32, #tpu.memory_space<vmem>>, %arg13: memref<2x2x32xf32, #tpu.memory_space<vmem>>) attributes {dimension_semantics = [], scalar_prefetch = 0 : i64, scratch_operands = 0 : i64, tpu.core_type = #tpu.core_type<tc>} {
    %c0 = arith.constant 0 : index
    %c0_0 = arith.constant 0 : index
    %0 = vector.load %arg0[%c0, %c0_0] : memref<16x4xf32, #tpu.memory_space<vmem>>, vector<16x4xf32>
    %c0_1 = arith.constant 0 : index
    %c0_2 = arith.constant 0 : index
    %1 = vector.load %arg1[%c0_1, %c0_2] : memref<4x32xf32, #tpu.memory_space<vmem>>, vector<4x32xf32>
    %cst = arith.constant dense<0.000000e+00> : vector<16x32xf32>
    %2 = tpu.matmul %0, %1, %cst {dimension_numbers = #tpu.dot_dimension_numbers<[1], [0], [0], [1], [0, 0, 1, 1], [], []>} : vector<16x4xf32>, vector<4x32xf32>, vector<16x32xf32> -> vector<16x32xf32>
    %c0_3 = arith.constant 0 : index
    %c0_4 = arith.constant 0 : index
    %3 = vector.load %arg2[%c0_3, %c0_4] : memref<1x32xf32, #tpu.memory_space<vmem>>, vector<1x32xf32>
    %4 = vector.broadcast %3 : vector<1x32xf32> to vector<16x32xf32>
    %5 = arith.addf %2, %4 : vector<16x32xf32>
    %cst_5 = arith.constant 5.000000e-01 : f32
    %6 = vector.broadcast %cst_5 : f32 to vector<16x32xf32>
    %7 = arith.mulf %6, %5 : vector<16x32xf32>
    %cst_6 = arith.constant 1.41421354 : f32
    %8 = vector.broadcast %cst_6 : f32 to vector<16x32xf32>
    %9 = arith.divf %5, %8 : vector<16x32xf32>
    %10 = math.erf %9 : vector<16x32xf32>
    %cst_7 = arith.constant 1.000000e+00 : f32
    %11 = vector.broadcast %cst_7 : f32 to vector<16x32xf32>
    %12 = arith.addf %11, %10 : vector<16x32xf32>
    %13 = arith.mulf %7, %12 : vector<16x32xf32>
    %c0_8 = arith.constant 0 : index
    %c0_9 = arith.constant 0 : index
    %14 = vector.load %arg3[%c0_8, %c0_9] : memref<32x128xf32, #tpu.memory_space<vmem>>, vector<32x128xf32>
    %cst_10 = arith.constant dense<0.000000e+00> : vector<16x128xf32>
    %15 = tpu.matmul %13, %14, %cst_10 {dimension_numbers = #tpu.dot_dimension_numbers<[1], [0], [0], [1], [0, 0, 1, 1], [], []>} : vector<16x32xf32>, vector<32x128xf32>, vector<16x128xf32> -> vector<16x128xf32>
    %c0_11 = arith.constant 0 : index
    %c0_12 = arith.constant 0 : index
    %16 = vector.load %arg5[%c0_11, %c0_12] : memref<1x128xf32, #tpu.memory_space<vmem>>, vector<1x128xf32>
    %17 = vector.broadcast %16 : vector<1x128xf32> to vector<16x128xf32>
    %18 = arith.addf %15, %17 : vector<16x128xf32>
    %c0_13 = arith.constant 0 : index
    %c0_14 = arith.constant 0 : index
    %19 = vector.load %arg4[%c0_13, %c0_14] : memref<32x128xf32, #tpu.memory_space<vmem>>, vector<32x128xf32>
    %c0_15 = arith.constant 0 : index
    %c0_16 = arith.constant 0 : index
    %20 = vector.load %arg6[%c0_15, %c0_16] : memref<32x128xf32, #tpu.memory_space<vmem>>, vector<32x128xf32>
    %c0_17 = arith.constant 0 : index
    %c0_18 = arith.constant 0 : index
    %21 = vector.load %arg7[%c0_17, %c0_18] : memref<32x128xf32, #tpu.memory_space<vmem>>, vector<32x128xf32>
    %c0_19 = arith.constant 0 : index
    %c0_20 = arith.constant 0 : index
    %22 = vector.load %arg8[%c0_19, %c0_20] : memref<1x128xf32, #tpu.memory_space<vmem>>, vector<1x128xf32>
    %23 = vector.shape_cast %22 : vector<1x128xf32> to vector<1x128xf32>
    %24 = vector.broadcast %23 : vector<1x128xf32> to vector<2x128xf32>
    %cst_21 = arith.constant 0.000000e+00 : f32
    %25 = vector.broadcast %cst_21 : f32 to vector<2x32xf32>
    %cst_22 = arith.constant 0.000000e+00 : f32
    %26 = vector.broadcast %cst_22 : f32 to vector<2x32xf32>
    %cst_23 = arith.constant 0.000000e+00 : f32
    %27 = vector.broadcast %cst_23 : f32 to vector<2x32xf32>
    %cst_24 = arith.constant 0.000000e+00 : f32
    %28 = vector.broadcast %cst_24 : f32 to vector<2x32xf32>
    %29 = vector.extract_strided_slice %18 {offsets = [0, 0], sizes = [2, 128], strides = [1, 1]} : vector<16x128xf32> to vector<2x128xf32>
    %cst_25 = arith.constant dense<0.000000e+00> : vector<2x128xf32>
    %30 = tpu.matmul %25, %19, %cst_25 {dimension_numbers = #tpu.dot_dimension_numbers<[1], [0], [0], [1], [0, 0, 1, 1], [], []>} : vector<2x32xf32>, vector<32x128xf32>, vector<2x128xf32> -> vector<2x128xf32>
    %31 = arith.addf %29, %30 : vector<2x128xf32>
    %32 = vector.extract_strided_slice %31 {offsets = [0, 0], sizes = [2, 96], strides = [1, 1]} : vector<2x128xf32> to vector<2x96xf32>
    %33 = arith.negf %32 : vector<2x96xf32>
    %34 = math.exp %33 : vector<2x96xf32>
    %cst_26 = arith.constant 1.000000e+00 : f32
    %35 = vector.broadcast %cst_26 : f32 to vector<2x96xf32>
    %36 = arith.addf %35, %34 : vector<2x96xf32>
    %37 = arith.divf %35, %36 : vector<2x96xf32>
    %38 = vector.extract_strided_slice %31 {offsets = [0, 96], sizes = [2, 32], strides = [1, 1]} : vector<2x128xf32> to vector<2x32xf32>
    %39 = math.tanh %38 : vector<2x32xf32>
    %40 = vector.extract_strided_slice %37 {offsets = [0, 0], sizes = [2, 32], strides = [1, 1]} : vector<2x96xf32> to vector<2x32xf32>
    %41 = vector.extract_strided_slice %37 {offsets = [0, 32], sizes = [2, 32], strides = [1, 1]} : vector<2x96xf32> to vector<2x32xf32>
    %42 = vector.extract_strided_slice %37 {offsets = [0, 64], sizes = [2, 32], strides = [1, 1]} : vector<2x96xf32> to vector<2x32xf32>
    %43 = arith.mulf %41, %26 : vector<2x32xf32>
    %44 = arith.mulf %40, %39 : vector<2x32xf32>
    %45 = arith.addf %43, %44 : vector<2x32xf32>
    %46 = math.tanh %45 : vector<2x32xf32>
    %47 = arith.mulf %42, %46 : vector<2x32xf32>
    %cst_27 = arith.constant dense<0.000000e+00> : vector<2x128xf32>
    %48 = tpu.matmul %47, %20, %cst_27 {dimension_numbers = #tpu.dot_dimension_numbers<[1], [0], [0], [1], [0, 0, 1, 1], [], []>} : vector<2x32xf32>, vector<32x128xf32>, vector<2x128xf32> -> vector<2x128xf32>
    %cst_28 = arith.constant dense<0.000000e+00> : vector<2x128xf32>
    %49 = tpu.matmul %27, %21, %cst_28 {dimension_numbers = #tpu.dot_dimension_numbers<[1], [0], [0], [1], [0, 0, 1, 1], [], []>} : vector<2x32xf32>, vector<32x128xf32>, vector<2x128xf32> -> vector<2x128xf32>
    %50 = arith.addf %48, %49 : vector<2x128xf32>
    %51 = arith.addf %50, %24 : vector<2x128xf32>
    %52 = vector.extract_strided_slice %51 {offsets = [0, 0], sizes = [2, 96], strides = [1, 1]} : vector<2x128xf32> to vector<2x96xf32>
    %53 = arith.negf %52 : vector<2x96xf32>
    %54 = math.exp %53 : vector<2x96xf32>
    %cst_29 = arith.constant 1.000000e+00 : f32
    %55 = vector.broadcast %cst_29 : f32 to vector<2x96xf32>
    %56 = arith.addf %55, %54 : vector<2x96xf32>
    %57 = arith.divf %55, %56 : vector<2x96xf32>
    %58 = vector.extract_strided_slice %51 {offsets = [0, 96], sizes = [2, 32], strides = [1, 1]} : vector<2x128xf32> to vector<2x32xf32>
    %59 = math.tanh %58 : vector<2x32xf32>
    %60 = vector.extract_strided_slice %57 {offsets = [0, 0], sizes = [2, 32], strides = [1, 1]} : vector<2x96xf32> to vector<2x32xf32>
    %61 = vector.extract_strided_slice %57 {offsets = [0, 32], sizes = [2, 32], strides = [1, 1]} : vector<2x96xf32> to vector<2x32xf32>
    %62 = vector.extract_strided_slice %57 {offsets = [0, 64], sizes = [2, 32], strides = [1, 1]} : vector<2x96xf32> to vector<2x32xf32>
    %63 = arith.mulf %61, %28 : vector<2x32xf32>
    %64 = arith.mulf %60, %59 : vector<2x32xf32>
    %65 = arith.addf %63, %64 : vector<2x32xf32>
    %66 = math.tanh %65 : vector<2x32xf32>
    %67 = arith.mulf %62, %66 : vector<2x32xf32>
    %68 = vector.extract_strided_slice %18 {offsets = [2, 0], sizes = [2, 128], strides = [1, 1]} : vector<16x128xf32> to vector<2x128xf32>
    %cst_30 = arith.constant dense<0.000000e+00> : vector<2x128xf32>
    %69 = tpu.matmul %47, %19, %cst_30 {dimension_numbers = #tpu.dot_dimension_numbers<[1], [0], [0], [1], [0, 0, 1, 1], [], []>} : vector<2x32xf32>, vector<32x128xf32>, vector<2x128xf32> -> vector<2x128xf32>
    %70 = arith.addf %68, %69 : vector<2x128xf32>
    %71 = vector.extract_strided_slice %70 {offsets = [0, 0], sizes = [2, 96], strides = [1, 1]} : vector<2x128xf32> to vector<2x96xf32>
    %72 = arith.negf %71 : vector<2x96xf32>
    %73 = math.exp %72 : vector<2x96xf32>
    %cst_31 = arith.constant 1.000000e+00 : f32
    %74 = vector.broadcast %cst_31 : f32 to vector<2x96xf32>
    %75 = arith.addf %74, %73 : vector<2x96xf32>
    %76 = arith.divf %74, %75 : vector<2x96xf32>
    %77 = vector.extract_strided_slice %70 {offsets = [0, 96], sizes = [2, 32], strides = [1, 1]} : vector<2x128xf32> to vector<2x32xf32>
    %78 = math.tanh %77 : vector<2x32xf32>
    %79 = vector.extract_strided_slice %76 {offsets = [0, 0], sizes = [2, 32], strides = [1, 1]} : vector<2x96xf32> to vector<2x32xf32>
    %80 = vector.extract_strided_slice %76 {offsets = [0, 32], sizes = [2, 32], strides = [1, 1]} : vector<2x96xf32> to vector<2x32xf32>
    %81 = vector.extract_strided_slice %76 {offsets = [0, 64], sizes = [2, 32], strides = [1, 1]} : vector<2x96xf32> to vector<2x32xf32>
    %82 = arith.mulf %80, %45 : vector<2x32xf32>
    %83 = arith.mulf %79, %78 : vector<2x32xf32>
    %84 = arith.addf %82, %83 : vector<2x32xf32>
    %85 = math.tanh %84 : vector<2x32xf32>
    %86 = arith.mulf %81, %85 : vector<2x32xf32>
    %cst_32 = arith.constant dense<0.000000e+00> : vector<2x128xf32>
    %87 = tpu.matmul %86, %20, %cst_32 {dimension_numbers = #tpu.dot_dimension_numbers<[1], [0], [0], [1], [0, 0, 1, 1], [], []>} : vector<2x32xf32>, vector<32x128xf32>, vector<2x128xf32> -> vector<2x128xf32>
    %cst_33 = arith.constant dense<0.000000e+00> : vector<2x128xf32>
    %88 = tpu.matmul %67, %21, %cst_33 {dimension_numbers = #tpu.dot_dimension_numbers<[1], [0], [0], [1], [0, 0, 1, 1], [], []>} : vector<2x32xf32>, vector<32x128xf32>, vector<2x128xf32> -> vector<2x128xf32>
    %89 = arith.addf %87, %88 : vector<2x128xf32>
    %90 = arith.addf %89, %24 : vector<2x128xf32>
    %91 = vector.extract_strided_slice %90 {offsets = [0, 0], sizes = [2, 96], strides = [1, 1]} : vector<2x128xf32> to vector<2x96xf32>
    %92 = arith.negf %91 : vector<2x96xf32>
    %93 = math.exp %92 : vector<2x96xf32>
    %cst_34 = arith.constant 1.000000e+00 : f32
    %94 = vector.broadcast %cst_34 : f32 to vector<2x96xf32>
    %95 = arith.addf %94, %93 : vector<2x96xf32>
    %96 = arith.divf %94, %95 : vector<2x96xf32>
    %97 = vector.extract_strided_slice %90 {offsets = [0, 96], sizes = [2, 32], strides = [1, 1]} : vector<2x128xf32> to vector<2x32xf32>
    %98 = math.tanh %97 : vector<2x32xf32>
    %99 = vector.extract_strided_slice %96 {offsets = [0, 0], sizes = [2, 32], strides = [1, 1]} : vector<2x96xf32> to vector<2x32xf32>
    %100 = vector.extract_strided_slice %96 {offsets = [0, 32], sizes = [2, 32], strides = [1, 1]} : vector<2x96xf32> to vector<2x32xf32>
    %101 = vector.extract_strided_slice %96 {offsets = [0, 64], sizes = [2, 32], strides = [1, 1]} : vector<2x96xf32> to vector<2x32xf32>
    %102 = arith.mulf %100, %65 : vector<2x32xf32>
    %103 = arith.mulf %99, %98 : vector<2x32xf32>
    %104 = arith.addf %102, %103 : vector<2x32xf32>
    %105 = math.tanh %104 : vector<2x32xf32>
    %106 = arith.mulf %101, %105 : vector<2x32xf32>
    %107 = vector.extract_strided_slice %18 {offsets = [4, 0], sizes = [2, 128], strides = [1, 1]} : vector<16x128xf32> to vector<2x128xf32>
    %cst_35 = arith.constant dense<0.000000e+00> : vector<2x128xf32>
    %108 = tpu.matmul %86, %19, %cst_35 {dimension_numbers = #tpu.dot_dimension_numbers<[1], [0], [0], [1], [0, 0, 1, 1], [], []>} : vector<2x32xf32>, vector<32x128xf32>, vector<2x128xf32> -> vector<2x128xf32>
    %109 = arith.addf %107, %108 : vector<2x128xf32>
    %110 = vector.extract_strided_slice %109 {offsets = [0, 0], sizes = [2, 96], strides = [1, 1]} : vector<2x128xf32> to vector<2x96xf32>
    %111 = arith.negf %110 : vector<2x96xf32>
    %112 = math.exp %111 : vector<2x96xf32>
    %cst_36 = arith.constant 1.000000e+00 : f32
    %113 = vector.broadcast %cst_36 : f32 to vector<2x96xf32>
    %114 = arith.addf %113, %112 : vector<2x96xf32>
    %115 = arith.divf %113, %114 : vector<2x96xf32>
    %116 = vector.extract_strided_slice %109 {offsets = [0, 96], sizes = [2, 32], strides = [1, 1]} : vector<2x128xf32> to vector<2x32xf32>
    %117 = math.tanh %116 : vector<2x32xf32>
    %118 = vector.extract_strided_slice %115 {offsets = [0, 0], sizes = [2, 32], strides = [1, 1]} : vector<2x96xf32> to vector<2x32xf32>
    %119 = vector.extract_strided_slice %115 {offsets = [0, 32], sizes = [2, 32], strides = [1, 1]} : vector<2x96xf32> to vector<2x32xf32>
    %120 = vector.extract_strided_slice %115 {offsets = [0, 64], sizes = [2, 32], strides = [1, 1]} : vector<2x96xf32> to vector<2x32xf32>
    %121 = arith.mulf %119, %84 : vector<2x32xf32>
    %122 = arith.mulf %118, %117 : vector<2x32xf32>
    %123 = arith.addf %121, %122 : vector<2x32xf32>
    %124 = math.tanh %123 : vector<2x32xf32>
    %125 = arith.mulf %120, %124 : vector<2x32xf32>
    %cst_37 = arith.constant dense<0.000000e+00> : vector<2x128xf32>
    %126 = tpu.matmul %125, %20, %cst_37 {dimension_numbers = #tpu.dot_dimension_numbers<[1], [0], [0], [1], [0, 0, 1, 1], [], []>} : vector<2x32xf32>, vector<32x128xf32>, vector<2x128xf32> -> vector<2x128xf32>
    %cst_38 = arith.constant dense<0.000000e+00> : vector<2x128xf32>
    %127 = tpu.matmul %106, %21, %cst_38 {dimension_numbers = #tpu.dot_dimension_numbers<[1], [0], [0], [1], [0, 0, 1, 1], [], []>} : vector<2x32xf32>, vector<32x128xf32>, vector<2x128xf32> -> vector<2x128xf32>
    %128 = arith.addf %126, %127 : vector<2x128xf32>
    %129 = arith.addf %128, %24 : vector<2x128xf32>
    %130 = vector.extract_strided_slice %129 {offsets = [0, 0], sizes = [2, 96], strides = [1, 1]} : vector<2x128xf32> to vector<2x96xf32>
    %131 = arith.negf %130 : vector<2x96xf32>
    %132 = math.exp %131 : vector<2x96xf32>
    %cst_39 = arith.constant 1.000000e+00 : f32
    %133 = vector.broadcast %cst_39 : f32 to vector<2x96xf32>
    %134 = arith.addf %133, %132 : vector<2x96xf32>
    %135 = arith.divf %133, %134 : vector<2x96xf32>
    %136 = vector.extract_strided_slice %129 {offsets = [0, 96], sizes = [2, 32], strides = [1, 1]} : vector<2x128xf32> to vector<2x32xf32>
    %137 = math.tanh %136 : vector<2x32xf32>
    %138 = vector.extract_strided_slice %135 {offsets = [0, 0], sizes = [2, 32], strides = [1, 1]} : vector<2x96xf32> to vector<2x32xf32>
    %139 = vector.extract_strided_slice %135 {offsets = [0, 32], sizes = [2, 32], strides = [1, 1]} : vector<2x96xf32> to vector<2x32xf32>
    %140 = vector.extract_strided_slice %135 {offsets = [0, 64], sizes = [2, 32], strides = [1, 1]} : vector<2x96xf32> to vector<2x32xf32>
    %141 = arith.mulf %139, %104 : vector<2x32xf32>
    %142 = arith.mulf %138, %137 : vector<2x32xf32>
    %143 = arith.addf %141, %142 : vector<2x32xf32>
    %144 = math.tanh %143 : vector<2x32xf32>
    %145 = arith.mulf %140, %144 : vector<2x32xf32>
    %146 = vector.extract_strided_slice %18 {offsets = [6, 0], sizes = [2, 128], strides = [1, 1]} : vector<16x128xf32> to vector<2x128xf32>
    %cst_40 = arith.constant dense<0.000000e+00> : vector<2x128xf32>
    %147 = tpu.matmul %125, %19, %cst_40 {dimension_numbers = #tpu.dot_dimension_numbers<[1], [0], [0], [1], [0, 0, 1, 1], [], []>} : vector<2x32xf32>, vector<32x128xf32>, vector<2x128xf32> -> vector<2x128xf32>
    %148 = arith.addf %146, %147 : vector<2x128xf32>
    %149 = vector.extract_strided_slice %148 {offsets = [0, 0], sizes = [2, 96], strides = [1, 1]} : vector<2x128xf32> to vector<2x96xf32>
    %150 = arith.negf %149 : vector<2x96xf32>
    %151 = math.exp %150 : vector<2x96xf32>
    %cst_41 = arith.constant 1.000000e+00 : f32
    %152 = vector.broadcast %cst_41 : f32 to vector<2x96xf32>
    %153 = arith.addf %152, %151 : vector<2x96xf32>
    %154 = arith.divf %152, %153 : vector<2x96xf32>
    %155 = vector.extract_strided_slice %148 {offsets = [0, 96], sizes = [2, 32], strides = [1, 1]} : vector<2x128xf32> to vector<2x32xf32>
    %156 = math.tanh %155 : vector<2x32xf32>
    %157 = vector.extract_strided_slice %154 {offsets = [0, 0], sizes = [2, 32], strides = [1, 1]} : vector<2x96xf32> to vector<2x32xf32>
    %158 = vector.extract_strided_slice %154 {offsets = [0, 32], sizes = [2, 32], strides = [1, 1]} : vector<2x96xf32> to vector<2x32xf32>
    %159 = vector.extract_strided_slice %154 {offsets = [0, 64], sizes = [2, 32], strides = [1, 1]} : vector<2x96xf32> to vector<2x32xf32>
    %160 = arith.mulf %158, %123 : vector<2x32xf32>
    %161 = arith.mulf %157, %156 : vector<2x32xf32>
    %162 = arith.addf %160, %161 : vector<2x32xf32>
    %163 = math.tanh %162 : vector<2x32xf32>
    %164 = arith.mulf %159, %163 : vector<2x32xf32>
    %cst_42 = arith.constant dense<0.000000e+00> : vector<2x128xf32>
    %165 = tpu.matmul %164, %20, %cst_42 {dimension_numbers = #tpu.dot_dimension_numbers<[1], [0], [0], [1], [0, 0, 1, 1], [], []>} : vector<2x32xf32>, vector<32x128xf32>, vector<2x128xf32> -> vector<2x128xf32>
    %cst_43 = arith.constant dense<0.000000e+00> : vector<2x128xf32>
    %166 = tpu.matmul %145, %21, %cst_43 {dimension_numbers = #tpu.dot_dimension_numbers<[1], [0], [0], [1], [0, 0, 1, 1], [], []>} : vector<2x32xf32>, vector<32x128xf32>, vector<2x128xf32> -> vector<2x128xf32>
    %167 = arith.addf %165, %166 : vector<2x128xf32>
    %168 = arith.addf %167, %24 : vector<2x128xf32>
    %169 = vector.extract_strided_slice %168 {offsets = [0, 0], sizes = [2, 96], strides = [1, 1]} : vector<2x128xf32> to vector<2x96xf32>
    %170 = arith.negf %169 : vector<2x96xf32>
    %171 = math.exp %170 : vector<2x96xf32>
    %cst_44 = arith.constant 1.000000e+00 : f32
    %172 = vector.broadcast %cst_44 : f32 to vector<2x96xf32>
    %173 = arith.addf %172, %171 : vector<2x96xf32>
    %174 = arith.divf %172, %173 : vector<2x96xf32>
    %175 = vector.extract_strided_slice %168 {offsets = [0, 96], sizes = [2, 32], strides = [1, 1]} : vector<2x128xf32> to vector<2x32xf32>
    %176 = math.tanh %175 : vector<2x32xf32>
    %177 = vector.extract_strided_slice %174 {offsets = [0, 0], sizes = [2, 32], strides = [1, 1]} : vector<2x96xf32> to vector<2x32xf32>
    %178 = vector.extract_strided_slice %174 {offsets = [0, 32], sizes = [2, 32], strides = [1, 1]} : vector<2x96xf32> to vector<2x32xf32>
    %179 = vector.extract_strided_slice %174 {offsets = [0, 64], sizes = [2, 32], strides = [1, 1]} : vector<2x96xf32> to vector<2x32xf32>
    %180 = arith.mulf %178, %143 : vector<2x32xf32>
    %181 = arith.mulf %177, %176 : vector<2x32xf32>
    %182 = arith.addf %180, %181 : vector<2x32xf32>
    %183 = math.tanh %182 : vector<2x32xf32>
    %184 = arith.mulf %179, %183 : vector<2x32xf32>
    %185 = vector.extract_strided_slice %18 {offsets = [8, 0], sizes = [2, 128], strides = [1, 1]} : vector<16x128xf32> to vector<2x128xf32>
    %cst_45 = arith.constant dense<0.000000e+00> : vector<2x128xf32>
    %186 = tpu.matmul %164, %19, %cst_45 {dimension_numbers = #tpu.dot_dimension_numbers<[1], [0], [0], [1], [0, 0, 1, 1], [], []>} : vector<2x32xf32>, vector<32x128xf32>, vector<2x128xf32> -> vector<2x128xf32>
    %187 = arith.addf %185, %186 : vector<2x128xf32>
    %188 = vector.extract_strided_slice %187 {offsets = [0, 0], sizes = [2, 96], strides = [1, 1]} : vector<2x128xf32> to vector<2x96xf32>
    %189 = arith.negf %188 : vector<2x96xf32>
    %190 = math.exp %189 : vector<2x96xf32>
    %cst_46 = arith.constant 1.000000e+00 : f32
    %191 = vector.broadcast %cst_46 : f32 to vector<2x96xf32>
    %192 = arith.addf %191, %190 : vector<2x96xf32>
    %193 = arith.divf %191, %192 : vector<2x96xf32>
    %194 = vector.extract_strided_slice %187 {offsets = [0, 96], sizes = [2, 32], strides = [1, 1]} : vector<2x128xf32> to vector<2x32xf32>
    %195 = math.tanh %194 : vector<2x32xf32>
    %196 = vector.extract_strided_slice %193 {offsets = [0, 0], sizes = [2, 32], strides = [1, 1]} : vector<2x96xf32> to vector<2x32xf32>
    %197 = vector.extract_strided_slice %193 {offsets = [0, 32], sizes = [2, 32], strides = [1, 1]} : vector<2x96xf32> to vector<2x32xf32>
    %198 = vector.extract_strided_slice %193 {offsets = [0, 64], sizes = [2, 32], strides = [1, 1]} : vector<2x96xf32> to vector<2x32xf32>
    %199 = arith.mulf %197, %162 : vector<2x32xf32>
    %200 = arith.mulf %196, %195 : vector<2x32xf32>
    %201 = arith.addf %199, %200 : vector<2x32xf32>
    %202 = math.tanh %201 : vector<2x32xf32>
    %203 = arith.mulf %198, %202 : vector<2x32xf32>
    %cst_47 = arith.constant dense<0.000000e+00> : vector<2x128xf32>
    %204 = tpu.matmul %203, %20, %cst_47 {dimension_numbers = #tpu.dot_dimension_numbers<[1], [0], [0], [1], [0, 0, 1, 1], [], []>} : vector<2x32xf32>, vector<32x128xf32>, vector<2x128xf32> -> vector<2x128xf32>
    %cst_48 = arith.constant dense<0.000000e+00> : vector<2x128xf32>
    %205 = tpu.matmul %184, %21, %cst_48 {dimension_numbers = #tpu.dot_dimension_numbers<[1], [0], [0], [1], [0, 0, 1, 1], [], []>} : vector<2x32xf32>, vector<32x128xf32>, vector<2x128xf32> -> vector<2x128xf32>
    %206 = arith.addf %204, %205 : vector<2x128xf32>
    %207 = arith.addf %206, %24 : vector<2x128xf32>
    %208 = vector.extract_strided_slice %207 {offsets = [0, 0], sizes = [2, 96], strides = [1, 1]} : vector<2x128xf32> to vector<2x96xf32>
    %209 = arith.negf %208 : vector<2x96xf32>
    %210 = math.exp %209 : vector<2x96xf32>
    %cst_49 = arith.constant 1.000000e+00 : f32
    %211 = vector.broadcast %cst_49 : f32 to vector<2x96xf32>
    %212 = arith.addf %211, %210 : vector<2x96xf32>
    %213 = arith.divf %211, %212 : vector<2x96xf32>
    %214 = vector.extract_strided_slice %207 {offsets = [0, 96], sizes = [2, 32], strides = [1, 1]} : vector<2x128xf32> to vector<2x32xf32>
    %215 = math.tanh %214 : vector<2x32xf32>
    %216 = vector.extract_strided_slice %213 {offsets = [0, 0], sizes = [2, 32], strides = [1, 1]} : vector<2x96xf32> to vector<2x32xf32>
    %217 = vector.extract_strided_slice %213 {offsets = [0, 32], sizes = [2, 32], strides = [1, 1]} : vector<2x96xf32> to vector<2x32xf32>
    %218 = vector.extract_strided_slice %213 {offsets = [0, 64], sizes = [2, 32], strides = [1, 1]} : vector<2x96xf32> to vector<2x32xf32>
    %219 = arith.mulf %217, %182 : vector<2x32xf32>
    %220 = arith.mulf %216, %215 : vector<2x32xf32>
    %221 = arith.addf %219, %220 : vector<2x32xf32>
    %222 = math.tanh %221 : vector<2x32xf32>
    %223 = arith.mulf %218, %222 : vector<2x32xf32>
    %224 = vector.extract_strided_slice %18 {offsets = [10, 0], sizes = [2, 128], strides = [1, 1]} : vector<16x128xf32> to vector<2x128xf32>
    %cst_50 = arith.constant dense<0.000000e+00> : vector<2x128xf32>
    %225 = tpu.matmul %203, %19, %cst_50 {dimension_numbers = #tpu.dot_dimension_numbers<[1], [0], [0], [1], [0, 0, 1, 1], [], []>} : vector<2x32xf32>, vector<32x128xf32>, vector<2x128xf32> -> vector<2x128xf32>
    %226 = arith.addf %224, %225 : vector<2x128xf32>
    %227 = vector.extract_strided_slice %226 {offsets = [0, 0], sizes = [2, 96], strides = [1, 1]} : vector<2x128xf32> to vector<2x96xf32>
    %228 = arith.negf %227 : vector<2x96xf32>
    %229 = math.exp %228 : vector<2x96xf32>
    %cst_51 = arith.constant 1.000000e+00 : f32
    %230 = vector.broadcast %cst_51 : f32 to vector<2x96xf32>
    %231 = arith.addf %230, %229 : vector<2x96xf32>
    %232 = arith.divf %230, %231 : vector<2x96xf32>
    %233 = vector.extract_strided_slice %226 {offsets = [0, 96], sizes = [2, 32], strides = [1, 1]} : vector<2x128xf32> to vector<2x32xf32>
    %234 = math.tanh %233 : vector<2x32xf32>
    %235 = vector.extract_strided_slice %232 {offsets = [0, 0], sizes = [2, 32], strides = [1, 1]} : vector<2x96xf32> to vector<2x32xf32>
    %236 = vector.extract_strided_slice %232 {offsets = [0, 32], sizes = [2, 32], strides = [1, 1]} : vector<2x96xf32> to vector<2x32xf32>
    %237 = vector.extract_strided_slice %232 {offsets = [0, 64], sizes = [2, 32], strides = [1, 1]} : vector<2x96xf32> to vector<2x32xf32>
    %238 = arith.mulf %236, %201 : vector<2x32xf32>
    %239 = arith.mulf %235, %234 : vector<2x32xf32>
    %240 = arith.addf %238, %239 : vector<2x32xf32>
    %241 = math.tanh %240 : vector<2x32xf32>
    %242 = arith.mulf %237, %241 : vector<2x32xf32>
    %cst_52 = arith.constant dense<0.000000e+00> : vector<2x128xf32>
    %243 = tpu.matmul %242, %20, %cst_52 {dimension_numbers = #tpu.dot_dimension_numbers<[1], [0], [0], [1], [0, 0, 1, 1], [], []>} : vector<2x32xf32>, vector<32x128xf32>, vector<2x128xf32> -> vector<2x128xf32>
    %cst_53 = arith.constant dense<0.000000e+00> : vector<2x128xf32>
    %244 = tpu.matmul %223, %21, %cst_53 {dimension_numbers = #tpu.dot_dimension_numbers<[1], [0], [0], [1], [0, 0, 1, 1], [], []>} : vector<2x32xf32>, vector<32x128xf32>, vector<2x128xf32> -> vector<2x128xf32>
    %245 = arith.addf %243, %244 : vector<2x128xf32>
    %246 = arith.addf %245, %24 : vector<2x128xf32>
    %247 = vector.extract_strided_slice %246 {offsets = [0, 0], sizes = [2, 96], strides = [1, 1]} : vector<2x128xf32> to vector<2x96xf32>
    %248 = arith.negf %247 : vector<2x96xf32>
    %249 = math.exp %248 : vector<2x96xf32>
    %cst_54 = arith.constant 1.000000e+00 : f32
    %250 = vector.broadcast %cst_54 : f32 to vector<2x96xf32>
    %251 = arith.addf %250, %249 : vector<2x96xf32>
    %252 = arith.divf %250, %251 : vector<2x96xf32>
    %253 = vector.extract_strided_slice %246 {offsets = [0, 96], sizes = [2, 32], strides = [1, 1]} : vector<2x128xf32> to vector<2x32xf32>
    %254 = math.tanh %253 : vector<2x32xf32>
    %255 = vector.extract_strided_slice %252 {offsets = [0, 0], sizes = [2, 32], strides = [1, 1]} : vector<2x96xf32> to vector<2x32xf32>
    %256 = vector.extract_strided_slice %252 {offsets = [0, 32], sizes = [2, 32], strides = [1, 1]} : vector<2x96xf32> to vector<2x32xf32>
    %257 = vector.extract_strided_slice %252 {offsets = [0, 64], sizes = [2, 32], strides = [1, 1]} : vector<2x96xf32> to vector<2x32xf32>
    %258 = arith.mulf %256, %221 : vector<2x32xf32>
    %259 = arith.mulf %255, %254 : vector<2x32xf32>
    %260 = arith.addf %258, %259 : vector<2x32xf32>
    %261 = math.tanh %260 : vector<2x32xf32>
    %262 = arith.mulf %257, %261 : vector<2x32xf32>
    %263 = vector.extract_strided_slice %18 {offsets = [12, 0], sizes = [2, 128], strides = [1, 1]} : vector<16x128xf32> to vector<2x128xf32>
    %cst_55 = arith.constant dense<0.000000e+00> : vector<2x128xf32>
    %264 = tpu.matmul %242, %19, %cst_55 {dimension_numbers = #tpu.dot_dimension_numbers<[1], [0], [0], [1], [0, 0, 1, 1], [], []>} : vector<2x32xf32>, vector<32x128xf32>, vector<2x128xf32> -> vector<2x128xf32>
    %265 = arith.addf %263, %264 : vector<2x128xf32>
    %266 = vector.extract_strided_slice %265 {offsets = [0, 0], sizes = [2, 96], strides = [1, 1]} : vector<2x128xf32> to vector<2x96xf32>
    %267 = arith.negf %266 : vector<2x96xf32>
    %268 = math.exp %267 : vector<2x96xf32>
    %cst_56 = arith.constant 1.000000e+00 : f32
    %269 = vector.broadcast %cst_56 : f32 to vector<2x96xf32>
    %270 = arith.addf %269, %268 : vector<2x96xf32>
    %271 = arith.divf %269, %270 : vector<2x96xf32>
    %272 = vector.extract_strided_slice %265 {offsets = [0, 96], sizes = [2, 32], strides = [1, 1]} : vector<2x128xf32> to vector<2x32xf32>
    %273 = math.tanh %272 : vector<2x32xf32>
    %274 = vector.extract_strided_slice %271 {offsets = [0, 0], sizes = [2, 32], strides = [1, 1]} : vector<2x96xf32> to vector<2x32xf32>
    %275 = vector.extract_strided_slice %271 {offsets = [0, 32], sizes = [2, 32], strides = [1, 1]} : vector<2x96xf32> to vector<2x32xf32>
    %276 = vector.extract_strided_slice %271 {offsets = [0, 64], sizes = [2, 32], strides = [1, 1]} : vector<2x96xf32> to vector<2x32xf32>
    %277 = arith.mulf %275, %240 : vector<2x32xf32>
    %278 = arith.mulf %274, %273 : vector<2x32xf32>
    %279 = arith.addf %277, %278 : vector<2x32xf32>
    %280 = math.tanh %279 : vector<2x32xf32>
    %281 = arith.mulf %276, %280 : vector<2x32xf32>
    %cst_57 = arith.constant dense<0.000000e+00> : vector<2x128xf32>
    %282 = tpu.matmul %281, %20, %cst_57 {dimension_numbers = #tpu.dot_dimension_numbers<[1], [0], [0], [1], [0, 0, 1, 1], [], []>} : vector<2x32xf32>, vector<32x128xf32>, vector<2x128xf32> -> vector<2x128xf32>
    %cst_58 = arith.constant dense<0.000000e+00> : vector<2x128xf32>
    %283 = tpu.matmul %262, %21, %cst_58 {dimension_numbers = #tpu.dot_dimension_numbers<[1], [0], [0], [1], [0, 0, 1, 1], [], []>} : vector<2x32xf32>, vector<32x128xf32>, vector<2x128xf32> -> vector<2x128xf32>
    %284 = arith.addf %282, %283 : vector<2x128xf32>
    %285 = arith.addf %284, %24 : vector<2x128xf32>
    %286 = vector.extract_strided_slice %285 {offsets = [0, 0], sizes = [2, 96], strides = [1, 1]} : vector<2x128xf32> to vector<2x96xf32>
    %287 = arith.negf %286 : vector<2x96xf32>
    %288 = math.exp %287 : vector<2x96xf32>
    %cst_59 = arith.constant 1.000000e+00 : f32
    %289 = vector.broadcast %cst_59 : f32 to vector<2x96xf32>
    %290 = arith.addf %289, %288 : vector<2x96xf32>
    %291 = arith.divf %289, %290 : vector<2x96xf32>
    %292 = vector.extract_strided_slice %285 {offsets = [0, 96], sizes = [2, 32], strides = [1, 1]} : vector<2x128xf32> to vector<2x32xf32>
    %293 = math.tanh %292 : vector<2x32xf32>
    %294 = vector.extract_strided_slice %291 {offsets = [0, 0], sizes = [2, 32], strides = [1, 1]} : vector<2x96xf32> to vector<2x32xf32>
    %295 = vector.extract_strided_slice %291 {offsets = [0, 32], sizes = [2, 32], strides = [1, 1]} : vector<2x96xf32> to vector<2x32xf32>
    %296 = vector.extract_strided_slice %291 {offsets = [0, 64], sizes = [2, 32], strides = [1, 1]} : vector<2x96xf32> to vector<2x32xf32>
    %297 = arith.mulf %295, %260 : vector<2x32xf32>
    %298 = arith.mulf %294, %293 : vector<2x32xf32>
    %299 = arith.addf %297, %298 : vector<2x32xf32>
    %300 = math.tanh %299 : vector<2x32xf32>
    %301 = arith.mulf %296, %300 : vector<2x32xf32>
    %302 = vector.extract_strided_slice %18 {offsets = [14, 0], sizes = [2, 128], strides = [1, 1]} : vector<16x128xf32> to vector<2x128xf32>
    %cst_60 = arith.constant dense<0.000000e+00> : vector<2x128xf32>
    %303 = tpu.matmul %281, %19, %cst_60 {dimension_numbers = #tpu.dot_dimension_numbers<[1], [0], [0], [1], [0, 0, 1, 1], [], []>} : vector<2x32xf32>, vector<32x128xf32>, vector<2x128xf32> -> vector<2x128xf32>
    %304 = arith.addf %302, %303 : vector<2x128xf32>
    %305 = vector.extract_strided_slice %304 {offsets = [0, 0], sizes = [2, 96], strides = [1, 1]} : vector<2x128xf32> to vector<2x96xf32>
    %306 = arith.negf %305 : vector<2x96xf32>
    %307 = math.exp %306 : vector<2x96xf32>
    %cst_61 = arith.constant 1.000000e+00 : f32
    %308 = vector.broadcast %cst_61 : f32 to vector<2x96xf32>
    %309 = arith.addf %308, %307 : vector<2x96xf32>
    %310 = arith.divf %308, %309 : vector<2x96xf32>
    %311 = vector.extract_strided_slice %304 {offsets = [0, 96], sizes = [2, 32], strides = [1, 1]} : vector<2x128xf32> to vector<2x32xf32>
    %312 = math.tanh %311 : vector<2x32xf32>
    %313 = vector.extract_strided_slice %310 {offsets = [0, 0], sizes = [2, 32], strides = [1, 1]} : vector<2x96xf32> to vector<2x32xf32>
    %314 = vector.extract_strided_slice %310 {offsets = [0, 32], sizes = [2, 32], strides = [1, 1]} : vector<2x96xf32> to vector<2x32xf32>
    %315 = vector.extract_strided_slice %310 {offsets = [0, 64], sizes = [2, 32], strides = [1, 1]} : vector<2x96xf32> to vector<2x32xf32>
    %316 = arith.mulf %314, %279 : vector<2x32xf32>
    %317 = arith.mulf %313, %312 : vector<2x32xf32>
    %318 = arith.addf %316, %317 : vector<2x32xf32>
    %319 = math.tanh %318 : vector<2x32xf32>
    %320 = arith.mulf %315, %319 : vector<2x32xf32>
    %cst_62 = arith.constant dense<0.000000e+00> : vector<2x128xf32>
    %321 = tpu.matmul %320, %20, %cst_62 {dimension_numbers = #tpu.dot_dimension_numbers<[1], [0], [0], [1], [0, 0, 1, 1], [], []>} : vector<2x32xf32>, vector<32x128xf32>, vector<2x128xf32> -> vector<2x128xf32>
    %cst_63 = arith.constant dense<0.000000e+00> : vector<2x128xf32>
    %322 = tpu.matmul %301, %21, %cst_63 {dimension_numbers = #tpu.dot_dimension_numbers<[1], [0], [0], [1], [0, 0, 1, 1], [], []>} : vector<2x32xf32>, vector<32x128xf32>, vector<2x128xf32> -> vector<2x128xf32>
    %323 = arith.addf %321, %322 : vector<2x128xf32>
    %324 = arith.addf %323, %24 : vector<2x128xf32>
    %325 = vector.extract_strided_slice %324 {offsets = [0, 0], sizes = [2, 96], strides = [1, 1]} : vector<2x128xf32> to vector<2x96xf32>
    %326 = arith.negf %325 : vector<2x96xf32>
    %327 = math.exp %326 : vector<2x96xf32>
    %cst_64 = arith.constant 1.000000e+00 : f32
    %328 = vector.broadcast %cst_64 : f32 to vector<2x96xf32>
    %329 = arith.addf %328, %327 : vector<2x96xf32>
    %330 = arith.divf %328, %329 : vector<2x96xf32>
    %331 = vector.extract_strided_slice %324 {offsets = [0, 96], sizes = [2, 32], strides = [1, 1]} : vector<2x128xf32> to vector<2x32xf32>
    %332 = math.tanh %331 : vector<2x32xf32>
    %333 = vector.extract_strided_slice %330 {offsets = [0, 0], sizes = [2, 32], strides = [1, 1]} : vector<2x96xf32> to vector<2x32xf32>
    %334 = vector.extract_strided_slice %330 {offsets = [0, 32], sizes = [2, 32], strides = [1, 1]} : vector<2x96xf32> to vector<2x32xf32>
    %335 = vector.extract_strided_slice %330 {offsets = [0, 64], sizes = [2, 32], strides = [1, 1]} : vector<2x96xf32> to vector<2x32xf32>
    %336 = arith.mulf %334, %299 : vector<2x32xf32>
    %337 = arith.mulf %333, %332 : vector<2x32xf32>
    %338 = arith.addf %336, %337 : vector<2x32xf32>
    %339 = math.tanh %338 : vector<2x32xf32>
    %340 = arith.mulf %335, %339 : vector<2x32xf32>
    %c0_65 = arith.constant 0 : index
    %c0_66 = arith.constant 0 : index
    %341 = vector.load %arg9[%c0_65, %c0_66] : memref<32x4xf32, #tpu.memory_space<vmem>>, vector<32x4xf32>
    %cst_67 = arith.constant dense<0.000000e+00> : vector<2x4xf32>
    %342 = tpu.matmul %340, %341, %cst_67 {dimension_numbers = #tpu.dot_dimension_numbers<[1], [0], [0], [1], [0, 0, 1, 1], [], []>} : vector<2x32xf32>, vector<32x4xf32>, vector<2x4xf32> -> vector<2x4xf32>
    %c0_68 = arith.constant 0 : index
    %c0_69 = arith.constant 0 : index
    %343 = vector.load %arg10[%c0_68, %c0_69] : memref<1x4xf32, #tpu.memory_space<vmem>>, vector<1x4xf32>
    %344 = vector.broadcast %343 : vector<1x4xf32> to vector<2x4xf32>
    %345 = arith.addf %342, %344 : vector<2x4xf32>
    %c0_70 = arith.constant 0 : index
    %c0_71 = arith.constant 0 : index
    %346 = vector.load %arg11[%c0_70, %c0_71] : memref<2x4xf32, #tpu.memory_space<vmem>>, vector<2x4xf32>
    tpu.vector_store %arg11[%c0_70, %c0_71], %345 {strides = array<i32>} : memref<2x4xf32, #tpu.memory_space<vmem>>, vector<2x4xf32>,
    %c0_72 = arith.constant 0 : index
    %c0_73 = arith.constant 0 : index
    %c0_74 = arith.constant 0 : index
    %347 = vector.load %arg12[%c0_72, %c0_73, %c0_74] : memref<2x2x32xf32, #tpu.memory_space<vmem>>, vector<1x2x32xf32>
    %348 = vector.shape_cast %347 : vector<1x2x32xf32> to vector<2x32xf32>
    %349 = vector.shape_cast %320 : vector<2x32xf32> to vector<1x2x32xf32>
    tpu.vector_store %arg12[%c0_72, %c0_73, %c0_74], %349 {strides = array<i32>} : memref<2x2x32xf32, #tpu.memory_space<vmem>>, vector<1x2x32xf32>,
    %c1 = arith.constant 1 : index
    %c0_75 = arith.constant 0 : index
    %c0_76 = arith.constant 0 : index
    %350 = vector.load %arg12[%c1, %c0_75, %c0_76] : memref<2x2x32xf32, #tpu.memory_space<vmem>>, vector<1x2x32xf32>
    %351 = vector.shape_cast %350 : vector<1x2x32xf32> to vector<2x32xf32>
    %352 = vector.shape_cast %340 : vector<2x32xf32> to vector<1x2x32xf32>
    tpu.vector_store %arg12[%c1, %c0_75, %c0_76], %352 {strides = array<i32>} : memref<2x2x32xf32, #tpu.memory_space<vmem>>, vector<1x2x32xf32>,
    %c0_77 = arith.constant 0 : index
    %c0_78 = arith.constant 0 : index
    %c0_79 = arith.constant 0 : index
    %353 = vector.load %arg13[%c0_77, %c0_78, %c0_79] : memref<2x2x32xf32, #tpu.memory_space<vmem>>, vector<1x2x32xf32>
    %354 = vector.shape_cast %353 : vector<1x2x32xf32> to vector<2x32xf32>
    %355 = vector.shape_cast %318 : vector<2x32xf32> to vector<1x2x32xf32>
    tpu.vector_store %arg13[%c0_77, %c0_78, %c0_79], %355 {strides = array<i32>} : memref<2x2x32xf32, #tpu.memory_space<vmem>>, vector<1x2x32xf32>,
    %c1_80 = arith.constant 1 : index
    %c0_81 = arith.constant 0 : index
    %c0_82 = arith.constant 0 : index
    %356 = vector.load %arg13[%c1_80, %c0_81, %c0_82] : memref<2x2x32xf32, #tpu.memory_space<vmem>>, vector<1x2x32xf32>
    %357 = vector.shape_cast %356 : vector<1x2x32xf32> to vector<2x32xf32>
    %358 = vector.shape_cast %338 : vector<2x32xf32> to vector<1x2x32xf32>
    tpu.vector_store %arg13[%c1_80, %c0_81, %c0_82], %358 {strides = array<i32>} : memref<2x2x32xf32, #tpu.memory_space<vmem>>, vector<1x2x32xf32>,
    return
  }
}

</mosaic_0001>

<llo_original>
// kernel: spectral_conv_lstm.1
$region0: #{spectral_conv_lstm.1}
  #allocation0 [shape = 'u32[]', space=smem, size = 0x4, offset = 0x4, fixed_abs, tag = 'smem constant byte address 0x4 - core index']
  #allocation1 [shape = 'u32[144,128]{1,0:T(1,128)}', space=vmem, size = 0x12000, scoped, tag = 'internal scratch']
  %s0 = inlined_call_operand.vmem [shape: f32[16,4], index: 0, kind: input, shape index: {}]
  %s1 = inlined_call_operand.hbm [shape: f32[4,32], index: 1, kind: input, shape index: {}]
  %s2 = inlined_call_operand.vmem [shape: f32[1,32], index: 2, kind: input, shape index: {}]
  %s3 = inlined_call_operand.vmem [shape: f32[32,128], index: 3, kind: input, shape index: {}]
  %s4 = inlined_call_operand.vmem [shape: f32[32,128], index: 4, kind: input, shape index: {}]
  %s5 = inlined_call_operand.hbm [shape: f32[1,128], index: 5, kind: input, shape index: {}]
  %s6 = inlined_call_operand.vmem [shape: f32[32,128], index: 6, kind: input, shape index: {}]
  %s7 = inlined_call_operand.hbm [shape: f32[32,128], index: 7, kind: input, shape index: {}]
  %s8 = inlined_call_operand.hbm [shape: f32[1,128], index: 8, kind: input, shape index: {}]
  %s9 = inlined_call_operand.vmem [shape: f32[32,4], index: 9, kind: input, shape index: {}]
  %s10 = inlined_call_operand.hbm [shape: f32[1,4], index: 10, kind: input, shape index: {}]
  %s11 = inlined_call_operand.hbm [shape: f32[2,4], index: 11, kind: output, shape index: {0}]
  %s12 = inlined_call_operand.hbm [shape: f32[2,2,32], index: 12, kind: output, shape index: {1}]
  %s13 = inlined_call_operand.hbm [shape: f32[2,2,32], index: 13, kind: output, shape index: {2}]
  %14 = xla_tuple %s11, %s12, %s13
  %s15 = sld [smem:[#allocation0]]
  $region90: #{spectral_conv_lstm.1} parent=0
    _
  %s17 = ssub.s32 1, %s15
  %s18 = scalar_select 0, %s17, %s15
  $region1: #{spectral_conv_lstm.1} parent=0
    #allocation2 [shape = 'u8[2048]{0}', space=vmem, size = 0x800, scoped, tag = 'input window, operand 1, single buffered']
    #allocation3 [shape = 's32[1]{0}', space=sflag, size = 0x4, scoped, tag = 'scoped memory for spectral_conv_lstm.1']
    #allocation4 [shape = 's32[1]{0}', space=sflag, size = 0x4, scoped, tag = 'scoped memory for spectral_conv_lstm.1']
    #allocation5 [shape = 'u8[512]{0}', space=vmem, size = 0x400, scoped, tag = 'input window, operand 5, single buffered']
    #allocation6 [shape = 's32[1]{0}', space=sflag, size = 0x4, scoped, tag = 'scoped memory for spectral_conv_lstm.1']
    #allocation7 [shape = 'u8[16384]{0}', space=vmem, size = 0x4000, scoped, tag = 'input window, operand 7, single buffered']
    #allocation8 [shape = 'u8[512]{0}', space=vmem, size = 0x400, scoped, tag = 'input window, operand 8, single buffered']
    #allocation9 [shape = 's32[1]{0}', space=sflag, size = 0x4, scoped, tag = 'scoped memory for spectral_conv_lstm.1']
    #allocation10 [shape = 'u8[512]{0}', space=vmem, size = 0x400, scoped, tag = 'input window, operand 10, single buffered']
    #allocation11 [shape = 'u8[1024]{0}', space=vmem, size = 0x400, scoped, tag = 'output window, operand 0, single buffered']
    #allocation12 [shape = 'u8[2048]{0}', space=vmem, size = 0x800, scoped, tag = 'output window, operand 1, single buffered']
    #allocation13 [shape = 's32[1]{0}', space=sflag, size = 0x4, scoped, tag = 'scoped memory for spectral_conv_lstm.1']
    #allocation14 [shape = 'u8[2048]{0}', space=vmem, size = 0x800, scoped, tag = 'output window, operand 2, single buffered']
    %19 = vsyncpa [#allocation3], 0
    %20 = vsyncpa [#allocation6], 0
    %21 = vsyncpa [#allocation9], 0
    %22 = vsyncpa [#allocation4], 0
    %23 = vsyncpa [#allocation13], 0
    // Predicated region
    $region2: #{spectral_conv_lstm.1} parent=1 // pred_check
      _
    $region3: #{spectral_conv_lstm.1} parent=1 // pred_check_branch
      %25 = sbr.rel (0) target = $region5
    $region4: #{spectral_conv_lstm.1} parent=1 // pred_region
      _
    $region5: #{spectral_conv_lstm.1} parent=1 // pred_fallthru
      _
    // Predicated region
    $region6: #{spectral_conv_lstm.1} parent=1 // pred_check
      _
    $region7: #{spectral_conv_lstm.1} parent=1 // pred_check_branch
      %27 = sbr.rel (0) target = $region9
    $region8: #{spectral_conv_lstm.1} parent=1 // pred_region
      %s29 = ssub.s32 64, 64
      %30 = vsyncadd [#allocation3], %s29
      %s32 = sshll.u32 [#allocation2], 4
      %s33 = int_to_ptr.vmem [resolvable:$true] %s32
      %35 = dma.hbm_to_vmem [thread:$0]  %s1, 64, %s33, [#allocation3]
    $region9: #{spectral_conv_lstm.1} parent=1 // pred_fallthru
      _
    // Predicated region
    $region10: #{spectral_conv_lstm.1} parent=1 // pred_check
      _
    $region11: #{spectral_conv_lstm.1} parent=1 // pred_check_branch
      %37 = sbr.rel (0) target = $region13
    $region12: #{spectral_conv_lstm.1} parent=1 // pred_region
      _
    $region13: #{spectral_conv_lstm.1} parent=1 // pred_fallthru
      _
    // Predicated region
    $region14: #{spectral_conv_lstm.1} parent=1 // pred_check
      _
    $region15: #{spectral_conv_lstm.1} parent=1 // pred_check_branch
      %39 = sbr.rel (0) target = $region17
    $region16: #{spectral_conv_lstm.1} parent=1 // pred_region
      _
    $region17: #{spectral_conv_lstm.1} parent=1 // pred_fallthru
      _
    // Predicated region
    $region18: #{spectral_conv_lstm.1} parent=1 // pred_check
      _
    $region19: #{spectral_conv_lstm.1} parent=1 // pred_check_branch
      %41 = sbr.rel (0) target = $region21
    $region20: #{spectral_conv_lstm.1} parent=1 // pred_region
      _
    $region21: #{spectral_conv_lstm.1} parent=1 // pred_fallthru
      _
    // Predicated region
    $region22: #{spectral_conv_lstm.1} parent=1 // pred_check
      _
    $region23: #{spectral_conv_lstm.1} parent=1 // pred_check_branch
      %43 = sbr.rel (0) target = $region25
    $region24: #{spectral_conv_lstm.1} parent=1 // pred_region
      %s45 = ssub.s32 16, 16
      %46 = vsyncadd [#allocation6], %s45
      %s48 = sshll.u32 [#allocation5], 4
      %s49 = int_to_ptr.vmem [resolvable:$true] %s48
      %51 = dma.hbm_to_vmem [thread:$0]  %s5, 16, %s49, [#allocation6]
    $region25: #{spectral_conv_lstm.1} parent=1 // pred_fallthru
      _
    // Predicated region
    $region26: #{spectral_conv_lstm.1} parent=1 // pred_check
      _
    $region27: #{spectral_conv_lstm.1} parent=1 // pred_check_branch
      %53 = sbr.rel (0) target = $region29
    $region28: #{spectral_conv_lstm.1} parent=1 // pred_region
      _
    $region29: #{spectral_conv_lstm.1} parent=1 // pred_fallthru
      _
    // Predicated region
    $region30: #{spectral_conv_lstm.1} parent=1 // pred_check
      _
    $region31: #{spectral_conv_lstm.1} parent=1 // pred_check_branch
      %55 = sbr.rel (0) target = $region33
    $region32: #{spectral_conv_lstm.1} parent=1 // pred_region
      %s57 = ssub.s32 512, 512
      %58 = vsyncadd [#allocation6], %s57
      %s59 = sshll.u32 [#allocation7], 4
      %s60 = int_to_ptr.vmem [resolvable:$true] %s59
      %65 = dma.hbm_to_vmem [thread:$0]  %s7, 512, %s60, [#allocation6], 128, 128, 8
    $region33: #{spectral_conv_lstm.1} parent=1 // pred_fallthru
      _
    // Predicated region
    $region34: #{spectral_conv_lstm.1} parent=1 // pred_check
      _
    $region35: #{spectral_conv_lstm.1} parent=1 // pred_check_branch
      %67 = sbr.rel (0) target = $region37
    $region36: #{spectral_conv_lstm.1} parent=1 // pred_region
      %s69 = ssub.s32 16, 16
      %70 = vsyncadd [#allocation9], %s69
      %s72 = sshll.u32 [#allocation8], 4
      %s73 = int_to_ptr.vmem [resolvable:$true] %s72
      %75 = dma.hbm_to_vmem [thread:$0]  %s8, 16, %s73, [#allocation9]
    $region37: #{spectral_conv_lstm.1} parent=1 // pred_fallthru
      _
    // Predicated region
    $region38: #{spectral_conv_lstm.1} parent=1 // pred_check
      _
    $region39: #{spectral_conv_lstm.1} parent=1 // pred_check_branch
      %77 = sbr.rel (0) target = $region41
    $region40: #{spectral_conv_lstm.1} parent=1 // pred_region
      _
    $region41: #{spectral_conv_lstm.1} parent=1 // pred_fallthru
      _
    // Predicated region
    $region42: #{spectral_conv_lstm.1} parent=1 // pred_check
      _
    $region43: #{spectral_conv_lstm.1} parent=1 // pred_check_branch
      %79 = sbr.rel (0) target = $region45
    $region44: #{spectral_conv_lstm.1} parent=1 // pred_region
      %s81 = ssub.s32 16, 16
      %82 = vsyncadd [#allocation9], %s81
      %s84 = sshll.u32 [#allocation10], 4
      %s85 = int_to_ptr.vmem [resolvable:$true] %s84
      %87 = dma.hbm_to_vmem [thread:$0]  %s10, 16, %s85, [#allocation9]
    $region45: #{spectral_conv_lstm.1} parent=1 // pred_fallthru
      _
    // Predicated region
    $region46: #{spectral_conv_lstm.1} parent=1 // pred_check
      _
    $region47: #{spectral_conv_lstm.1} parent=1 // pred_check_branch
      %89 = sbr.rel (0) target = $region49
    $region48: #{spectral_conv_lstm.1} parent=1 // pred_region
      %90 = dma.done [#allocation3], 64
    $region49: #{spectral_conv_lstm.1} parent=1 // pred_fallthru
      _
    // Predicated region
    $region50: #{spectral_conv_lstm.1} parent=1 // pred_check
      _
    $region51: #{spectral_conv_lstm.1} parent=1 // pred_check_branch
      %92 = sbr.rel (0) target = $region53
    $region52: #{spectral_conv_lstm.1} parent=1 // pred_region
      %93 = dma.done [#allocation6], 16
    $region53: #{spectral_conv_lstm.1} parent=1 // pred_fallthru
      _
    // Predicated region
    $region54: #{spectral_conv_lstm.1} parent=1 // pred_check
      _
    $region55: #{spectral_conv_lstm.1} parent=1 // pred_check_branch
      %95 = sbr.rel (0) target = $region57
    $region56: #{spectral_conv_lstm.1} parent=1 // pred_region
      %96 = dma.done [#allocation6], 512
    $region57: #{spectral_conv_lstm.1} parent=1 // pred_fallthru
      _
    // Predicated region
    $region58: #{spectral_conv_lstm.1} parent=1 // pred_check
      _
    $region59: #{spectral_conv_lstm.1} parent=1 // pred_check_branch
      %98 = sbr.rel (0) target = $region61
    $region60: #{spectral_conv_lstm.1} parent=1 // pred_region
      %99 = dma.done [#allocation9], 16
    $region61: #{spectral_conv_lstm.1} parent=1 // pred_fallthru
      _
    // Predicated region
    $region62: #{spectral_conv_lstm.1} parent=1 // pred_check
      _
    $region63: #{spectral_conv_lstm.1} parent=1 // pred_check_branch
      %101 = sbr.rel (0) target = $region65
    $region64: #{spectral_conv_lstm.1} parent=1 // pred_region
      %102 = dma.done [#allocation9], 16
    $region65: #{spectral_conv_lstm.1} parent=1 // pred_fallthru
      _
    %v103 = vld [vmem:[%s0] sm:$0xff]
    %v104 = vld [vmem:[%s0 + $0x8] sm:$0xff]
    %v105 = vld [vmem:[#allocation2] sm:$0xf]
    %v106 = vld [vmem:[%s2] sm:$0x1]
    %v108 = vlaneseq
    %v109 = vshrl.u32 %v108, 7
    %v110 = vsub.s32 0, %v109
    %v111 = vrot.slane %v106, %v110
    %vm113 = vcmask 31744
    %v115 = vsel %vm113, %v103, 0
    %v118 = vsel %vm113, %v104, 0
    %vm120 = vcmask 1043456
    %v122 = vsel %vm120, %v105, 0
    %124 = vmatprep.subr.mxu0 0.0
    %125 = vmatpush1.msra.mxu0 %v122
    %126 = vmatprep.subr.mxu0 0.0
    %127 = vmatpush1.msra.mxu0 0.0
    %128 = vmatprep.subr.mxu0 0.0
    %129 = vmatpush1.msra.mxu0 0.0
    %130 = vmatprep.subr.mxu0 0.0
    %131 = vmatpush1.msra.mxu0 0.0
    %132 = vmatprep.subr.mxu0 0.0
    %133 = vmatpush1.msra.mxu0 0.0
    %134 = vmatprep.subr.mxu0 0.0
    %135 = vmatpush1.msra.mxu0 0.0
    %136 = vmatprep.subr.mxu0 0.0
    %137 = vmatpush1.msra.mxu0 0.0
    %138 = vmatprep.subr.mxu0 0.0
    %139 = vmatpush1.msra.mxu0 0.0
    %140 = vmatprep.subr.mxu0 0.0
    %141 = vmatpush1.msra.mxu0 0.0
    %142 = vmatprep.subr.mxu0 0.0
    %143 = vmatpush1.msra.mxu0 0.0
    %144 = vmatprep.subr.mxu0 0.0
    %145 = vmatpush1.msra.mxu0 0.0
    %146 = vmatprep.subr.mxu0 0.0
    %147 = vmatpush1.msra.mxu0 0.0
    %148 = vmatprep.subr.mxu0 0.0
    %149 = vmatpush1.msra.mxu0 0.0
    %150 = vmatprep.subr.mxu0 0.0
    %151 = vmatpush1.msra.mxu0 0.0
    %152 = vmatprep.subr.mxu0 0.0
    %153 = vmatpush1.msra.mxu0 0.0
    %154 = vmatprep.subr.mxu0 0.0
    %155 = vmatpush1.msra.mxu0 0.0
    %156 = vmatprep.subr.mxu0 0.0
    %157 = vmatpush1.msra.mxu0 0.0
    %158 = vmatprep.subr.mxu0 0.0
    %159 = vmatpush1.msra.mxu0 0.0
    %160 = vmatprep.subr.mxu0 0.0
    %161 = vmatpush1.msra.mxu0 0.0
    %162 = vmatprep.subr.mxu0 0.0
    %163 = vmatpush1.msra.mxu0 0.0
    %164 = vmatprep.subr.mxu0 0.0
    %165 = vmatpush1.msra.mxu0 0.0
    %166 = vmatprep.subr.mxu0 0.0
    %167 = vmatpush1.msra.mxu0 0.0
    %168 = vmatprep.subr.mxu0 0.0
    %169 = vmatpush1.msra.mxu0 0.0
    %170 = vmatprep.subr.mxu0 0.0
    %171 = vmatpush1.msra.mxu0 0.0
    %172 = vmatprep.subr.mxu0 0.0
    %173 = vmatpush1.msra.mxu0 0.0
    %174 = vmatprep.subr.mxu0 0.0
    %175 = vmatpush1.msra.mxu0 0.0
    %176 = vmatprep.subr.mxu0 0.0
    %177 = vmatpush1.msra.mxu0 0.0
    %178 = vmatprep.subr.mxu0 0.0
    %179 = vmatpush1.msra.mxu0 0.0
    %180 = vmatprep.subr.mxu0 0.0
    %181 = vmatpush1.msra.mxu0 0.0
    %182 = vmatprep.subr.mxu0 0.0
    %183 = vmatpush1.msra.mxu0 0.0
    %184 = vmatprep.subr.mxu0 0.0
    %185 = vmatpush1.msra.mxu0 0.0
    %186 = vmatprep.subr.mxu0 0.0
    %187 = vmatpush1.msra.mxu0 0.0
    %188 = vmatprep.mubr.f32.mxu0 0.0
    %189 = vmatmul.mubr.f32.gmra.mrb[0].mxu0 %v115
    %v190 = vpop.f32.mrb[0].mxu0
    %v191 = vadd.f32 %v111, %v190
    %v192 = vpop.f32.mrb[0].mxu0
    %193 = vmatprep.mubr.f32.mxu0 0.0
    %194 = vmatmul.mubr.f32.gmra.mrb[0].mxu0 %v118
    %v195 = vpop.f32.mrb[0].mxu0
    %v196 = vadd.f32 %v111, %v195
    %v197 = vpop.f32.mrb[0].mxu0
    %198 = vdwg.mxu0
    %v199 = vmul.f32 %v191, 0.5
    %v200 = vmul.f32 %v196, 0.5
    %v201 = vrcp.pop 1.4142135
    %v202 = vmul.f32 %v191, %v201
    %v203 = vmul.f32 %v196, %v201
    %v204 = verf.f32.pop %v202
    %v205 = verf.f32.pop %v203
    %v206 = vadd.f32 %v204, 1.0
    %v207 = vadd.f32 %v205, 1.0
    %v208 = vmul.f32 %v199, %v206
    %v209 = vmul.f32 %v200, %v207
    %v210 = vld [vmem:[%s3] sm:$0xff]
    %v211 = vld [vmem:[%s3 + $0x8] sm:$0xff]
    %v212 = vld [vmem:[%s3 + $0x10] sm:$0xff]
    %v213 = vld [vmem:[%s3 + $0x18] sm:$0xff]
    %v214 = vld [vmem:[#allocation5] sm:$0x1]
    %v216 = vlaneseq
    %v217 = vshrl.u32 %v216, 7
    %v218 = vsub.s32 0, %v217
    %v219 = vrot.slane %v214, %v218
    %vm221 = vcmask 261120
    %v223 = vsel %vm221, %v208, 0
    %v226 = vsel %vm221, %v209, 0
    %228 = vmatprep.subr.mxu0 0.0
    %229 = vmatpush1.msra.mxu0 %v210
    %230 = vmatprep.subr.mxu0 0.0
    %231 = vmatpush1.msra.mxu0 %v211
    %232 = vmatprep.subr.mxu0 0.0
    %233 = vmatpush1.msra.mxu0 %v212
    %234 = vmatprep.subr.mxu0 0.0
    %235 = vmatpush1.msra.mxu0 %v213
    %236 = vmatprep.subr.mxu0 0.0
    %237 = vmatpush1.msra.mxu0 0.0
    %238 = vmatprep.subr.mxu0 0.0
    %239 = vmatpush1.msra.mxu0 0.0
    %240 = vmatprep.subr.mxu0 0.0
    %241 = vmatpush1.msra.mxu0 0.0
    %242 = vmatprep.subr.mxu0 0.0
    %243 = vmatpush1.msra.mxu0 0.0
    %244 = vmatprep.subr.mxu0 0.0
    %245 = vmatpush1.msra.mxu0 0.0
    %246 = vmatprep.subr.mxu0 0.0
    %247 = vmatpush1.msra.mxu0 0.0
    %248 = vmatprep.subr.mxu0 0.0
    %249 = vmatpush1.msra.mxu0 0.0
    %250 = vmatprep.subr.mxu0 0.0
    %251 = vmatpush1.msra.mxu0 0.0
    %252 = vmatprep.subr.mxu0 0.0
    %253 = vmatpush1.msra.mxu0 0.0
    %254 = vmatprep.subr.mxu0 0.0
    %255 = vmatpush1.msra.mxu0 0.0
    %256 = vmatprep.subr.mxu0 0.0
    %257 = vmatpush1.msra.mxu0 0.0
    %258 = vmatprep.subr.mxu0 0.0
    %259 = vmatpush1.msra.mxu0 0.0
    %260 = vmatprep.subr.mxu0 0.0
    %261 = vmatpush1.msra.mxu0 0.0
    %262 = vmatprep.subr.mxu0 0.0
    %263 = vmatpush1.msra.mxu0 0.0
    %264 = vmatprep.subr.mxu0 0.0
    %265 = vmatpush1.msra.mxu0 0.0
    %266 = vmatprep.subr.mxu0 0.0
    %267 = vmatpush1.msra.mxu0 0.0
    %268 = vmatprep.subr.mxu0 0.0
    %269 = vmatpush1.msra.mxu0 0.0
    %270 = vmatprep.subr.mxu0 0.0
    %271 = vmatpush1.msra.mxu0 0.0
    %272 = vmatprep.subr.mxu0 0.0
    %273 = vmatpush1.msra.mxu0 0.0
    %274 = vmatprep.subr.mxu0 0.0
    %275 = vmatpush1.msra.mxu0 0.0
    %276 = vmatprep.subr.mxu0 0.0
    %277 = vmatpush1.msra.mxu0 0.0
    %278 = vmatprep.subr.mxu0 0.0
    %279 = vmatpush1.msra.mxu0 0.0
    %280 = vmatprep.subr.mxu0 0.0
    %281 = vmatpush1.msra.mxu0 0.0
    %282 = vmatprep.subr.mxu0 0.0
    %283 = vmatpush1.msra.mxu0 0.0
    %284 = vmatprep.subr.mxu0 0.0
    %285 = vmatpush1.msra.mxu0 0.0
    %286 = vmatprep.subr.mxu0 0.0
    %287 = vmatpush1.msra.mxu0 0.0
    %288 = vmatprep.subr.mxu0 0.0
    %289 = vmatpush1.msra.mxu0 0.0
    %290 = vmatprep.subr.mxu0 0.0
    %291 = vmatpush1.msra.mxu0 0.0
    %292 = vmatprep.mubr.f32.mxu0 0.0
    %293 = vmatmul.mubr.f32.gmra.mrb[0].mxu0 %v223
    %v294 = vpop.f32.mrb[0].mxu0
    %v295 = vadd.f32 %v219, %v294
    %v296 = vpop.f32.mrb[0].mxu0
    %297 = vmatprep.mubr.f32.mxu0 0.0
    %298 = vmatmul.mubr.f32.gmra.mrb[0].mxu0 %v226
    %v299 = vpop.f32.mrb[0].mxu0
    %v300 = vadd.f32 %v219, %v299
    %v301 = vpop.f32.mrb[0].mxu0
    %302 = vdwg.mxu0
    %v303 = vld [vmem:[%s4] sm:$0xff]
    %v304 = vld [vmem:[%s4 + $0x8] sm:$0xff]
    %v305 = vld [vmem:[%s4 + $0x10] sm:$0xff]
    %v306 = vld [vmem:[%s4 + $0x18] sm:$0xff]
    %v307 = vld [vmem:[%s6] sm:$0xff]
    %v308 = vld [vmem:[%s6 + $0x8] sm:$0xff]
    %v309 = vld [vmem:[%s6 + $0x10] sm:$0xff]
    %v310 = vld [vmem:[%s6 + $0x18] sm:$0xff]
    %v311 = vld [vmem:[#allocation7] sm:$0xff]
    %v312 = vld [vmem:[#allocation7 + $0x8] sm:$0xff]
    %v313 = vld [vmem:[#allocation7 + $0x10] sm:$0xff]
    %v314 = vld [vmem:[#allocation7 + $0x18] sm:$0xff]
    %v315 = vld [vmem:[#allocation8] sm:$0x1]
    %v317 = vlaneseq
    %v318 = vshrl.u32 %v317, 7
    %v319 = vsub.s32 0, %v318
    %v320 = vrot.slane %v315, %v319
    %v323 = vsel %vm221, 0.0, 0
    %325 = vmatprep.subr.mxu0 0.0
    %326 = vmatpush1.msra.mxu0 %v303
    %327 = vmatprep.subr.mxu0 0.0
    %328 = vmatpush1.msra.mxu0 %v304
    %329 = vmatprep.subr.mxu0 0.0
    %330 = vmatpush1.msra.mxu0 %v305
    %331 = vmatprep.subr.mxu0 0.0
    %332 = vmatpush1.msra.mxu0 %v306
    %333 = vmatprep.subr.mxu0 0.0
    %334 = vmatpush1.msra.mxu0 0.0
    %335 = vmatprep.subr.mxu0 0.0
    %336 = vmatpush1.msra.mxu0 0.0
    %337 = vmatprep.subr.mxu0 0.0
    %338 = vmatpush1.msra.mxu0 0.0
    %339 = vmatprep.subr.mxu0 0.0
    %340 = vmatpush1.msra.mxu0 0.0
    %341 = vmatprep.subr.mxu0 0.0
    %342 = vmatpush1.msra.mxu0 0.0
    %343 = vmatprep.subr.mxu0 0.0
    %344 = vmatpush1.msra.mxu0 0.0
    %345 = vmatprep.subr.mxu0 0.0
    %346 = vmatpush1.msra.mxu0 0.0
    %347 = vmatprep.subr.mxu0 0.0
    %348 = vmatpush1.msra.mxu0 0.0
    %349 = vmatprep.subr.mxu0 0.0
    %350 = vmatpush1.msra.mxu0 0.0
    %351 = vmatprep.subr.mxu0 0.0
    %352 = vmatpush1.msra.mxu0 0.0
    %353 = vmatprep.subr.mxu0 0.0
    %354 = vmatpush1.msra.mxu0 0.0
    %355 = vmatprep.subr.mxu0 0.0
    %356 = vmatpush1.msra.mxu0 0.0
    %357 = vmatprep.subr.mxu0 0.0
    %358 = vmatpush1.msra.mxu0 0.0
    %359 = vmatprep.subr.mxu0 0.0
    %360 = vmatpush1.msra.mxu0 0.0
    %361 = vmatprep.subr.mxu0 0.0
    %362 = vmatpush1.msra.mxu0 0.0
    %363 = vmatprep.subr.mxu0 0.0
    %364 = vmatpush1.msra.mxu0 0.0
    %365 = vmatprep.subr.mxu0 0.0
    %366 = vmatpush1.msra.mxu0 0.0
    %367 = vmatprep.subr.mxu0 0.0
    %368 = vmatpush1.msra.mxu0 0.0
    %369 = vmatprep.subr.mxu0 0.0
    %370 = vmatpush1.msra.mxu0 0.0
    %371 = vmatprep.subr.mxu0 0.0
    %372 = vmatpush1.msra.mxu0 0.0
    %373 = vmatprep.subr.mxu0 0.0
    %374 = vmatpush1.msra.mxu0 0.0
    %375 = vmatprep.subr.mxu0 0.0
    %376 = vmatpush1.msra.mxu0 0.0
    %377 = vmatprep.subr.mxu0 0.0
    %378 = vmatpush1.msra.mxu0 0.0
    %379 = vmatprep.subr.mxu0 0.0
    %380 = vmatpush1.msra.mxu0 0.0
    %381 = vmatprep.subr.mxu0 0.0
    %382 = vmatpush1.msra.mxu0 0.0
    %383 = vmatprep.subr.mxu0 0.0
    %384 = vmatpush1.msra.mxu0 0.0
    %385 = vmatprep.subr.mxu0 0.0
    %386 = vmatpush1.msra.mxu0 0.0
    %387 = vmatprep.subr.mxu0 0.0
    %388 = vmatpush1.msra.mxu0 0.0
    %389 = vmatprep.mubr.f32.mxu0 0.0
    %390 = vmatmul.mubr.f32.gmra.mrb[0].mxu0 %v323
    %v391 = vpop.f32.mrb[0].mxu0
    %v392 = vadd.f32 0.0, %v391
    %v393 = vpop.f32.mrb[0].mxu0
    %394 = vdwg.mxu0
    %v395 = vadd.f32 %v295, %v392
    %v396 = vxor.u32 %v395, 2147483648
    %v397 = vmul.f32 %v396, 1.442695
    %v398 = vpow.pop %v397
    %v399 = vadd.f32 %v398, 1.0
    %v400 = vrcp.pop %v399
    %v401 = vmul.f32 1.0, %v400
    %v402 = vtanh.pop %v395
    %v403 = vmul.f32 %v401, 0.0
    %405 = vrot.lane.b32.xlu0 %v402, 32
    %v406 = vpop.permute.xlu0 %405
    %v408 = vmul.f32 %v401, %v406
    %410 = vrot.lane.b32.xlu0 %v408, 32
    %v411 = vpop.permute.xlu0 %410
    %v413 = vadd.f32 %v403, %v411
    %v414 = vtanh.pop %v413
    %416 = vrot.lane.b32.xlu0 %v414, 32
    %v417 = vpop.permute.xlu0 %416
    %v419 = vmul.f32 %v401, %v417
    %420 = vmatprep.subr.mxu0 0.0
    %421 = vmatpush1.msra.mxu0 %v311
    %422 = vmatprep.subr.mxu0 0.0
    %423 = vmatpush1.msra.mxu0 %v312
    %424 = vmatprep.subr.mxu0 0.0
    %425 = vmatpush1.msra.mxu0 %v313
    %426 = vmatprep.subr.mxu0 0.0
    %427 = vmatpush1.msra.mxu0 %v314
    %428 = vmatprep.subr.mxu0 0.0
    %429 = vmatpush1.msra.mxu0 0.0
    %430 = vmatprep.subr.mxu0 0.0
    %431 = vmatpush1.msra.mxu0 0.0
    %432 = vmatprep.subr.mxu0 0.0
    %433 = vmatpush1.msra.mxu0 0.0
    %434 = vmatprep.subr.mxu0 0.0
    %435 = vmatpush1.msra.mxu0 0.0
    %436 = vmatprep.subr.mxu0 0.0
    %437 = vmatpush1.msra.mxu0 0.0
    %438 = vmatprep.subr.mxu0 0.0
    %439 = vmatpush1.msra.mxu0 0.0
    %440 = vmatprep.subr.mxu0 0.0
    %441 = vmatpush1.msra.mxu0 0.0
    %442 = vmatprep.subr.mxu0 0.0
    %443 = vmatpush1.msra.mxu0 0.0
    %444 = vmatprep.subr.mxu0 0.0
    %445 = vmatpush1.msra.mxu0 0.0
    %446 = vmatprep.subr.mxu0 0.0
    %447 = vmatpush1.msra.mxu0 0.0
    %448 = vmatprep.subr.mxu0 0.0
    %449 = vmatpush1.msra.mxu0 0.0
    %450 = vmatprep.subr.mxu0 0.0
    %451 = vmatpush1.msra.mxu0 0.0
    %452 = vmatprep.subr.mxu0 0.0
    %453 = vmatpush1.msra.mxu0 0.0
    %454 = vmatprep.subr.mxu0 0.0
    %455 = vmatpush1.msra.mxu0 0.0
    %456 = vmatprep.subr.mxu0 0.0
    %457 = vmatpush1.msra.mxu0 0.0
    %458 = vmatprep.subr.mxu0 0.0
    %459 = vmatpush1.msra.mxu0 0.0
    %460 = vmatprep.subr.mxu0 0.0
    %461 = vmatpush1.msra.mxu0 0.0
    %462 = vmatprep.subr.mxu0 0.0
    %463 = vmatpush1.msra.mxu0 0.0
    %464 = vmatprep.subr.mxu0 0.0
    %465 = vmatpush1.msra.mxu0 0.0
    %466 = vmatprep.subr.mxu0 0.0
    %467 = vmatpush1.msra.mxu0 0.0
    %468 = vmatprep.subr.mxu0 0.0
    %469 = vmatpush1.msra.mxu0 0.0
    %470 = vmatprep.subr.mxu0 0.0
    %471 = vmatpush1.msra.mxu0 0.0
    %472 = vmatprep.subr.mxu0 0.0
    %473 = vmatpush1.msra.mxu0 0.0
    %474 = vmatprep.subr.mxu0 0.0
    %475 = vmatpush1.msra.mxu0 0.0
    %476 = vmatprep.subr.mxu0 0.0
    %477 = vmatpush1.msra.mxu0 0.0
    %478 = vmatprep.subr.mxu0 0.0
    %479 = vmatpush1.msra.mxu0 0.0
    %480 = vmatprep.subr.mxu0 0.0
    %481 = vmatpush1.msra.mxu0 0.0
    %482 = vmatprep.subr.mxu0 0.0
    %483 = vmatpush1.msra.mxu0 0.0
    %484 = vmatprep.mubr.f32.mxu0 0.0
    %485 = vmatmul.mubr.f32.gmra.mrb[0].mxu0 %v323
    %v486 = vpop.f32.mrb[0].mxu0
    %v487 = vadd.f32 0.0, %v486
    %v488 = vpop.f32.mrb[0].mxu0
    %489 = vdwg.mxu0
    %491 = vrot.lane.b32.xlu0 %v419, 64
    %v492 = vpop.permute.xlu0 %491
    %v493 = vsel %vm221, %v492, 0
    %495 = vmatprep.subr.mxu0 0.0
    %496 = vmatpush1.msra.mxu0 %v307
    %497 = vmatprep.subr.mxu0 0.0
    %498 = vmatpush1.msra.mxu0 %v308
    %499 = vmatprep.subr.mxu0 0.0
    %500 = vmatpush1.msra.mxu0 %v309
    %501 = vmatprep.subr.mxu0 0.0
    %502 = vmatpush1.msra.mxu0 %v310
    %503 = vmatprep.subr.mxu0 0.0
    %504 = vmatpush1.msra.mxu0 0.0
    %505 = vmatprep.subr.mxu0 0.0
    %506 = vmatpush1.msra.mxu0 0.0
    %507 = vmatprep.subr.mxu0 0.0
    %508 = vmatpush1.msra.mxu0 0.0
    %509 = vmatprep.subr.mxu0 0.0
    %510 = vmatpush1.msra.mxu0 0.0
    %511 = vmatprep.subr.mxu0 0.0
    %512 = vmatpush1.msra.mxu0 0.0
    %513 = vmatprep.subr.mxu0 0.0
    %514 = vmatpush1.msra.mxu0 0.0
    %515 = vmatprep.subr.mxu0 0.0
    %516 = vmatpush1.msra.mxu0 0.0
    %517 = vmatprep.subr.mxu0 0.0
    %518 = vmatpush1.msra.mxu0 0.0
    %519 = vmatprep.subr.mxu0 0.0
    %520 = vmatpush1.msra.mxu0 0.0
    %521 = vmatprep.subr.mxu0 0.0
    %522 = vmatpush1.msra.mxu0 0.0
    %523 = vmatprep.subr.mxu0 0.0
    %524 = vmatpush1.msra.mxu0 0.0
    %525 = vmatprep.subr.mxu0 0.0
    %526 = vmatpush1.msra.mxu0 0.0
    %527 = vmatprep.subr.mxu0 0.0
    %528 = vmatpush1.msra.mxu0 0.0
    %529 = vmatprep.subr.mxu0 0.0
    %530 = vmatpush1.msra.mxu0 0.0
    %531 = vmatprep.subr.mxu0 0.0
    %532 = vmatpush1.msra.mxu0 0.0
    %533 = vmatprep.subr.mxu0 0.0
    %534 = vmatpush1.msra.mxu0 0.0
    %535 = vmatprep.subr.mxu0 0.0
    %536 = vmatpush1.msra.mxu0 0.0
    %537 = vmatprep.subr.mxu0 0.0
    %538 = vmatpush1.msra.mxu0 0.0
    %539 = vmatprep.subr.mxu0 0.0
    %540 = vmatpush1.msra.mxu0 0.0
    %541 = vmatprep.subr.mxu0 0.0
    %542 = vmatpush1.msra.mxu0 0.0
    %543 = vmatprep.subr.mxu0 0.0
    %544 = vmatpush1.msra.mxu0 0.0
    %545 = vmatprep.subr.mxu0 0.0
    %546 = vmatpush1.msra.mxu0 0.0
    %547 = vmatprep.subr.mxu0 0.0
    %548 = vmatpush1.msra.mxu0 0.0
    %549 = vmatprep.subr.mxu0 0.0
    %550 = vmatpush1.msra.mxu0 0.0
    %551 = vmatprep.subr.mxu0 0.0
    %552 = vmatpush1.msra.mxu0 0.0
    %553 = vmatprep.subr.mxu0 0.0
    %554 = vmatpush1.msra.mxu0 0.0
    %555 = vmatprep.subr.mxu0 0.0
    %556 = vmatpush1.msra.mxu0 0.0
    %557 = vmatprep.subr.mxu0 0.0
    %558 = vmatpush1.msra.mxu0 0.0
    %559 = vmatprep.mubr.f32.mxu0 0.0
    %560 = vmatmul.mubr.f32.gmra.mrb[0].mxu0 %v493
    %v561 = vpop.f32.mrb[0].mxu0
    %v562 = vadd.f32 %v487, %v561
    %v563 = vpop.f32.mrb[0].mxu0
    %564 = vdwg.mxu0
    %v565 = vadd.f32 %v562, %v320
    %v566 = vxor.u32 %v565, 2147483648
    %v567 = vmul.f32 %v566, 1.442695
    %v568 = vpow.pop %v567
    %v569 = vadd.f32 %v568, 1.0
    %v570 = vrcp.pop %v569
    %v571 = vmul.f32 1.0, %v570
    %v572 = vtanh.pop %v565
    %v573 = vmul.f32 %v571, 0.0
    %575 = vrot.lane.b32.xlu0 %v572, 32
    %v576 = vpop.permute.xlu0 %575
    %v578 = vmul.f32 %v571, %v576
    %580 = vrot.lane.b32.xlu0 %v578, 32
    %v581 = vpop.permute.xlu0 %580
    %v583 = vadd.f32 %v573, %v581
    %v584 = vtanh.pop %v583
    %586 = vrot.lane.b32.xlu0 %v584, 32
    %v587 = vpop.permute.xlu0 %586
    %v589 = vmul.f32 %v571, %v587
    %590 = vmatprep.subr.mxu0 0.0
    %591 = vmatpush1.msra.mxu0 %v303
    %592 = vmatprep.subr.mxu0 0.0
    %593 = vmatpush1.msra.mxu0 %v304
    %594 = vmatprep.subr.mxu0 0.0
    %595 = vmatpush1.msra.mxu0 %v305
    %596 = vmatprep.subr.mxu0 0.0
    %597 = vmatpush1.msra.mxu0 %v306
    %598 = vmatprep.subr.mxu0 0.0
    %599 = vmatpush1.msra.mxu0 0.0
    %600 = vmatprep.subr.mxu0 0.0
    %601 = vmatpush1.msra.mxu0 0.0
    %602 = vmatprep.subr.mxu0 0.0
    %603 = vmatpush1.msra.mxu0 0.0
    %604 = vmatprep.subr.mxu0 0.0
    %605 = vmatpush1.msra.mxu0 0.0
    %606 = vmatprep.subr.mxu0 0.0
    %607 = vmatpush1.msra.mxu0 0.0
    %608 = vmatprep.subr.mxu0 0.0
    %609 = vmatpush1.msra.mxu0 0.0
    %610 = vmatprep.subr.mxu0 0.0
    %611 = vmatpush1.msra.mxu0 0.0
    %612 = vmatprep.subr.mxu0 0.0
    %613 = vmatpush1.msra.mxu0 0.0
    %614 = vmatprep.subr.mxu0 0.0
    %615 = vmatpush1.msra.mxu0 0.0
    %616 = vmatprep.subr.mxu0 0.0
    %617 = vmatpush1.msra.mxu0 0.0
    %618 = vmatprep.subr.mxu0 0.0
    %619 = vmatpush1.msra.mxu0 0.0
    %620 = vmatprep.subr.mxu0 0.0
    %621 = vmatpush1.msra.mxu0 0.0
    %622 = vmatprep.subr.mxu0 0.0
    %623 = vmatpush1.msra.mxu0 0.0
    %624 = vmatprep.subr.mxu0 0.0
    %625 = vmatpush1.msra.mxu0 0.0
    %626 = vmatprep.subr.mxu0 0.0
    %627 = vmatpush1.msra.mxu0 0.0
    %628 = vmatprep.subr.mxu0 0.0
    %629 = vmatpush1.msra.mxu0 0.0
    %630 = vmatprep.subr.mxu0 0.0
    %631 = vmatpush1.msra.mxu0 0.0
    %632 = vmatprep.subr.mxu0 0.0
    %633 = vmatpush1.msra.mxu0 0.0
    %634 = vmatprep.subr.mxu0 0.0
    %635 = vmatpush1.msra.mxu0 0.0
    %636 = vmatprep.subr.mxu0 0.0
    %637 = vmatpush1.msra.mxu0 0.0
    %638 = vmatprep.subr.mxu0 0.0
    %639 = vmatpush1.msra.mxu0 0.0
    %640 = vmatprep.subr.mxu0 0.0
    %641 = vmatpush1.msra.mxu0 0.0
    %642 = vmatprep.subr.mxu0 0.0
    %643 = vmatpush1.msra.mxu0 0.0
    %644 = vmatprep.subr.mxu0 0.0
    %645 = vmatpush1.msra.mxu0 0.0
    %646 = vmatprep.subr.mxu0 0.0
    %647 = vmatpush1.msra.mxu0 0.0
    %648 = vmatprep.subr.mxu0 0.0
    %649 = vmatpush1.msra.mxu0 0.0
    %650 = vmatprep.subr.mxu0 0.0
    %651 = vmatpush1.msra.mxu0 0.0
    %652 = vmatprep.subr.mxu0 0.0
    %653 = vmatpush1.msra.mxu0 0.0
    %654 = vmatprep.mubr.f32.mxu0 0.0
    %655 = vmatmul.mubr.f32.gmra.mrb[0].mxu0 %v493
    %v656 = vpop.f32.mrb[0].mxu0
    %v657 = vadd.f32 0.0, %v656
    %v658 = vpop.f32.mrb[0].mxu0
    %659 = vdwg.mxu0
    %v661 = vrot.slane %v657, 6
    %v663 = vadd.f32 %v295, %v661
    %v664 = vxor.u32 %v663, 2147483648
    %v665 = vmul.f32 %v664, 1.442695
    %v666 = vpow.pop %v665
    %v667 = vadd.f32 %v666, 1.0
    %v668 = vrcp.pop %v667
    %v669 = vmul.f32 1.0, %v668
    %v670 = vtanh.pop %v663
    %v672 = vrot.slane %v413, 6
    %v674 = vmul.f32 %v669, %v672
    %676 = vrot.lane.b32.xlu0 %v670, 32
    %v677 = vpop.permute.xlu0 %676
    %v679 = vmul.f32 %v669, %v677
    %681 = vrot.lane.b32.xlu0 %v679, 32
    %v682 = vpop.permute.xlu0 %681
    %v684 = vadd.f32 %v674, %v682
    %v685 = vtanh.pop %v684
    %687 = vrot.lane.b32.xlu0 %v685, 32
    %v688 = vpop.permute.xlu0 %687
    %v690 = vmul.f32 %v669, %v688
    %692 = vrot.lane.b32.xlu0 %v589, 64
    %v693 = vpop.permute.xlu0 %692
    %v694 = vsel %vm221, %v693, 0
    %696 = vmatprep.subr.mxu0 0.0
    %697 = vmatpush1.msra.mxu0 %v311
    %698 = vmatprep.subr.mxu0 0.0
    %699 = vmatpush1.msra.mxu0 %v312
    %700 = vmatprep.subr.mxu0 0.0
    %701 = vmatpush1.msra.mxu0 %v313
    %702 = vmatprep.subr.mxu0 0.0
    %703 = vmatpush1.msra.mxu0 %v314
    %704 = vmatprep.subr.mxu0 0.0
    %705 = vmatpush1.msra.mxu0 0.0
    %706 = vmatprep.subr.mxu0 0.0
    %707 = vmatpush1.msra.mxu0 0.0
    %708 = vmatprep.subr.mxu0 0.0
    %709 = vmatpush1.msra.mxu0 0.0
    %710 = vmatprep.subr.mxu0 0.0
    %711 = vmatpush1.msra.mxu0 0.0
    %712 = vmatprep.subr.mxu0 0.0
    %713 = vmatpush1.msra.mxu0 0.0
    %714 = vmatprep.subr.mxu0 0.0
    %715 = vmatpush1.msra.mxu0 0.0
    %716 = vmatprep.subr.mxu0 0.0
    %717 = vmatpush1.msra.mxu0 0.0
    %718 = vmatprep.subr.mxu0 0.0
    %719 = vmatpush1.msra.mxu0 0.0
    %720 = vmatprep.subr.mxu0 0.0
    %721 = vmatpush1.msra.mxu0 0.0
    %722 = vmatprep.subr.mxu0 0.0
    %723 = vmatpush1.msra.mxu0 0.0
    %724 = vmatprep.subr.mxu0 0.0
    %725 = vmatpush1.msra.mxu0 0.0
    %726 = vmatprep.subr.mxu0 0.0
    %727 = vmatpush1.msra.mxu0 0.0
    %728 = vmatprep.subr.mxu0 0.0
    %729 = vmatpush1.msra.mxu0 0.0
    %730 = vmatprep.subr.mxu0 0.0
    %731 = vmatpush1.msra.mxu0 0.0
    %732 = vmatprep.subr.mxu0 0.0
    %733 = vmatpush1.msra.mxu0 0.0
    %734 = vmatprep.subr.mxu0 0.0
    %735 = vmatpush1.msra.mxu0 0.0
    %736 = vmatprep.subr.mxu0 0.0
    %737 = vmatpush1.msra.mxu0 0.0
    %738 = vmatprep.subr.mxu0 0.0
    %739 = vmatpush1.msra.mxu0 0.0
    %740 = vmatprep.subr.mxu0 0.0
    %741 = vmatpush1.msra.mxu0 0.0
    %742 = vmatprep.subr.mxu0 0.0
    %743 = vmatpush1.msra.mxu0 0.0
    %744 = vmatprep.subr.mxu0 0.0
    %745 = vmatpush1.msra.mxu0 0.0
    %746 = vmatprep.subr.mxu0 0.0
    %747 = vmatpush1.msra.mxu0 0.0
    %748 = vmatprep.subr.mxu0 0.0
    %749 = vmatpush1.msra.mxu0 0.0
    %750 = vmatprep.subr.mxu0 0.0
    %751 = vmatpush1.msra.mxu0 0.0
    %752 = vmatprep.subr.mxu0 0.0
    %753 = vmatpush1.msra.mxu0 0.0
    %754 = vmatprep.subr.mxu0 0.0
    %755 = vmatpush1.msra.mxu0 0.0
    %756 = vmatprep.subr.mxu0 0.0
    %757 = vmatpush1.msra.mxu0 0.0
    %758 = vmatprep.subr.mxu0 0.0
    %759 = vmatpush1.msra.mxu0 0.0
    %760 = vmatprep.mubr.f32.mxu0 0.0
    %761 = vmatmul.mubr.f32.gmra.mrb[0].mxu0 %v694
    %v762 = vpop.f32.mrb[0].mxu0
    %v763 = vadd.f32 0.0, %v762
    %v764 = vpop.f32.mrb[0].mxu0
    %765 = vdwg.mxu0
    %v767 = vrot.slane %v690, 2
    %768 = vrot.lane.b32.xlu0 %v767, 64
    %v769 = vpop.permute.xlu0 %768
    %v770 = vsel %vm221, %v769, 0
    %772 = vmatprep.subr.mxu0 0.0
    %773 = vmatpush1.msra.mxu0 %v307
    %774 = vmatprep.subr.mxu0 0.0
    %775 = vmatpush1.msra.mxu0 %v308
    %776 = vmatprep.subr.mxu0 0.0
    %777 = vmatpush1.msra.mxu0 %v309
    %778 = vmatprep.subr.mxu0 0.0
    %779 = vmatpush1.msra.mxu0 %v310
    %780 = vmatprep.subr.mxu0 0.0
    %781 = vmatpush1.msra.mxu0 0.0
    %782 = vmatprep.subr.mxu0 0.0
    %783 = vmatpush1.msra.mxu0 0.0
    %784 = vmatprep.subr.mxu0 0.0
    %785 = vmatpush1.msra.mxu0 0.0
    %786 = vmatprep.subr.mxu0 0.0
    %787 = vmatpush1.msra.mxu0 0.0
    %788 = vmatprep.subr.mxu0 0.0
    %789 = vmatpush1.msra.mxu0 0.0
    %790 = vmatprep.subr.mxu0 0.0
    %791 = vmatpush1.msra.mxu0 0.0
    %792 = vmatprep.subr.mxu0 0.0
    %793 = vmatpush1.msra.mxu0 0.0
    %794 = vmatprep.subr.mxu0 0.0
    %795 = vmatpush1.msra.mxu0 0.0
    %796 = vmatprep.subr.mxu0 0.0
    %797 = vmatpush1.msra.mxu0 0.0
    %798 = vmatprep.subr.mxu0 0.0
    %799 = vmatpush1.msra.mxu0 0.0
    %800 = vmatprep.subr.mxu0 0.0
    %801 = vmatpush1.msra.mxu0 0.0
    %802 = vmatprep.subr.mxu0 0.0
    %803 = vmatpush1.msra.mxu0 0.0
    %804 = vmatprep.subr.mxu0 0.0
    %805 = vmatpush1.msra.mxu0 0.0
    %806 = vmatprep.subr.mxu0 0.0
    %807 = vmatpush1.msra.mxu0 0.0
    %808 = vmatprep.subr.mxu0 0.0
    %809 = vmatpush1.msra.mxu0 0.0
    %810 = vmatprep.subr.mxu0 0.0
    %811 = vmatpush1.msra.mxu0 0.0
    %812 = vmatprep.subr.mxu0 0.0
    %813 = vmatpush1.msra.mxu0 0.0
    %814 = vmatprep.subr.mxu0 0.0
    %815 = vmatpush1.msra.mxu0 0.0
    %816 = vmatprep.subr.mxu0 0.0
    %817 = vmatpush1.msra.mxu0 0.0
    %818 = vmatprep.subr.mxu0 0.0
    %819 = vmatpush1.msra.mxu0 0.0
    %820 = vmatprep.subr.mxu0 0.0
    %821 = vmatpush1.msra.mxu0 0.0
    %822 = vmatprep.subr.mxu0 0.0
    %823 = vmatpush1.msra.mxu0 0.0
    %824 = vmatprep.subr.mxu0 0.0
    %825 = vmatpush1.msra.mxu0 0.0
    %826 = vmatprep.subr.mxu0 0.0
    %827 = vmatpush1.msra.mxu0 0.0
    %828 = vmatprep.subr.mxu0 0.0
    %829 = vmatpush1.msra.mxu0 0.0
    %830 = vmatprep.subr.mxu0 0.0
    %831 = vmatpush1.msra.mxu0 0.0
    %832 = vmatprep.subr.mxu0 0.0
    %833 = vmatpush1.msra.mxu0 0.0
    %834 = vmatprep.subr.mxu0 0.0
    %835 = vmatpush1.msra.mxu0 0.0
    %836 = vmatprep.mubr.f32.mxu0 0.0
    %837 = vmatmul.mubr.f32.gmra.mrb[0].mxu0 %v770
    %v838 = vpop.f32.mrb[0].mxu0
    %v839 = vadd.f32 %v763, %v838
    %v840 = vpop.f32.mrb[0].mxu0
    %841 = vdwg.mxu0
    %v842 = vadd.f32 %v839, %v320
    %v843 = vxor.u32 %v842, 2147483648
    %v844 = vmul.f32 %v843, 1.442695
    %v845 = vpow.pop %v844
    %v846 = vadd.f32 %v845, 1.0
    %v847 = vrcp.pop %v846
    %v848 = vmul.f32 1.0, %v847
    %v849 = vtanh.pop %v842
    %v850 = vmul.f32 %v848, %v583
    %852 = vrot.lane.b32.xlu0 %v849, 32
    %v853 = vpop.permute.xlu0 %852
    %v855 = vmul.f32 %v848, %v853
    %857 = vrot.lane.b32.xlu0 %v855, 32
    %v858 = vpop.permute.xlu0 %857
    %v860 = vadd.f32 %v850, %v858
    %v861 = vtanh.pop %v860
    %863 = vrot.lane.b32.xlu0 %v861, 32
    %v864 = vpop.permute.xlu0 %863
    %v866 = vmul.f32 %v848, %v864
    %867 = vmatprep.subr.mxu0 0.0
    %868 = vmatpush1.msra.mxu0 %v303
    %869 = vmatprep.subr.mxu0 0.0
    %870 = vmatpush1.msra.mxu0 %v304
    %871 = vmatprep.subr.mxu0 0.0
    %872 = vmatpush1.msra.mxu0 %v305
    %873 = vmatprep.subr.mxu0 0.0
    %874 = vmatpush1.msra.mxu0 %v306
    %875 = vmatprep.subr.mxu0 0.0
    %876 = vmatpush1.msra.mxu0 0.0
    %877 = vmatprep.subr.mxu0 0.0
    %878 = vmatpush1.msra.mxu0 0.0
    %879 = vmatprep.subr.mxu0 0.0
    %880 = vmatpush1.msra.mxu0 0.0
    %881 = vmatprep.subr.mxu0 0.0
    %882 = vmatpush1.msra.mxu0 0.0
    %883 = vmatprep.subr.mxu0 0.0
    %884 = vmatpush1.msra.mxu0 0.0
    %885 = vmatprep.subr.mxu0 0.0
    %886 = vmatpush1.msra.mxu0 0.0
    %887 = vmatprep.subr.mxu0 0.0
    %888 = vmatpush1.msra.mxu0 0.0
    %889 = vmatprep.subr.mxu0 0.0
    %890 = vmatpush1.msra.mxu0 0.0
    %891 = vmatprep.subr.mxu0 0.0
    %892 = vmatpush1.msra.mxu0 0.0
    %893 = vmatprep.subr.mxu0 0.0
    %894 = vmatpush1.msra.mxu0 0.0
    %895 = vmatprep.subr.mxu0 0.0
    %896 = vmatpush1.msra.mxu0 0.0
    %897 = vmatprep.subr.mxu0 0.0
    %898 = vmatpush1.msra.mxu0 0.0
    %899 = vmatprep.subr.mxu0 0.0
    %900 = vmatpush1.msra.mxu0 0.0
    %901 = vmatprep.subr.mxu0 0.0
    %902 = vmatpush1.msra.mxu0 0.0
    %903 = vmatprep.subr.mxu0 0.0
    %904 = vmatpush1.msra.mxu0 0.0
    %905 = vmatprep.subr.mxu0 0.0
    %906 = vmatpush1.msra.mxu0 0.0
    %907 = vmatprep.subr.mxu0 0.0
    %908 = vmatpush1.msra.mxu0 0.0
    %909 = vmatprep.subr.mxu0 0.0
    %910 = vmatpush1.msra.mxu0 0.0
    %911 = vmatprep.subr.mxu0 0.0
    %912 = vmatpush1.msra.mxu0 0.0
    %913 = vmatprep.subr.mxu0 0.0
    %914 = vmatpush1.msra.mxu0 0.0
    %915 = vmatprep.subr.mxu0 0.0
    %916 = vmatpush1.msra.mxu0 0.0
    %917 = vmatprep.subr.mxu0 0.0
    %918 = vmatpush1.msra.mxu0 0.0
    %919 = vmatprep.subr.mxu0 0.0
    %920 = vmatpush1.msra.mxu0 0.0
    %921 = vmatprep.subr.mxu0 0.0
    %922 = vmatpush1.msra.mxu0 0.0
    %923 = vmatprep.subr.mxu0 0.0
    %924 = vmatpush1.msra.mxu0 0.0
    %925 = vmatprep.subr.mxu0 0.0
    %926 = vmatpush1.msra.mxu0 0.0
    %927 = vmatprep.subr.mxu0 0.0
    %928 = vmatpush1.msra.mxu0 0.0
    %929 = vmatprep.subr.mxu0 0.0
    %930 = vmatpush1.msra.mxu0 0.0
    %931 = vmatprep.mubr.f32.mxu0 0.0
    %932 = vmatmul.mubr.f32.gmra.mrb[0].mxu0 %v770
    %v933 = vpop.f32.mrb[0].mxu0
    %v934 = vadd.f32 0.0, %v933
    %v935 = vpop.f32.mrb[0].mxu0
    %936 = vdwg.mxu0
    %v938 = vrot.slane %v934, 4
    %v940 = vadd.f32 %v295, %v938
    %v941 = vxor.u32 %v940, 2147483648
    %v942 = vmul.f32 %v941, 1.442695
    %v943 = vpow.pop %v942
    %v944 = vadd.f32 %v943, 1.0
    %v945 = vrcp.pop %v944
    %v946 = vmul.f32 1.0, %v945
    %v947 = vtanh.pop %v940
    %v949 = vrot.slane %v684, 6
    %v951 = vmul.f32 %v946, %v949
    %953 = vrot.lane.b32.xlu0 %v947, 32
    %v954 = vpop.permute.xlu0 %953
    %v956 = vmul.f32 %v946, %v954
    %958 = vrot.lane.b32.xlu0 %v956, 32
    %v959 = vpop.permute.xlu0 %958
    %v961 = vadd.f32 %v951, %v959
    %v962 = vtanh.pop %v961
    %964 = vrot.lane.b32.xlu0 %v962, 32
    %v965 = vpop.permute.xlu0 %964
    %v967 = vmul.f32 %v946, %v965
    %969 = vrot.lane.b32.xlu0 %v866, 64
    %v970 = vpop.permute.xlu0 %969
    %v971 = vsel %vm221, %v970, 0
    %973 = vmatprep.subr.mxu0 0.0
    %974 = vmatpush1.msra.mxu0 %v311
    %975 = vmatprep.subr.mxu0 0.0
    %976 = vmatpush1.msra.mxu0 %v312
    %977 = vmatprep.subr.mxu0 0.0
    %978 = vmatpush1.msra.mxu0 %v313
    %979 = vmatprep.subr.mxu0 0.0
    %980 = vmatpush1.msra.mxu0 %v314
    %981 = vmatprep.subr.mxu0 0.0
    %982 = vmatpush1.msra.mxu0 0.0
    %983 = vmatprep.subr.mxu0 0.0
    %984 = vmatpush1.msra.mxu0 0.0
    %985 = vmatprep.subr.mxu0 0.0
    %986 = vmatpush1.msra.mxu0 0.0
    %987 = vmatprep.subr.mxu0 0.0
    %988 = vmatpush1.msra.mxu0 0.0
    %989 = vmatprep.subr.mxu0 0.0
    %990 = vmatpush1.msra.mxu0 0.0
    %991 = vmatprep.subr.mxu0 0.0
    %992 = vmatpush1.msra.mxu0 0.0
    %993 = vmatprep.subr.mxu0 0.0
    %994 = vmatpush1.msra.mxu0 0.0
    %995 = vmatprep.subr.mxu0 0.0
    %996 = vmatpush1.msra.mxu0 0.0
    %997 = vmatprep.subr.mxu0 0.0
    %998 = vmatpush1.msra.mxu0 0.0
    %999 = vmatprep.subr.mxu0 0.0
    %1000 = vmatpush1.msra.mxu0 0.0
    %1001 = vmatprep.subr.mxu0 0.0
    %1002 = vmatpush1.msra.mxu0 0.0
    %1003 = vmatprep.subr.mxu0 0.0
    %1004 = vmatpush1.msra.mxu0 0.0
    %1005 = vmatprep.subr.mxu0 0.0
    %1006 = vmatpush1.msra.mxu0 0.0
    %1007 = vmatprep.subr.mxu0 0.0
    %1008 = vmatpush1.msra.mxu0 0.0
    %1009 = vmatprep.subr.mxu0 0.0
    %1010 = vmatpush1.msra.mxu0 0.0
    %1011 = vmatprep.subr.mxu0 0.0
    %1012 = vmatpush1.msra.mxu0 0.0
    %1013 = vmatprep.subr.mxu0 0.0
    %1014 = vmatpush1.msra.mxu0 0.0
    %1015 = vmatprep.subr.mxu0 0.0
    %1016 = vmatpush1.msra.mxu0 0.0
    %1017 = vmatprep.subr.mxu0 0.0
    %1018 = vmatpush1.msra.mxu0 0.0
    %1019 = vmatprep.subr.mxu0 0.0
    %1020 = vmatpush1.msra.mxu0 0.0
    %1021 = vmatprep.subr.mxu0 0.0
    %1022 = vmatpush1.msra.mxu0 0.0
    %1023 = vmatprep.subr.mxu0 0.0
    %1024 = vmatpush1.msra.mxu0 0.0
    %1025 = vmatprep.subr.mxu0 0.0
    %1026 = vmatpush1.msra.mxu0 0.0
    %1027 = vmatprep.subr.mxu0 0.0
    %1028 = vmatpush1.msra.mxu0 0.0
    %1029 = vmatprep.subr.mxu0 0.0
    %1030 = vmatpush1.msra.mxu0 0.0
    %1031 = vmatprep.subr.mxu0 0.0
    %1032 = vmatpush1.msra.mxu0 0.0
    %1033 = vmatprep.subr.mxu0 0.0
    %1034 = vmatpush1.msra.mxu0 0.0
    %1035 = vmatprep.subr.mxu0 0.0
    %1036 = vmatpush1.msra.mxu0 0.0
    %1037 = vmatprep.mubr.f32.mxu0 0.0
    %1038 = vmatmul.mubr.f32.gmra.mrb[0].mxu0 %v971
    %v1039 = vpop.f32.mrb[0].mxu0
    %v1040 = vadd.f32 0.0, %v1039
    %v1041 = vpop.f32.mrb[0].mxu0
    %1042 = vdwg.mxu0
    %v1044 = vrot.slane %v967, 4
    %1045 = vrot.lane.b32.xlu0 %v1044, 64
    %v1046 = vpop.permute.xlu0 %1045
    %v1047 = vsel %vm221, %v1046, 0
    %1049 = vmatprep.subr.mxu0 0.0
    %1050 = vmatpush1.msra.mxu0 %v307
    %1051 = vmatprep.subr.mxu0 0.0
    %1052 = vmatpush1.msra.mxu0 %v308
    %1053 = vmatprep.subr.mxu0 0.0
    %1054 = vmatpush1.msra.mxu0 %v309
    %1055 = vmatprep.subr.mxu0 0.0
    %1056 = vmatpush1.msra.mxu0 %v310
    %1057 = vmatprep.subr.mxu0 0.0
    %1058 = vmatpush1.msra.mxu0 0.0
    %1059 = vmatprep.subr.mxu0 0.0
    %1060 = vmatpush1.msra.mxu0 0.0
    %1061 = vmatprep.subr.mxu0 0.0
    %1062 = vmatpush1.msra.mxu0 0.0
    %1063 = vmatprep.subr.mxu0 0.0
    %1064 = vmatpush1.msra.mxu0 0.0
    %1065 = vmatprep.subr.mxu0 0.0
    %1066 = vmatpush1.msra.mxu0 0.0
    %1067 = vmatprep.subr.mxu0 0.0
    %1068 = vmatpush1.msra.mxu0 0.0
    %1069 = vmatprep.subr.mxu0 0.0
    %1070 = vmatpush1.msra.mxu0 0.0
    %1071 = vmatprep.subr.mxu0 0.0
    %1072 = vmatpush1.msra.mxu0 0.0
    %1073 = vmatprep.subr.mxu0 0.0
    %1074 = vmatpush1.msra.mxu0 0.0
    %1075 = vmatprep.subr.mxu0 0.0
    %1076 = vmatpush1.msra.mxu0 0.0
    %1077 = vmatprep.subr.mxu0 0.0
    %1078 = vmatpush1.msra.mxu0 0.0
    %1079 = vmatprep.subr.mxu0 0.0
    %1080 = vmatpush1.msra.mxu0 0.0
    %1081 = vmatprep.subr.mxu0 0.0
    %1082 = vmatpush1.msra.mxu0 0.0
    %1083 = vmatprep.subr.mxu0 0.0
    %1084 = vmatpush1.msra.mxu0 0.0
    %1085 = vmatprep.subr.mxu0 0.0
    %1086 = vmatpush1.msra.mxu0 0.0
    %1087 = vmatprep.subr.mxu0 0.0
    %1088 = vmatpush1.msra.mxu0 0.0
    %1089 = vmatprep.subr.mxu0 0.0
    %1090 = vmatpush1.msra.mxu0 0.0
    %1091 = vmatprep.subr.mxu0 0.0
    %1092 = vmatpush1.msra.mxu0 0.0
    %1093 = vmatprep.subr.mxu0 0.0
    %1094 = vmatpush1.msra.mxu0 0.0
    %1095 = vmatprep.subr.mxu0 0.0
    %1096 = vmatpush1.msra.mxu0 0.0
    %1097 = vmatprep.subr.mxu0 0.0
    %1098 = vmatpush1.msra.mxu0 0.0
    %1099 = vmatprep.subr.mxu0 0.0
    %1100 = vmatpush1.msra.mxu0 0.0
    %1101 = vmatprep.subr.mxu0 0.0
    %1102 = vmatpush1.msra.mxu0 0.0
    %1103 = vmatprep.subr.mxu0 0.0
    %1104 = vmatpush1.msra.mxu0 0.0
    %1105 = vmatprep.subr.mxu0 0.0
    %1106 = vmatpush1.msra.mxu0 0.0
    %1107 = vmatprep.subr.mxu0 0.0
    %1108 = vmatpush1.msra.mxu0 0.0
    %1109 = vmatprep.subr.mxu0 0.0
    %1110 = vmatpush1.msra.mxu0 0.0
    %1111 = vmatprep.subr.mxu0 0.0
    %1112 = vmatpush1.msra.mxu0 0.0
    %1113 = vmatprep.mubr.f32.mxu0 0.0
    %1114 = vmatmul.mubr.f32.gmra.mrb[0].mxu0 %v1047
    %v1115 = vpop.f32.mrb[0].mxu0
    %v1116 = vadd.f32 %v1040, %v1115
    %v1117 = vpop.f32.mrb[0].mxu0
    %1118 = vdwg.mxu0
    %v1119 = vadd.f32 %v1116, %v320
    %v1120 = vxor.u32 %v1119, 2147483648
    %v1121 = vmul.f32 %v1120, 1.442695
    %v1122 = vpow.pop %v1121
    %v1123 = vadd.f32 %v1122, 1.0
    %v1124 = vrcp.pop %v1123
    %v1125 = vmul.f32 1.0, %v1124
    %v1126 = vtanh.pop %v1119
    %v1127 = vmul.f32 %v1125, %v860
    %1129 = vrot.lane.b32.xlu0 %v1126, 32
    %v1130 = vpop.permute.xlu0 %1129
    %v1132 = vmul.f32 %v1125, %v1130
    %1134 = vrot.lane.b32.xlu0 %v1132, 32
    %v1135 = vpop.permute.xlu0 %1134
    %v1137 = vadd.f32 %v1127, %v1135
    %v1138 = vtanh.pop %v1137
    %1140 = vrot.lane.b32.xlu0 %v1138, 32
    %v1141 = vpop.permute.xlu0 %1140
    %v1143 = vmul.f32 %v1125, %v1141
    %1144 = vmatprep.subr.mxu0 0.0
    %1145 = vmatpush1.msra.mxu0 %v303
    %1146 = vmatprep.subr.mxu0 0.0
    %1147 = vmatpush1.msra.mxu0 %v304
    %1148 = vmatprep.subr.mxu0 0.0
    %1149 = vmatpush1.msra.mxu0 %v305
    %1150 = vmatprep.subr.mxu0 0.0
    %1151 = vmatpush1.msra.mxu0 %v306
    %1152 = vmatprep.subr.mxu0 0.0
    %1153 = vmatpush1.msra.mxu0 0.0
    %1154 = vmatprep.subr.mxu0 0.0
    %1155 = vmatpush1.msra.mxu0 0.0
    %1156 = vmatprep.subr.mxu0 0.0
    %1157 = vmatpush1.msra.mxu0 0.0
    %1158 = vmatprep.subr.mxu0 0.0
    %1159 = vmatpush1.msra.mxu0 0.0
    %1160 = vmatprep.subr.mxu0 0.0
    %1161 = vmatpush1.msra.mxu0 0.0
    %1162 = vmatprep.subr.mxu0 0.0
    %1163 = vmatpush1.msra.mxu0 0.0
    %1164 = vmatprep.subr.mxu0 0.0
    %1165 = vmatpush1.msra.mxu0 0.0
    %1166 = vmatprep.subr.mxu0 0.0
    %1167 = vmatpush1.msra.mxu0 0.0
    %1168 = vmatprep.subr.mxu0 0.0
    %1169 = vmatpush1.msra.mxu0 0.0
    %1170 = vmatprep.subr.mxu0 0.0
    %1171 = vmatpush1.msra.mxu0 0.0
    %1172 = vmatprep.subr.mxu0 0.0
    %1173 = vmatpush1.msra.mxu0 0.0
    %1174 = vmatprep.subr.mxu0 0.0
    %1175 = vmatpush1.msra.mxu0 0.0
    %1176 = vmatprep.subr.mxu0 0.0
    %1177 = vmatpush1.msra.mxu0 0.0
    %1178 = vmatprep.subr.mxu0 0.0
    %1179 = vmatpush1.msra.mxu0 0.0
    %1180 = vmatprep.subr.mxu0 0.0
    %1181 = vmatpush1.msra.mxu0 0.0
    %1182 = vmatprep.subr.mxu0 0.0
    %1183 = vmatpush1.msra.mxu0 0.0
    %1184 = vmatprep.subr.mxu0 0.0
    %1185 = vmatpush1.msra.mxu0 0.0
    %1186 = vmatprep.subr.mxu0 0.0
    %1187 = vmatpush1.msra.mxu0 0.0
    %1188 = vmatprep.subr.mxu0 0.0
    %1189 = vmatpush1.msra.mxu0 0.0
    %1190 = vmatprep.subr.mxu0 0.0
    %1191 = vmatpush1.msra.mxu0 0.0
    %1192 = vmatprep.subr.mxu0 0.0
    %1193 = vmatpush1.msra.mxu0 0.0
    %1194 = vmatprep.subr.mxu0 0.0
    %1195 = vmatpush1.msra.mxu0 0.0
    %1196 = vmatprep.subr.mxu0 0.0
    %1197 = vmatpush1.msra.mxu0 0.0
    %1198 = vmatprep.subr.mxu0 0.0
    %1199 = vmatpush1.msra.mxu0 0.0
    %1200 = vmatprep.subr.mxu0 0.0
    %1201 = vmatpush1.msra.mxu0 0.0
    %1202 = vmatprep.subr.mxu0 0.0
    %1203 = vmatpush1.msra.mxu0 0.0
    %1204 = vmatprep.subr.mxu0 0.0
    %1205 = vmatpush1.msra.mxu0 0.0
    %1206 = vmatprep.subr.mxu0 0.0
    %1207 = vmatpush1.msra.mxu0 0.0
    %1208 = vmatprep.mubr.f32.mxu0 0.0
    %1209 = vmatmul.mubr.f32.gmra.mrb[0].mxu0 %v1047
    %v1210 = vpop.f32.mrb[0].mxu0
    %v1211 = vadd.f32 0.0, %v1210
    %v1212 = vpop.f32.mrb[0].mxu0
    %1213 = vdwg.mxu0
    %v1215 = vrot.slane %v1211, 2
    %v1217 = vadd.f32 %v295, %v1215
    %v1218 = vxor.u32 %v1217, 2147483648
    %v1219 = vmul.f32 %v1218, 1.442695
    %v1220 = vpow.pop %v1219
    %v1221 = vadd.f32 %v1220, 1.0
    %v1222 = vrcp.pop %v1221
    %v1223 = vmul.f32 1.0, %v1222
    %v1224 = vtanh.pop %v1217
    %v1226 = vrot.slane %v961, 6
    %v1228 = vmul.f32 %v1223, %v1226
    %1230 = vrot.lane.b32.xlu0 %v1224, 32
    %v1231 = vpop.permute.xlu0 %1230
    %v1233 = vmul.f32 %v1223, %v1231
    %1235 = vrot.lane.b32.xlu0 %v1233, 32
    %v1236 = vpop.permute.xlu0 %1235
    %v1238 = vadd.f32 %v1228, %v1236
    %v1239 = vtanh.pop %v1238
    %1241 = vrot.lane.b32.xlu0 %v1239, 32
    %v1242 = vpop.permute.xlu0 %1241
    %v1244 = vmul.f32 %v1223, %v1242
    %1246 = vrot.lane.b32.xlu0 %v1143, 64
    %v1247 = vpop.permute.xlu0 %1246
    %v1248 = vsel %vm221, %v1247, 0
    %1250 = vmatprep.subr.mxu0 0.0
    %1251 = vmatpush1.msra.mxu0 %v311
    %1252 = vmatprep.subr.mxu0 0.0
    %1253 = vmatpush1.msra.mxu0 %v312
    %1254 = vmatprep.subr.mxu0 0.0
    %1255 = vmatpush1.msra.mxu0 %v313
    %1256 = vmatprep.subr.mxu0 0.0
    %1257 = vmatpush1.msra.mxu0 %v314
    %1258 = vmatprep.subr.mxu0 0.0
    %1259 = vmatpush1.msra.mxu0 0.0
    %1260 = vmatprep.subr.mxu0 0.0
    %1261 = vmatpush1.msra.mxu0 0.0
    %1262 = vmatprep.subr.mxu0 0.0
    %1263 = vmatpush1.msra.mxu0 0.0
    %1264 = vmatprep.subr.mxu0 0.0
    %1265 = vmatpush1.msra.mxu0 0.0
    %1266 = vmatprep.subr.mxu0 0.0
    %1267 = vmatpush1.msra.mxu0 0.0
    %1268 = vmatprep.subr.mxu0 0.0
    %1269 = vmatpush1.msra.mxu0 0.0
    %1270 = vmatprep.subr.mxu0 0.0
    %1271 = vmatpush1.msra.mxu0 0.0
    %1272 = vmatprep.subr.mxu0 0.0
    %1273 = vmatpush1.msra.mxu0 0.0
    %1274 = vmatprep.subr.mxu0 0.0
    %1275 = vmatpush1.msra.mxu0 0.0
    %1276 = vmatprep.subr.mxu0 0.0
    %1277 = vmatpush1.msra.mxu0 0.0
    %1278 = vmatprep.subr.mxu0 0.0
    %1279 = vmatpush1.msra.mxu0 0.0
    %1280 = vmatprep.subr.mxu0 0.0
    %1281 = vmatpush1.msra.mxu0 0.0
    %1282 = vmatprep.subr.mxu0 0.0
    %1283 = vmatpush1.msra.mxu0 0.0
    %1284 = vmatprep.subr.mxu0 0.0
    %1285 = vmatpush1.msra.mxu0 0.0
    %1286 = vmatprep.subr.mxu0 0.0
    %1287 = vmatpush1.msra.mxu0 0.0
    %1288 = vmatprep.subr.mxu0 0.0
    %1289 = vmatpush1.msra.mxu0 0.0
    %1290 = vmatprep.subr.mxu0 0.0
    %1291 = vmatpush1.msra.mxu0 0.0
    %1292 = vmatprep.subr.mxu0 0.0
    %1293 = vmatpush1.msra.mxu0 0.0
    %1294 = vmatprep.subr.mxu0 0.0
    %1295 = vmatpush1.msra.mxu0 0.0
    %1296 = vmatprep.subr.mxu0 0.0
    %1297 = vmatpush1.msra.mxu0 0.0
    %1298 = vmatprep.subr.mxu0 0.0
    %1299 = vmatpush1.msra.mxu0 0.0
    %1300 = vmatprep.subr.mxu0 0.0
    %1301 = vmatpush1.msra.mxu0 0.0
    %1302 = vmatprep.subr.mxu0 0.0
    %1303 = vmatpush1.msra.mxu0 0.0
    %1304 = vmatprep.subr.mxu0 0.0
    %1305 = vmatpush1.msra.mxu0 0.0
    %1306 = vmatprep.subr.mxu0 0.0
    %1307 = vmatpush1.msra.mxu0 0.0
    %1308 = vmatprep.subr.mxu0 0.0
    %1309 = vmatpush1.msra.mxu0 0.0
    %1310 = vmatprep.subr.mxu0 0.0
    %1311 = vmatpush1.msra.mxu0 0.0
    %1312 = vmatprep.subr.mxu0 0.0
    %1313 = vmatpush1.msra.mxu0 0.0
    %1314 = vmatprep.mubr.f32.mxu0 0.0
    %1315 = vmatmul.mubr.f32.gmra.mrb[0].mxu0 %v1248
    %v1316 = vpop.f32.mrb[0].mxu0
    %v1317 = vadd.f32 0.0, %v1316
    %v1318 = vpop.f32.mrb[0].mxu0
    %1319 = vdwg.mxu0
    %v1321 = vrot.slane %v1244, 6
    %1322 = vrot.lane.b32.xlu0 %v1321, 64
    %v1323 = vpop.permute.xlu0 %1322
    %v1324 = vsel %vm221, %v1323, 0
    %1326 = vmatprep.subr.mxu0 0.0
    %1327 = vmatpush1.msra.mxu0 %v307
    %1328 = vmatprep.subr.mxu0 0.0
    %1329 = vmatpush1.msra.mxu0 %v308
    %1330 = vmatprep.subr.mxu0 0.0
    %1331 = vmatpush1.msra.mxu0 %v309
    %1332 = vmatprep.subr.mxu0 0.0
    %1333 = vmatpush1.msra.mxu0 %v310
    %1334 = vmatprep.subr.mxu0 0.0
    %1335 = vmatpush1.msra.mxu0 0.0
    %1336 = vmatprep.subr.mxu0 0.0
    %1337 = vmatpush1.msra.mxu0 0.0
    %1338 = vmatprep.subr.mxu0 0.0
    %1339 = vmatpush1.msra.mxu0 0.0
    %1340 = vmatprep.subr.mxu0 0.0
    %1341 = vmatpush1.msra.mxu0 0.0
    %1342 = vmatprep.subr.mxu0 0.0
    %1343 = vmatpush1.msra.mxu0 0.0
    %1344 = vmatprep.subr.mxu0 0.0
    %1345 = vmatpush1.msra.mxu0 0.0
    %1346 = vmatprep.subr.mxu0 0.0
    %1347 = vmatpush1.msra.mxu0 0.0
    %1348 = vmatprep.subr.mxu0 0.0
    %1349 = vmatpush1.msra.mxu0 0.0
    %1350 = vmatprep.subr.mxu0 0.0
    %1351 = vmatpush1.msra.mxu0 0.0
    %1352 = vmatprep.subr.mxu0 0.0
    %1353 = vmatpush1.msra.mxu0 0.0
    %1354 = vmatprep.subr.mxu0 0.0
    %1355 = vmatpush1.msra.mxu0 0.0
    %1356 = vmatprep.subr.mxu0 0.0
    %1357 = vmatpush1.msra.mxu0 0.0
    %1358 = vmatprep.subr.mxu0 0.0
    %1359 = vmatpush1.msra.mxu0 0.0
    %1360 = vmatprep.subr.mxu0 0.0
    %1361 = vmatpush1.msra.mxu0 0.0
    %1362 = vmatprep.subr.mxu0 0.0
    %1363 = vmatpush1.msra.mxu0 0.0
    %1364 = vmatprep.subr.mxu0 0.0
    %1365 = vmatpush1.msra.mxu0 0.0
    %1366 = vmatprep.subr.mxu0 0.0
    %1367 = vmatpush1.msra.mxu0 0.0
    %1368 = vmatprep.subr.mxu0 0.0
    %1369 = vmatpush1.msra.mxu0 0.0
    %1370 = vmatprep.subr.mxu0 0.0
    %1371 = vmatpush1.msra.mxu0 0.0
    %1372 = vmatprep.subr.mxu0 0.0
    %1373 = vmatpush1.msra.mxu0 0.0
    %1374 = vmatprep.subr.mxu0 0.0
    %1375 = vmatpush1.msra.mxu0 0.0
    %1376 = vmatprep.subr.mxu0 0.0
    %1377 = vmatpush1.msra.mxu0 0.0
    %1378 = vmatprep.subr.mxu0 0.0
    %1379 = vmatpush1.msra.mxu0 0.0
    %1380 = vmatprep.subr.mxu0 0.0
    %1381 = vmatpush1.msra.mxu0 0.0
    %1382 = vmatprep.subr.mxu0 0.0
    %1383 = vmatpush1.msra.mxu0 0.0
    %1384 = vmatprep.subr.mxu0 0.0
    %1385 = vmatpush1.msra.mxu0 0.0
    %1386 = vmatprep.subr.mxu0 0.0
    %1387 = vmatpush1.msra.mxu0 0.0
    %1388 = vmatprep.subr.mxu0 0.0
    %1389 = vmatpush1.msra.mxu0 0.0
    %1390 = vmatprep.mubr.f32.mxu0 0.0
    %1391 = vmatmul.mubr.f32.gmra.mrb[0].mxu0 %v1324
    %v1392 = vpop.f32.mrb[0].mxu0
    %v1393 = vadd.f32 %v1317, %v1392
    %v1394 = vpop.f32.mrb[0].mxu0
    %1395 = vdwg.mxu0
    %v1396 = vadd.f32 %v1393, %v320
    %v1397 = vxor.u32 %v1396, 2147483648
    %v1398 = vmul.f32 %v1397, 1.442695
    %v1399 = vpow.pop %v1398
    %v1400 = vadd.f32 %v1399, 1.0
    %v1401 = vrcp.pop %v1400
    %v1402 = vmul.f32 1.0, %v1401
    %v1403 = vtanh.pop %v1396
    %v1404 = vmul.f32 %v1402, %v1137
    %1406 = vrot.lane.b32.xlu0 %v1403, 32
    %v1407 = vpop.permute.xlu0 %1406
    %v1409 = vmul.f32 %v1402, %v1407
    %1411 = vrot.lane.b32.xlu0 %v1409, 32
    %v1412 = vpop.permute.xlu0 %1411
    %v1414 = vadd.f32 %v1404, %v1412
    %v1415 = vtanh.pop %v1414
    %1417 = vrot.lane.b32.xlu0 %v1415, 32
    %v1418 = vpop.permute.xlu0 %1417
    %v1420 = vmul.f32 %v1402, %v1418
    %1421 = vmatprep.subr.mxu0 0.0
    %1422 = vmatpush1.msra.mxu0 %v303
    %1423 = vmatprep.subr.mxu0 0.0
    %1424 = vmatpush1.msra.mxu0 %v304
    %1425 = vmatprep.subr.mxu0 0.0
    %1426 = vmatpush1.msra.mxu0 %v305
    %1427 = vmatprep.subr.mxu0 0.0
    %1428 = vmatpush1.msra.mxu0 %v306
    %1429 = vmatprep.subr.mxu0 0.0
    %1430 = vmatpush1.msra.mxu0 0.0
    %1431 = vmatprep.subr.mxu0 0.0
    %1432 = vmatpush1.msra.mxu0 0.0
    %1433 = vmatprep.subr.mxu0 0.0
    %1434 = vmatpush1.msra.mxu0 0.0
    %1435 = vmatprep.subr.mxu0 0.0
    %1436 = vmatpush1.msra.mxu0 0.0
    %1437 = vmatprep.subr.mxu0 0.0
    %1438 = vmatpush1.msra.mxu0 0.0
    %1439 = vmatprep.subr.mxu0 0.0
    %1440 = vmatpush1.msra.mxu0 0.0
    %1441 = vmatprep.subr.mxu0 0.0
    %1442 = vmatpush1.msra.mxu0 0.0
    %1443 = vmatprep.subr.mxu0 0.0
    %1444 = vmatpush1.msra.mxu0 0.0
    %1445 = vmatprep.subr.mxu0 0.0
    %1446 = vmatpush1.msra.mxu0 0.0
    %1447 = vmatprep.subr.mxu0 0.0
    %1448 = vmatpush1.msra.mxu0 0.0
    %1449 = vmatprep.subr.mxu0 0.0
    %1450 = vmatpush1.msra.mxu0 0.0
    %1451 = vmatprep.subr.mxu0 0.0
    %1452 = vmatpush1.msra.mxu0 0.0
    %1453 = vmatprep.subr.mxu0 0.0
    %1454 = vmatpush1.msra.mxu0 0.0
    %1455 = vmatprep.subr.mxu0 0.0
    %1456 = vmatpush1.msra.mxu0 0.0
    %1457 = vmatprep.subr.mxu0 0.0
    %1458 = vmatpush1.msra.mxu0 0.0
    %1459 = vmatprep.subr.mxu0 0.0
    %1460 = vmatpush1.msra.mxu0 0.0
    %1461 = vmatprep.subr.mxu0 0.0
    %1462 = vmatpush1.msra.mxu0 0.0
    %1463 = vmatprep.subr.mxu0 0.0
    %1464 = vmatpush1.msra.mxu0 0.0
    %1465 = vmatprep.subr.mxu0 0.0
    %1466 = vmatpush1.msra.mxu0 0.0
    %1467 = vmatprep.subr.mxu0 0.0
    %1468 = vmatpush1.msra.mxu0 0.0
    %1469 = vmatprep.subr.mxu0 0.0
    %1470 = vmatpush1.msra.mxu0 0.0
    %1471 = vmatprep.subr.mxu0 0.0
    %1472 = vmatpush1.msra.mxu0 0.0
    %1473 = vmatprep.subr.mxu0 0.0
    %1474 = vmatpush1.msra.mxu0 0.0
    %1475 = vmatprep.subr.mxu0 0.0
    %1476 = vmatpush1.msra.mxu0 0.0
    %1477 = vmatprep.subr.mxu0 0.0
    %1478 = vmatpush1.msra.mxu0 0.0
    %1479 = vmatprep.subr.mxu0 0.0
    %1480 = vmatpush1.msra.mxu0 0.0
    %1481 = vmatprep.subr.mxu0 0.0
    %1482 = vmatpush1.msra.mxu0 0.0
    %1483 = vmatprep.subr.mxu0 0.0
    %1484 = vmatpush1.msra.mxu0 0.0
    %1485 = vmatprep.mubr.f32.mxu0 0.0
    %1486 = vmatmul.mubr.f32.gmra.mrb[0].mxu0 %v1324
    %v1487 = vpop.f32.mrb[0].mxu0
    %v1488 = vadd.f32 0.0, %v1487
    %v1489 = vpop.f32.mrb[0].mxu0
    %1490 = vdwg.mxu0
    %v1491 = vadd.f32 %v300, %v1488
    %v1492 = vxor.u32 %v1491, 2147483648
    %v1493 = vmul.f32 %v1492, 1.442695
    %v1494 = vpow.pop %v1493
    %v1495 = vadd.f32 %v1494, 1.0
    %v1496 = vrcp.pop %v1495
    %v1497 = vmul.f32 1.0, %v1496
    %v1498 = vtanh.pop %v1491
    %v1500 = vrot.slane %v1238, 6
    %v1502 = vmul.f32 %v1497, %v1500
    %1504 = vrot.lane.b32.xlu0 %v1498, 32
    %v1505 = vpop.permute.xlu0 %1504
    %v1507 = vmul.f32 %v1497, %v1505
    %1509 = vrot.lane.b32.xlu0 %v1507, 32
    %v1510 = vpop.permute.xlu0 %1509
    %v1512 = vadd.f32 %v1502, %v1510
    %v1513 = vtanh.pop %v1512
    %1515 = vrot.lane.b32.xlu0 %v1513, 32
    %v1516 = vpop.permute.xlu0 %1515
    %v1518 = vmul.f32 %v1497, %v1516
    %1520 = vrot.lane.b32.xlu0 %v1420, 64
    %v1521 = vpop.permute.xlu0 %1520
    %v1522 = vsel %vm221, %v1521, 0
    %1524 = vmatprep.subr.mxu0 0.0
    %1525 = vmatpush1.msra.mxu0 %v311
    %1526 = vmatprep.subr.mxu0 0.0
    %1527 = vmatpush1.msra.mxu0 %v312
    %1528 = vmatprep.subr.mxu0 0.0
    %1529 = vmatpush1.msra.mxu0 %v313
    %1530 = vmatprep.subr.mxu0 0.0
    %1531 = vmatpush1.msra.mxu0 %v314
    %1532 = vmatprep.subr.mxu0 0.0
    %1533 = vmatpush1.msra.mxu0 0.0
    %1534 = vmatprep.subr.mxu0 0.0
    %1535 = vmatpush1.msra.mxu0 0.0
    %1536 = vmatprep.subr.mxu0 0.0
    %1537 = vmatpush1.msra.mxu0 0.0
    %1538 = vmatprep.subr.mxu0 0.0
    %1539 = vmatpush1.msra.mxu0 0.0
    %1540 = vmatprep.subr.mxu0 0.0
    %1541 = vmatpush1.msra.mxu0 0.0
    %1542 = vmatprep.subr.mxu0 0.0
    %1543 = vmatpush1.msra.mxu0 0.0
    %1544 = vmatprep.subr.mxu0 0.0
    %1545 = vmatpush1.msra.mxu0 0.0
    %1546 = vmatprep.subr.mxu0 0.0
    %1547 = vmatpush1.msra.mxu0 0.0
    %1548 = vmatprep.subr.mxu0 0.0
    %1549 = vmatpush1.msra.mxu0 0.0
    %1550 = vmatprep.subr.mxu0 0.0
    %1551 = vmatpush1.msra.mxu0 0.0
    %1552 = vmatprep.subr.mxu0 0.0
    %1553 = vmatpush1.msra.mxu0 0.0
    %1554 = vmatprep.subr.mxu0 0.0
    %1555 = vmatpush1.msra.mxu0 0.0
    %1556 = vmatprep.subr.mxu0 0.0
    %1557 = vmatpush1.msra.mxu0 0.0
    %1558 = vmatprep.subr.mxu0 0.0
    %1559 = vmatpush1.msra.mxu0 0.0
    %1560 = vmatprep.subr.mxu0 0.0
    %1561 = vmatpush1.msra.mxu0 0.0
    %1562 = vmatprep.subr.mxu0 0.0
    %1563 = vmatpush1.msra.mxu0 0.0
    %1564 = vmatprep.subr.mxu0 0.0
    %1565 = vmatpush1.msra.mxu0 0.0
    %1566 = vmatprep.subr.mxu0 0.0
    %1567 = vmatpush1.msra.mxu0 0.0
    %1568 = vmatprep.subr.mxu0 0.0
    %1569 = vmatpush1.msra.mxu0 0.0
    %1570 = vmatprep.subr.mxu0 0.0
    %1571 = vmatpush1.msra.mxu0 0.0
    %1572 = vmatprep.subr.mxu0 0.0
    %1573 = vmatpush1.msra.mxu0 0.0
    %1574 = vmatprep.subr.mxu0 0.0
    %1575 = vmatpush1.msra.mxu0 0.0
    %1576 = vmatprep.subr.mxu0 0.0
    %1577 = vmatpush1.msra.mxu0 0.0
    %1578 = vmatprep.subr.mxu0 0.0
    %1579 = vmatpush1.msra.mxu0 0.0
    %1580 = vmatprep.subr.mxu0 0.0
    %1581 = vmatpush1.msra.mxu0 0.0
    %1582 = vmatprep.subr.mxu0 0.0
    %1583 = vmatpush1.msra.mxu0 0.0
    %1584 = vmatprep.subr.mxu0 0.0
    %1585 = vmatpush1.msra.mxu0 0.0
    %1586 = vmatprep.subr.mxu0 0.0
    %1587 = vmatpush1.msra.mxu0 0.0
    %1588 = vmatprep.mubr.f32.mxu0 0.0
    %1589 = vmatmul.mubr.f32.gmra.mrb[0].mxu0 %v1522
    %v1590 = vpop.f32.mrb[0].mxu0
    %v1591 = vadd.f32 0.0, %v1590
    %v1592 = vpop.f32.mrb[0].mxu0
    %1593 = vdwg.mxu0
    %1595 = vrot.lane.b32.xlu0 %v1518, 64
    %v1596 = vpop.permute.xlu0 %1595
    %v1597 = vsel %vm221, %v1596, 0
    %1599 = vmatprep.subr.mxu0 0.0
    %1600 = vmatpush1.msra.mxu0 %v307
    %1601 = vmatprep.subr.mxu0 0.0
    %1602 = vmatpush1.msra.mxu0 %v308
    %1603 = vmatprep.subr.mxu0 0.0
    %1604 = vmatpush1.msra.mxu0 %v309
    %1605 = vmatprep.subr.mxu0 0.0
    %1606 = vmatpush1.msra.mxu0 %v310
    %1607 = vmatprep.subr.mxu0 0.0
    %1608 = vmatpush1.msra.mxu0 0.0
    %1609 = vmatprep.subr.mxu0 0.0
    %1610 = vmatpush1.msra.mxu0 0.0
    %1611 = vmatprep.subr.mxu0 0.0
    %1612 = vmatpush1.msra.mxu0 0.0
    %1613 = vmatprep.subr.mxu0 0.0
    %1614 = vmatpush1.msra.mxu0 0.0
    %1615 = vmatprep.subr.mxu0 0.0
    %1616 = vmatpush1.msra.mxu0 0.0
    %1617 = vmatprep.subr.mxu0 0.0
    %1618 = vmatpush1.msra.mxu0 0.0
    %1619 = vmatprep.subr.mxu0 0.0
    %1620 = vmatpush1.msra.mxu0 0.0
    %1621 = vmatprep.subr.mxu0 0.0
    %1622 = vmatpush1.msra.mxu0 0.0
    %1623 = vmatprep.subr.mxu0 0.0
    %1624 = vmatpush1.msra.mxu0 0.0
    %1625 = vmatprep.subr.mxu0 0.0
    %1626 = vmatpush1.msra.mxu0 0.0
    %1627 = vmatprep.subr.mxu0 0.0
    %1628 = vmatpush1.msra.mxu0 0.0
    %1629 = vmatprep.subr.mxu0 0.0
    %1630 = vmatpush1.msra.mxu0 0.0
    %1631 = vmatprep.subr.mxu0 0.0
    %1632 = vmatpush1.msra.mxu0 0.0
    %1633 = vmatprep.subr.mxu0 0.0
    %1634 = vmatpush1.msra.mxu0 0.0
    %1635 = vmatprep.subr.mxu0 0.0
    %1636 = vmatpush1.msra.mxu0 0.0
    %1637 = vmatprep.subr.mxu0 0.0
    %1638 = vmatpush1.msra.mxu0 0.0
    %1639 = vmatprep.subr.mxu0 0.0
    %1640 = vmatpush1.msra.mxu0 0.0
    %1641 = vmatprep.subr.mxu0 0.0
    %1642 = vmatpush1.msra.mxu0 0.0
    %1643 = vmatprep.subr.mxu0 0.0
    %1644 = vmatpush1.msra.mxu0 0.0
    %1645 = vmatprep.subr.mxu0 0.0
    %1646 = vmatpush1.msra.mxu0 0.0
    %1647 = vmatprep.subr.mxu0 0.0
    %1648 = vmatpush1.msra.mxu0 0.0
    %1649 = vmatprep.subr.mxu0 0.0
    %1650 = vmatpush1.msra.mxu0 0.0
    %1651 = vmatprep.subr.mxu0 0.0
    %1652 = vmatpush1.msra.mxu0 0.0
    %1653 = vmatprep.subr.mxu0 0.0
    %1654 = vmatpush1.msra.mxu0 0.0
    %1655 = vmatprep.subr.mxu0 0.0
    %1656 = vmatpush1.msra.mxu0 0.0
    %1657 = vmatprep.subr.mxu0 0.0
    %1658 = vmatpush1.msra.mxu0 0.0
    %1659 = vmatprep.subr.mxu0 0.0
    %1660 = vmatpush1.msra.mxu0 0.0
    %1661 = vmatprep.subr.mxu0 0.0
    %1662 = vmatpush1.msra.mxu0 0.0
    %1663 = vmatprep.mubr.f32.mxu0 0.0
    %1664 = vmatmul.mubr.f32.gmra.mrb[0].mxu0 %v1597
    %v1665 = vpop.f32.mrb[0].mxu0
    %v1666 = vadd.f32 %v1591, %v1665
    %v1667 = vpop.f32.mrb[0].mxu0
    %1668 = vdwg.mxu0
    %v1669 = vadd.f32 %v1666, %v320
    %v1670 = vxor.u32 %v1669, 2147483648
    %v1671 = vmul.f32 %v1670, 1.442695
    %v1672 = vpow.pop %v1671
    %v1673 = vadd.f32 %v1672, 1.0
    %v1674 = vrcp.pop %v1673
    %v1675 = vmul.f32 1.0, %v1674
    %v1676 = vtanh.pop %v1669
    %v1677 = vmul.f32 %v1675, %v1414
    %1679 = vrot.lane.b32.xlu0 %v1676, 32
    %v1680 = vpop.permute.xlu0 %1679
    %v1682 = vmul.f32 %v1675, %v1680
    %1684 = vrot.lane.b32.xlu0 %v1682, 32
    %v1685 = vpop.permute.xlu0 %1684
    %v1687 = vadd.f32 %v1677, %v1685
    %v1688 = vtanh.pop %v1687
    %1690 = vrot.lane.b32.xlu0 %v1688, 32
    %v1691 = vpop.permute.xlu0 %1690
    %v1693 = vmul.f32 %v1675, %v1691
    %1694 = vmatprep.subr.mxu0 0.0
    %1695 = vmatpush1.msra.mxu0 %v303
    %1696 = vmatprep.subr.mxu0 0.0
    %1697 = vmatpush1.msra.mxu0 %v304
    %1698 = vmatprep.subr.mxu0 0.0
    %1699 = vmatpush1.msra.mxu0 %v305
    %1700 = vmatprep.subr.mxu0 0.0
    %1701 = vmatpush1.msra.mxu0 %v306
    %1702 = vmatprep.subr.mxu0 0.0
    %1703 = vmatpush1.msra.mxu0 0.0
    %1704 = vmatprep.subr.mxu0 0.0
    %1705 = vmatpush1.msra.mxu0 0.0
    %1706 = vmatprep.subr.mxu0 0.0
    %1707 = vmatpush1.msra.mxu0 0.0
    %1708 = vmatprep.subr.mxu0 0.0
    %1709 = vmatpush1.msra.mxu0 0.0
    %1710 = vmatprep.subr.mxu0 0.0
    %1711 = vmatpush1.msra.mxu0 0.0
    %1712 = vmatprep.subr.mxu0 0.0
    %1713 = vmatpush1.msra.mxu0 0.0
    %1714 = vmatprep.subr.mxu0 0.0
    %1715 = vmatpush1.msra.mxu0 0.0
    %1716 = vmatprep.subr.mxu0 0.0
    %1717 = vmatpush1.msra.mxu0 0.0
    %1718 = vmatprep.subr.mxu0 0.0
    %1719 = vmatpush1.msra.mxu0 0.0
    %1720 = vmatprep.subr.mxu0 0.0
    %1721 = vmatpush1.msra.mxu0 0.0
    %1722 = vmatprep.subr.mxu0 0.0
    %1723 = vmatpush1.msra.mxu0 0.0
    %1724 = vmatprep.subr.mxu0 0.0
    %1725 = vmatpush1.msra.mxu0 0.0
    %1726 = vmatprep.subr.mxu0 0.0
    %1727 = vmatpush1.msra.mxu0 0.0
    %1728 = vmatprep.subr.mxu0 0.0
    %1729 = vmatpush1.msra.mxu0 0.0
    %1730 = vmatprep.subr.mxu0 0.0
    %1731 = vmatpush1.msra.mxu0 0.0
    %1732 = vmatprep.subr.mxu0 0.0
    %1733 = vmatpush1.msra.mxu0 0.0
    %1734 = vmatprep.subr.mxu0 0.0
    %1735 = vmatpush1.msra.mxu0 0.0
    %1736 = vmatprep.subr.mxu0 0.0
    %1737 = vmatpush1.msra.mxu0 0.0
    %1738 = vmatprep.subr.mxu0 0.0
    %1739 = vmatpush1.msra.mxu0 0.0
    %1740 = vmatprep.subr.mxu0 0.0
    %1741 = vmatpush1.msra.mxu0 0.0
    %1742 = vmatprep.subr.mxu0 0.0
    %1743 = vmatpush1.msra.mxu0 0.0
    %1744 = vmatprep.subr.mxu0 0.0
    %1745 = vmatpush1.msra.mxu0 0.0
    %1746 = vmatprep.subr.mxu0 0.0
    %1747 = vmatpush1.msra.mxu0 0.0
    %1748 = vmatprep.subr.mxu0 0.0
    %1749 = vmatpush1.msra.mxu0 0.0
    %1750 = vmatprep.subr.mxu0 0.0
    %1751 = vmatpush1.msra.mxu0 0.0
    %1752 = vmatprep.subr.mxu0 0.0
    %1753 = vmatpush1.msra.mxu0 0.0
    %1754 = vmatprep.subr.mxu0 0.0
    %1755 = vmatpush1.msra.mxu0 0.0
    %1756 = vmatprep.subr.mxu0 0.0
    %1757 = vmatpush1.msra.mxu0 0.0
    %1758 = vmatprep.mubr.f32.mxu0 0.0
    %1759 = vmatmul.mubr.f32.gmra.mrb[0].mxu0 %v1597
    %v1760 = vpop.f32.mrb[0].mxu0
    %v1761 = vadd.f32 0.0, %v1760
    %v1762 = vpop.f32.mrb[0].mxu0
    %1763 = vdwg.mxu0
    %v1765 = vrot.slane %v1761, 6
    %v1767 = vadd.f32 %v300, %v1765
    %v1768 = vxor.u32 %v1767, 2147483648
    %v1769 = vmul.f32 %v1768, 1.442695
    %v1770 = vpow.pop %v1769
    %v1771 = vadd.f32 %v1770, 1.0
    %v1772 = vrcp.pop %v1771
    %v1773 = vmul.f32 1.0, %v1772
    %v1774 = vtanh.pop %v1767
    %v1776 = vrot.slane %v1512, 6
    %v1778 = vmul.f32 %v1773, %v1776
    %1780 = vrot.lane.b32.xlu0 %v1774, 32
    %v1781 = vpop.permute.xlu0 %1780
    %v1783 = vmul.f32 %v1773, %v1781
    %1785 = vrot.lane.b32.xlu0 %v1783, 32
    %v1786 = vpop.permute.xlu0 %1785
    %v1788 = vadd.f32 %v1778, %v1786
    %v1789 = vtanh.pop %v1788
    %1791 = vrot.lane.b32.xlu0 %v1789, 32
    %v1792 = vpop.permute.xlu0 %1791
    %v1794 = vmul.f32 %v1773, %v1792
    %1796 = vrot.lane.b32.xlu0 %v1693, 64
    %v1797 = vpop.permute.xlu0 %1796
    %v1798 = vsel %vm221, %v1797, 0
    %1800 = vmatprep.subr.mxu0 0.0
    %1801 = vmatpush1.msra.mxu0 %v311
    %1802 = vmatprep.subr.mxu0 0.0
    %1803 = vmatpush1.msra.mxu0 %v312
    %1804 = vmatprep.subr.mxu0 0.0
    %1805 = vmatpush1.msra.mxu0 %v313
    %1806 = vmatprep.subr.mxu0 0.0
    %1807 = vmatpush1.msra.mxu0 %v314
    %1808 = vmatprep.subr.mxu0 0.0
    %1809 = vmatpush1.msra.mxu0 0.0
    %1810 = vmatprep.subr.mxu0 0.0
    %1811 = vmatpush1.msra.mxu0 0.0
    %1812 = vmatprep.subr.mxu0 0.0
    %1813 = vmatpush1.msra.mxu0 0.0
    %1814 = vmatprep.subr.mxu0 0.0
    %1815 = vmatpush1.msra.mxu0 0.0
    %1816 = vmatprep.subr.mxu0 0.0
    %1817 = vmatpush1.msra.mxu0 0.0
    %1818 = vmatprep.subr.mxu0 0.0
    %1819 = vmatpush1.msra.mxu0 0.0
    %1820 = vmatprep.subr.mxu0 0.0
    %1821 = vmatpush1.msra.mxu0 0.0
    %1822 = vmatprep.subr.mxu0 0.0
    %1823 = vmatpush1.msra.mxu0 0.0
    %1824 = vmatprep.subr.mxu0 0.0
    %1825 = vmatpush1.msra.mxu0 0.0
    %1826 = vmatprep.subr.mxu0 0.0
    %1827 = vmatpush1.msra.mxu0 0.0
    %1828 = vmatprep.subr.mxu0 0.0
    %1829 = vmatpush1.msra.mxu0 0.0
    %1830 = vmatprep.subr.mxu0 0.0
    %1831 = vmatpush1.msra.mxu0 0.0
    %1832 = vmatprep.subr.mxu0 0.0
    %1833 = vmatpush1.msra.mxu0 0.0
    %1834 = vmatprep.subr.mxu0 0.0
    %1835 = vmatpush1.msra.mxu0 0.0
    %1836 = vmatprep.subr.mxu0 0.0
    %1837 = vmatpush1.msra.mxu0 0.0
    %1838 = vmatprep.subr.mxu0 0.0
    %1839 = vmatpush1.msra.mxu0 0.0
    %1840 = vmatprep.subr.mxu0 0.0
    %1841 = vmatpush1.msra.mxu0 0.0
    %1842 = vmatprep.subr.mxu0 0.0
    %1843 = vmatpush1.msra.mxu0 0.0
    %1844 = vmatprep.subr.mxu0 0.0
    %1845 = vmatpush1.msra.mxu0 0.0
    %1846 = vmatprep.subr.mxu0 0.0
    %1847 = vmatpush1.msra.mxu0 0.0
    %1848 = vmatprep.subr.mxu0 0.0
    %1849 = vmatpush1.msra.mxu0 0.0
    %1850 = vmatprep.subr.mxu0 0.0
    %1851 = vmatpush1.msra.mxu0 0.0
    %1852 = vmatprep.subr.mxu0 0.0
    %1853 = vmatpush1.msra.mxu0 0.0
    %1854 = vmatprep.subr.mxu0 0.0
    %1855 = vmatpush1.msra.mxu0 0.0
    %1856 = vmatprep.subr.mxu0 0.0
    %1857 = vmatpush1.msra.mxu0 0.0
    %1858 = vmatprep.subr.mxu0 0.0
    %1859 = vmatpush1.msra.mxu0 0.0
    %1860 = vmatprep.subr.mxu0 0.0
    %1861 = vmatpush1.msra.mxu0 0.0
    %1862 = vmatprep.subr.mxu0 0.0
    %1863 = vmatpush1.msra.mxu0 0.0
    %1864 = vmatprep.mubr.f32.mxu0 0.0
    %1865 = vmatmul.mubr.f32.gmra.mrb[0].mxu0 %v1798
    %v1866 = vpop.f32.mrb[0].mxu0
    %v1867 = vadd.f32 0.0, %v1866
    %v1868 = vpop.f32.mrb[0].mxu0
    %1869 = vdwg.mxu0
    %v1871 = vrot.slane %v1794, 2
    %1872 = vrot.lane.b32.xlu0 %v1871, 64
    %v1873 = vpop.permute.xlu0 %1872
    %v1874 = vsel %vm221, %v1873, 0
    %1876 = vmatprep.subr.mxu0 0.0
    %1877 = vmatpush1.msra.mxu0 %v307
    %1878 = vmatprep.subr.mxu0 0.0
    %1879 = vmatpush1.msra.mxu0 %v308
    %1880 = vmatprep.subr.mxu0 0.0
    %1881 = vmatpush1.msra.mxu0 %v309
    %1882 = vmatprep.subr.mxu0 0.0
    %1883 = vmatpush1.msra.mxu0 %v310
    %1884 = vmatprep.subr.mxu0 0.0
    %1885 = vmatpush1.msra.mxu0 0.0
    %1886 = vmatprep.subr.mxu0 0.0
    %1887 = vmatpush1.msra.mxu0 0.0
    %1888 = vmatprep.subr.mxu0 0.0
    %1889 = vmatpush1.msra.mxu0 0.0
    %1890 = vmatprep.subr.mxu0 0.0
    %1891 = vmatpush1.msra.mxu0 0.0
    %1892 = vmatprep.subr.mxu0 0.0
    %1893 = vmatpush1.msra.mxu0 0.0
    %1894 = vmatprep.subr.mxu0 0.0
    %1895 = vmatpush1.msra.mxu0 0.0
    %1896 = vmatprep.subr.mxu0 0.0
    %1897 = vmatpush1.msra.mxu0 0.0
    %1898 = vmatprep.subr.mxu0 0.0
    %1899 = vmatpush1.msra.mxu0 0.0
    %1900 = vmatprep.subr.mxu0 0.0
    %1901 = vmatpush1.msra.mxu0 0.0
    %1902 = vmatprep.subr.mxu0 0.0
    %1903 = vmatpush1.msra.mxu0 0.0
    %1904 = vmatprep.subr.mxu0 0.0
    %1905 = vmatpush1.msra.mxu0 0.0
    %1906 = vmatprep.subr.mxu0 0.0
    %1907 = vmatpush1.msra.mxu0 0.0
    %1908 = vmatprep.subr.mxu0 0.0
    %1909 = vmatpush1.msra.mxu0 0.0
    %1910 = vmatprep.subr.mxu0 0.0
    %1911 = vmatpush1.msra.mxu0 0.0
    %1912 = vmatprep.subr.mxu0 0.0
    %1913 = vmatpush1.msra.mxu0 0.0
    %1914 = vmatprep.subr.mxu0 0.0
    %1915 = vmatpush1.msra.mxu0 0.0
    %1916 = vmatprep.subr.mxu0 0.0
    %1917 = vmatpush1.msra.mxu0 0.0
    %1918 = vmatprep.subr.mxu0 0.0
    %1919 = vmatpush1.msra.mxu0 0.0
    %1920 = vmatprep.subr.mxu0 0.0
    %1921 = vmatpush1.msra.mxu0 0.0
    %1922 = vmatprep.subr.mxu0 0.0
    %1923 = vmatpush1.msra.mxu0 0.0
    %1924 = vmatprep.subr.mxu0 0.0
    %1925 = vmatpush1.msra.mxu0 0.0
    %1926 = vmatprep.subr.mxu0 0.0
    %1927 = vmatpush1.msra.mxu0 0.0
    %1928 = vmatprep.subr.mxu0 0.0
    %1929 = vmatpush1.msra.mxu0 0.0
    %1930 = vmatprep.subr.mxu0 0.0
    %1931 = vmatpush1.msra.mxu0 0.0
    %1932 = vmatprep.subr.mxu0 0.0
    %1933 = vmatpush1.msra.mxu0 0.0
    %1934 = vmatprep.subr.mxu0 0.0
    %1935 = vmatpush1.msra.mxu0 0.0
    %1936 = vmatprep.subr.mxu0 0.0
    %1937 = vmatpush1.msra.mxu0 0.0
    %1938 = vmatprep.subr.mxu0 0.0
    %1939 = vmatpush1.msra.mxu0 0.0
    %1940 = vmatprep.mubr.f32.mxu0 0.0
    %1941 = vmatmul.mubr.f32.gmra.mrb[0].mxu0 %v1874
    %v1942 = vpop.f32.mrb[0].mxu0
    %v1943 = vadd.f32 %v1867, %v1942
    %v1944 = vpop.f32.mrb[0].mxu0
    %1945 = vdwg.mxu0
    %v1946 = vadd.f32 %v1943, %v320
    %v1947 = vxor.u32 %v1946, 2147483648
    %v1948 = vmul.f32 %v1947, 1.442695
    %v1949 = vpow.pop %v1948
    %v1950 = vadd.f32 %v1949, 1.0
    %v1951 = vrcp.pop %v1950
    %v1952 = vmul.f32 1.0, %v1951
    %v1953 = vtanh.pop %v1946
    %v1954 = vmul.f32 %v1952, %v1687
    %1956 = vrot.lane.b32.xlu0 %v1953, 32
    %v1957 = vpop.permute.xlu0 %1956
    %v1959 = vmul.f32 %v1952, %v1957
    %1961 = vrot.lane.b32.xlu0 %v1959, 32
    %v1962 = vpop.permute.xlu0 %1961
    %v1964 = vadd.f32 %v1954, %v1962
    %v1965 = vtanh.pop %v1964
    %1967 = vrot.lane.b32.xlu0 %v1965, 32
    %v1968 = vpop.permute.xlu0 %1967
    %v1970 = vmul.f32 %v1952, %v1968
    %1971 = vmatprep.subr.mxu0 0.0
    %1972 = vmatpush1.msra.mxu0 %v303
    %1973 = vmatprep.subr.mxu0 0.0
    %1974 = vmatpush1.msra.mxu0 %v304
    %1975 = vmatprep.subr.mxu0 0.0
    %1976 = vmatpush1.msra.mxu0 %v305
    %1977 = vmatprep.subr.mxu0 0.0
    %1978 = vmatpush1.msra.mxu0 %v306
    %1979 = vmatprep.subr.mxu0 0.0
    %1980 = vmatpush1.msra.mxu0 0.0
    %1981 = vmatprep.subr.mxu0 0.0
    %1982 = vmatpush1.msra.mxu0 0.0
    %1983 = vmatprep.subr.mxu0 0.0
    %1984 = vmatpush1.msra.mxu0 0.0
    %1985 = vmatprep.subr.mxu0 0.0
    %1986 = vmatpush1.msra.mxu0 0.0
    %1987 = vmatprep.subr.mxu0 0.0
    %1988 = vmatpush1.msra.mxu0 0.0
    %1989 = vmatprep.subr.mxu0 0.0
    %1990 = vmatpush1.msra.mxu0 0.0
    %1991 = vmatprep.subr.mxu0 0.0
    %1992 = vmatpush1.msra.mxu0 0.0
    %1993 = vmatprep.subr.mxu0 0.0
    %1994 = vmatpush1.msra.mxu0 0.0
    %1995 = vmatprep.subr.mxu0 0.0
    %1996 = vmatpush1.msra.mxu0 0.0
    %1997 = vmatprep.subr.mxu0 0.0
    %1998 = vmatpush1.msra.mxu0 0.0
    %1999 = vmatprep.subr.mxu0 0.0
    %2000 = vmatpush1.msra.mxu0 0.0
    %2001 = vmatprep.subr.mxu0 0.0
    %2002 = vmatpush1.msra.mxu0 0.0
    %2003 = vmatprep.subr.mxu0 0.0
    %2004 = vmatpush1.msra.mxu0 0.0
    %2005 = vmatprep.subr.mxu0 0.0
    %2006 = vmatpush1.msra.mxu0 0.0
    %2007 = vmatprep.subr.mxu0 0.0
    %2008 = vmatpush1.msra.mxu0 0.0
    %2009 = vmatprep.subr.mxu0 0.0
    %2010 = vmatpush1.msra.mxu0 0.0
    %2011 = vmatprep.subr.mxu0 0.0
    %2012 = vmatpush1.msra.mxu0 0.0
    %2013 = vmatprep.subr.mxu0 0.0
    %2014 = vmatpush1.msra.mxu0 0.0
    %2015 = vmatprep.subr.mxu0 0.0
    %2016 = vmatpush1.msra.mxu0 0.0
    %2017 = vmatprep.subr.mxu0 0.0
    %2018 = vmatpush1.msra.mxu0 0.0
    %2019 = vmatprep.subr.mxu0 0.0
    %2020 = vmatpush1.msra.mxu0 0.0
    %2021 = vmatprep.subr.mxu0 0.0
    %2022 = vmatpush1.msra.mxu0 0.0
    %2023 = vmatprep.subr.mxu0 0.0
    %2024 = vmatpush1.msra.mxu0 0.0
    %2025 = vmatprep.subr.mxu0 0.0
    %2026 = vmatpush1.msra.mxu0 0.0
    %2027 = vmatprep.subr.mxu0 0.0
    %2028 = vmatpush1.msra.mxu0 0.0
    %2029 = vmatprep.subr.mxu0 0.0
    %2030 = vmatpush1.msra.mxu0 0.0
    %2031 = vmatprep.subr.mxu0 0.0
    %2032 = vmatpush1.msra.mxu0 0.0
    %2033 = vmatprep.subr.mxu0 0.0
    %2034 = vmatpush1.msra.mxu0 0.0
    %2035 = vmatprep.mubr.f32.mxu0 0.0
    %2036 = vmatmul.mubr.f32.gmra.mrb[0].mxu0 %v1874
    %v2037 = vpop.f32.mrb[0].mxu0
    %v2038 = vadd.f32 0.0, %v2037
    %v2039 = vpop.f32.mrb[0].mxu0
    %2040 = vdwg.mxu0
    %v2042 = vrot.slane %v2038, 4
    %v2044 = vadd.f32 %v300, %v2042
    %v2045 = vxor.u32 %v2044, 2147483648
    %v2046 = vmul.f32 %v2045, 1.442695
    %v2047 = vpow.pop %v2046
    %v2048 = vadd.f32 %v2047, 1.0
    %v2049 = vrcp.pop %v2048
    %v2050 = vmul.f32 1.0, %v2049
    %v2051 = vtanh.pop %v2044
    %v2053 = vrot.slane %v1788, 6
    %v2055 = vmul.f32 %v2050, %v2053
    %2057 = vrot.lane.b32.xlu0 %v2051, 32
    %v2058 = vpop.permute.xlu0 %2057
    %v2060 = vmul.f32 %v2050, %v2058
    %2062 = vrot.lane.b32.xlu0 %v2060, 32
    %v2063 = vpop.permute.xlu0 %2062
    %v2065 = vadd.f32 %v2055, %v2063
    %v2066 = vtanh.pop %v2065
    %2068 = vrot.lane.b32.xlu0 %v2066, 32
    %v2069 = vpop.permute.xlu0 %2068
    %v2071 = vmul.f32 %v2050, %v2069
    %2073 = vrot.lane.b32.xlu0 %v1970, 64
    %v2074 = vpop.permute.xlu0 %2073
    %v2075 = vsel %vm221, %v2074, 0
    %2077 = vmatprep.subr.mxu0 0.0
    %2078 = vmatpush1.msra.mxu0 %v311
    %2079 = vmatprep.subr.mxu0 0.0
    %2080 = vmatpush1.msra.mxu0 %v312
    %2081 = vmatprep.subr.mxu0 0.0
    %2082 = vmatpush1.msra.mxu0 %v313
    %2083 = vmatprep.subr.mxu0 0.0
    %2084 = vmatpush1.msra.mxu0 %v314
    %2085 = vmatprep.subr.mxu0 0.0
    %2086 = vmatpush1.msra.mxu0 0.0
    %2087 = vmatprep.subr.mxu0 0.0
    %2088 = vmatpush1.msra.mxu0 0.0
    %2089 = vmatprep.subr.mxu0 0.0
    %2090 = vmatpush1.msra.mxu0 0.0
    %2091 = vmatprep.subr.mxu0 0.0
    %2092 = vmatpush1.msra.mxu0 0.0
    %2093 = vmatprep.subr.mxu0 0.0
    %2094 = vmatpush1.msra.mxu0 0.0
    %2095 = vmatprep.subr.mxu0 0.0
    %2096 = vmatpush1.msra.mxu0 0.0
    %2097 = vmatprep.subr.mxu0 0.0
    %2098 = vmatpush1.msra.mxu0 0.0
    %2099 = vmatprep.subr.mxu0 0.0
    %2100 = vmatpush1.msra.mxu0 0.0
    %2101 = vmatprep.subr.mxu0 0.0
    %2102 = vmatpush1.msra.mxu0 0.0
    %2103 = vmatprep.subr.mxu0 0.0
    %2104 = vmatpush1.msra.mxu0 0.0
    %2105 = vmatprep.subr.mxu0 0.0
    %2106 = vmatpush1.msra.mxu0 0.0
    %2107 = vmatprep.subr.mxu0 0.0
    %2108 = vmatpush1.msra.mxu0 0.0
    %2109 = vmatprep.subr.mxu0 0.0
    %2110 = vmatpush1.msra.mxu0 0.0
    %2111 = vmatprep.subr.mxu0 0.0
    %2112 = vmatpush1.msra.mxu0 0.0
    %2113 = vmatprep.subr.mxu0 0.0
    %2114 = vmatpush1.msra.mxu0 0.0
    %2115 = vmatprep.subr.mxu0 0.0
    %2116 = vmatpush1.msra.mxu0 0.0
    %2117 = vmatprep.subr.mxu0 0.0
    %2118 = vmatpush1.msra.mxu0 0.0
    %2119 = vmatprep.subr.mxu0 0.0
    %2120 = vmatpush1.msra.mxu0 0.0
    %2121 = vmatprep.subr.mxu0 0.0
    %2122 = vmatpush1.msra.mxu0 0.0
    %2123 = vmatprep.subr.mxu0 0.0
    %2124 = vmatpush1.msra.mxu0 0.0
    %2125 = vmatprep.subr.mxu0 0.0
    %2126 = vmatpush1.msra.mxu0 0.0
    %2127 = vmatprep.subr.mxu0 0.0
    %2128 = vmatpush1.msra.mxu0 0.0
    %2129 = vmatprep.subr.mxu0 0.0
    %2130 = vmatpush1.msra.mxu0 0.0
    %2131 = vmatprep.subr.mxu0 0.0
    %2132 = vmatpush1.msra.mxu0 0.0
    %2133 = vmatprep.subr.mxu0 0.0
    %2134 = vmatpush1.msra.mxu0 0.0
    %2135 = vmatprep.subr.mxu0 0.0
    %2136 = vmatpush1.msra.mxu0 0.0
    %2137 = vmatprep.subr.mxu0 0.0
    %2138 = vmatpush1.msra.mxu0 0.0
    %2139 = vmatprep.subr.mxu0 0.0
    %2140 = vmatpush1.msra.mxu0 0.0
    %2141 = vmatprep.mubr.f32.mxu0 0.0
    %2142 = vmatmul.mubr.f32.gmra.mrb[0].mxu0 %v2075
    %v2143 = vpop.f32.mrb[0].mxu0
    %v2144 = vadd.f32 0.0, %v2143
    %v2145 = vpop.f32.mrb[0].mxu0
    %2146 = vdwg.mxu0
    %v2148 = vrot.slane %v2071, 4
    %2149 = vrot.lane.b32.xlu0 %v2148, 64
    %v2150 = vpop.permute.xlu0 %2149
    %v2151 = vsel %vm221, %v2150, 0
    %2153 = vmatprep.subr.mxu0 0.0
    %2154 = vmatpush1.msra.mxu0 %v307
    %2155 = vmatprep.subr.mxu0 0.0
    %2156 = vmatpush1.msra.mxu0 %v308
    %2157 = vmatprep.subr.mxu0 0.0
    %2158 = vmatpush1.msra.mxu0 %v309
    %2159 = vmatprep.subr.mxu0 0.0
    %2160 = vmatpush1.msra.mxu0 %v310
    %2161 = vmatprep.subr.mxu0 0.0
    %2162 = vmatpush1.msra.mxu0 0.0
    %2163 = vmatprep.subr.mxu0 0.0
    %2164 = vmatpush1.msra.mxu0 0.0
    %2165 = vmatprep.subr.mxu0 0.0
    %2166 = vmatpush1.msra.mxu0 0.0
    %2167 = vmatprep.subr.mxu0 0.0
    %2168 = vmatpush1.msra.mxu0 0.0
    %2169 = vmatprep.subr.mxu0 0.0
    %2170 = vmatpush1.msra.mxu0 0.0
    %2171 = vmatprep.subr.mxu0 0.0
    %2172 = vmatpush1.msra.mxu0 0.0
    %2173 = vmatprep.subr.mxu0 0.0
    %2174 = vmatpush1.msra.mxu0 0.0
    %2175 = vmatprep.subr.mxu0 0.0
    %2176 = vmatpush1.msra.mxu0 0.0
    %2177 = vmatprep.subr.mxu0 0.0
    %2178 = vmatpush1.msra.mxu0 0.0
    %2179 = vmatprep.subr.mxu0 0.0
    %2180 = vmatpush1.msra.mxu0 0.0
    %2181 = vmatprep.subr.mxu0 0.0
    %2182 = vmatpush1.msra.mxu0 0.0
    %2183 = vmatprep.subr.mxu0 0.0
    %2184 = vmatpush1.msra.mxu0 0.0
    %2185 = vmatprep.subr.mxu0 0.0
    %2186 = vmatpush1.msra.mxu0 0.0
    %2187 = vmatprep.subr.mxu0 0.0
    %2188 = vmatpush1.msra.mxu0 0.0
    %2189 = vmatprep.subr.mxu0 0.0
    %2190 = vmatpush1.msra.mxu0 0.0
    %2191 = vmatprep.subr.mxu0 0.0
    %2192 = vmatpush1.msra.mxu0 0.0
    %2193 = vmatprep.subr.mxu0 0.0
    %2194 = vmatpush1.msra.mxu0 0.0
    %2195 = vmatprep.subr.mxu0 0.0
    %2196 = vmatpush1.msra.mxu0 0.0
    %2197 = vmatprep.subr.mxu0 0.0
    %2198 = vmatpush1.msra.mxu0 0.0
    %2199 = vmatprep.subr.mxu0 0.0
    %2200 = vmatpush1.msra.mxu0 0.0
    %2201 = vmatprep.subr.mxu0 0.0
    %2202 = vmatpush1.msra.mxu0 0.0
    %2203 = vmatprep.subr.mxu0 0.0
    %2204 = vmatpush1.msra.mxu0 0.0
    %2205 = vmatprep.subr.mxu0 0.0
    %2206 = vmatpush1.msra.mxu0 0.0
    %2207 = vmatprep.subr.mxu0 0.0
    %2208 = vmatpush1.msra.mxu0 0.0
    %2209 = vmatprep.subr.mxu0 0.0
    %2210 = vmatpush1.msra.mxu0 0.0
    %2211 = vmatprep.subr.mxu0 0.0
    %2212 = vmatpush1.msra.mxu0 0.0
    %2213 = vmatprep.subr.mxu0 0.0
    %2214 = vmatpush1.msra.mxu0 0.0
    %2215 = vmatprep.subr.mxu0 0.0
    %2216 = vmatpush1.msra.mxu0 0.0
    %2217 = vmatprep.mubr.f32.mxu0 0.0
    %2218 = vmatmul.mubr.f32.gmra.mrb[0].mxu0 %v2151
    %v2219 = vpop.f32.mrb[0].mxu0
    %v2220 = vadd.f32 %v2144, %v2219
    %v2221 = vpop.f32.mrb[0].mxu0
    %2222 = vdwg.mxu0
    %v2223 = vadd.f32 %v2220, %v320
    %v2224 = vxor.u32 %v2223, 2147483648
    %v2225 = vmul.f32 %v2224, 1.442695
    %v2226 = vpow.pop %v2225
    %v2227 = vadd.f32 %v2226, 1.0
    %v2228 = vrcp.pop %v2227
    %v2229 = vmul.f32 1.0, %v2228
    %v2230 = vtanh.pop %v2223
    %v2231 = vmul.f32 %v2229, %v1964
    %2233 = vrot.lane.b32.xlu0 %v2230, 32
    %v2234 = vpop.permute.xlu0 %2233
    %v2236 = vmul.f32 %v2229, %v2234
    %2238 = vrot.lane.b32.xlu0 %v2236, 32
    %v2239 = vpop.permute.xlu0 %2238
    %v2241 = vadd.f32 %v2231, %v2239
    %v2242 = vtanh.pop %v2241
    %2244 = vrot.lane.b32.xlu0 %v2242, 32
    %v2245 = vpop.permute.xlu0 %2244
    %v2247 = vmul.f32 %v2229, %v2245
    %2248 = vmatprep.subr.mxu0 0.0
    %2249 = vmatpush1.msra.mxu0 %v303
    %2250 = vmatprep.subr.mxu0 0.0
    %2251 = vmatpush1.msra.mxu0 %v304
    %2252 = vmatprep.subr.mxu0 0.0
    %2253 = vmatpush1.msra.mxu0 %v305
    %2254 = vmatprep.subr.mxu0 0.0
    %2255 = vmatpush1.msra.mxu0 %v306
    %2256 = vmatprep.subr.mxu0 0.0
    %2257 = vmatpush1.msra.mxu0 0.0
    %2258 = vmatprep.subr.mxu0 0.0
    %2259 = vmatpush1.msra.mxu0 0.0
    %2260 = vmatprep.subr.mxu0 0.0
    %2261 = vmatpush1.msra.mxu0 0.0
    %2262 = vmatprep.subr.mxu0 0.0
    %2263 = vmatpush1.msra.mxu0 0.0
    %2264 = vmatprep.subr.mxu0 0.0
    %2265 = vmatpush1.msra.mxu0 0.0
    %2266 = vmatprep.subr.mxu0 0.0
    %2267 = vmatpush1.msra.mxu0 0.0
    %2268 = vmatprep.subr.mxu0 0.0
    %2269 = vmatpush1.msra.mxu0 0.0
    %2270 = vmatprep.subr.mxu0 0.0
    %2271 = vmatpush1.msra.mxu0 0.0
    %2272 = vmatprep.subr.mxu0 0.0
    %2273 = vmatpush1.msra.mxu0 0.0
    %2274 = vmatprep.subr.mxu0 0.0
    %2275 = vmatpush1.msra.mxu0 0.0
    %2276 = vmatprep.subr.mxu0 0.0
    %2277 = vmatpush1.msra.mxu0 0.0
    %2278 = vmatprep.subr.mxu0 0.0
    %2279 = vmatpush1.msra.mxu0 0.0
    %2280 = vmatprep.subr.mxu0 0.0
    %2281 = vmatpush1.msra.mxu0 0.0
    %2282 = vmatprep.subr.mxu0 0.0
    %2283 = vmatpush1.msra.mxu0 0.0
    %2284 = vmatprep.subr.mxu0 0.0
    %2285 = vmatpush1.msra.mxu0 0.0
    %2286 = vmatprep.subr.mxu0 0.0
    %2287 = vmatpush1.msra.mxu0 0.0
    %2288 = vmatprep.subr.mxu0 0.0
    %2289 = vmatpush1.msra.mxu0 0.0
    %2290 = vmatprep.subr.mxu0 0.0
    %2291 = vmatpush1.msra.mxu0 0.0
    %2292 = vmatprep.subr.mxu0 0.0
    %2293 = vmatpush1.msra.mxu0 0.0
    %2294 = vmatprep.subr.mxu0 0.0
    %2295 = vmatpush1.msra.mxu0 0.0
    %2296 = vmatprep.subr.mxu0 0.0
    %2297 = vmatpush1.msra.mxu0 0.0
    %2298 = vmatprep.subr.mxu0 0.0
    %2299 = vmatpush1.msra.mxu0 0.0
    %2300 = vmatprep.subr.mxu0 0.0
    %2301 = vmatpush1.msra.mxu0 0.0
    %2302 = vmatprep.subr.mxu0 0.0
    %2303 = vmatpush1.msra.mxu0 0.0
    %2304 = vmatprep.subr.mxu0 0.0
    %2305 = vmatpush1.msra.mxu0 0.0
    %2306 = vmatprep.subr.mxu0 0.0
    %2307 = vmatpush1.msra.mxu0 0.0
    %2308 = vmatprep.subr.mxu0 0.0
    %2309 = vmatpush1.msra.mxu0 0.0
    %2310 = vmatprep.subr.mxu0 0.0
    %2311 = vmatpush1.msra.mxu0 0.0
    %2312 = vmatprep.mubr.f32.mxu0 0.0
    %2313 = vmatmul.mubr.f32.gmra.mrb[0].mxu0 %v2151
    %v2314 = vpop.f32.mrb[0].mxu0
    %v2315 = vadd.f32 0.0, %v2314
    %v2316 = vpop.f32.mrb[0].mxu0
    %2317 = vdwg.mxu0
    %v2319 = vrot.slane %v2315, 2
    %v2321 = vadd.f32 %v300, %v2319
    %v2322 = vxor.u32 %v2321, 2147483648
    %v2323 = vmul.f32 %v2322, 1.442695
    %v2324 = vpow.pop %v2323
    %v2325 = vadd.f32 %v2324, 1.0
    %v2326 = vrcp.pop %v2325
    %v2327 = vmul.f32 1.0, %v2326
    %v2328 = vtanh.pop %v2321
    %v2330 = vrot.slane %v2065, 6
    %v2332 = vmul.f32 %v2327, %v2330
    %2334 = vrot.lane.b32.xlu0 %v2328, 32
    %v2335 = vpop.permute.xlu0 %2334
    %v2337 = vmul.f32 %v2327, %v2335
    %2339 = vrot.lane.b32.xlu0 %v2337, 32
    %v2340 = vpop.permute.xlu0 %2339
    %v2342 = vadd.f32 %v2332, %v2340
    %v2343 = vtanh.pop %v2342
    %2345 = vrot.lane.b32.xlu0 %v2343, 32
    %v2346 = vpop.permute.xlu0 %2345
    %v2348 = vmul.f32 %v2327, %v2346
    %2350 = vrot.lane.b32.xlu0 %v2247, 64
    %v2351 = vpop.permute.xlu0 %2350
    %v2352 = vsel %vm221, %v2351, 0
    %2354 = vmatprep.subr.mxu0 0.0
    %2355 = vmatpush1.msra.mxu0 %v311
    %2356 = vmatprep.subr.mxu0 0.0
    %2357 = vmatpush1.msra.mxu0 %v312
    %2358 = vmatprep.subr.mxu0 0.0
    %2359 = vmatpush1.msra.mxu0 %v313
    %2360 = vmatprep.subr.mxu0 0.0
    %2361 = vmatpush1.msra.mxu0 %v314
    %2362 = vmatprep.subr.mxu0 0.0
    %2363 = vmatpush1.msra.mxu0 0.0
    %2364 = vmatprep.subr.mxu0 0.0
    %2365 = vmatpush1.msra.mxu0 0.0
    %2366 = vmatprep.subr.mxu0 0.0
    %2367 = vmatpush1.msra.mxu0 0.0
    %2368 = vmatprep.subr.mxu0 0.0
    %2369 = vmatpush1.msra.mxu0 0.0
    %2370 = vmatprep.subr.mxu0 0.0
    %2371 = vmatpush1.msra.mxu0 0.0
    %2372 = vmatprep.subr.mxu0 0.0
    %2373 = vmatpush1.msra.mxu0 0.0
    %2374 = vmatprep.subr.mxu0 0.0
    %2375 = vmatpush1.msra.mxu0 0.0
    %2376 = vmatprep.subr.mxu0 0.0
    %2377 = vmatpush1.msra.mxu0 0.0
    %2378 = vmatprep.subr.mxu0 0.0
    %2379 = vmatpush1.msra.mxu0 0.0
    %2380 = vmatprep.subr.mxu0 0.0
    %2381 = vmatpush1.msra.mxu0 0.0
    %2382 = vmatprep.subr.mxu0 0.0
    %2383 = vmatpush1.msra.mxu0 0.0
    %2384 = vmatprep.subr.mxu0 0.0
    %2385 = vmatpush1.msra.mxu0 0.0
    %2386 = vmatprep.subr.mxu0 0.0
    %2387 = vmatpush1.msra.mxu0 0.0
    %2388 = vmatprep.subr.mxu0 0.0
    %2389 = vmatpush1.msra.mxu0 0.0
    %2390 = vmatprep.subr.mxu0 0.0
    %2391 = vmatpush1.msra.mxu0 0.0
    %2392 = vmatprep.subr.mxu0 0.0
    %2393 = vmatpush1.msra.mxu0 0.0
    %2394 = vmatprep.subr.mxu0 0.0
    %2395 = vmatpush1.msra.mxu0 0.0
    %2396 = vmatprep.subr.mxu0 0.0
    %2397 = vmatpush1.msra.mxu0 0.0
    %2398 = vmatprep.subr.mxu0 0.0
    %2399 = vmatpush1.msra.mxu0 0.0
    %2400 = vmatprep.subr.mxu0 0.0
    %2401 = vmatpush1.msra.mxu0 0.0
    %2402 = vmatprep.subr.mxu0 0.0
    %2403 = vmatpush1.msra.mxu0 0.0
    %2404 = vmatprep.subr.mxu0 0.0
    %2405 = vmatpush1.msra.mxu0 0.0
    %2406 = vmatprep.subr.mxu0 0.0
    %2407 = vmatpush1.msra.mxu0 0.0
    %2408 = vmatprep.subr.mxu0 0.0
    %2409 = vmatpush1.msra.mxu0 0.0
    %2410 = vmatprep.subr.mxu0 0.0
    %2411 = vmatpush1.msra.mxu0 0.0
    %2412 = vmatprep.subr.mxu0 0.0
    %2413 = vmatpush1.msra.mxu0 0.0
    %2414 = vmatprep.subr.mxu0 0.0
    %2415 = vmatpush1.msra.mxu0 0.0
    %2416 = vmatprep.subr.mxu0 0.0
    %2417 = vmatpush1.msra.mxu0 0.0
    %2418 = vmatprep.mubr.f32.mxu0 0.0
    %2419 = vmatmul.mubr.f32.gmra.mrb[0].mxu0 %v2352
    %v2420 = vpop.f32.mrb[0].mxu0
    %v2421 = vadd.f32 0.0, %v2420
    %v2422 = vpop.f32.mrb[0].mxu0
    %2423 = vdwg.mxu0
    %v2425 = vrot.slane %v2348, 6
    %2426 = vrot.lane.b32.xlu0 %v2425, 64
    %v2427 = vpop.permute.xlu0 %2426
    %v2428 = vsel %vm221, %v2427, 0
    %2430 = vmatprep.subr.mxu0 0.0
    %2431 = vmatpush1.msra.mxu0 %v307
    %2432 = vmatprep.subr.mxu0 0.0
    %2433 = vmatpush1.msra.mxu0 %v308
    %2434 = vmatprep.subr.mxu0 0.0
    %2435 = vmatpush1.msra.mxu0 %v309
    %2436 = vmatprep.subr.mxu0 0.0
    %2437 = vmatpush1.msra.mxu0 %v310
    %2438 = vmatprep.subr.mxu0 0.0
    %2439 = vmatpush1.msra.mxu0 0.0
    %2440 = vmatprep.subr.mxu0 0.0
    %2441 = vmatpush1.msra.mxu0 0.0
    %2442 = vmatprep.subr.mxu0 0.0
    %2443 = vmatpush1.msra.mxu0 0.0
    %2444 = vmatprep.subr.mxu0 0.0
    %2445 = vmatpush1.msra.mxu0 0.0
    %2446 = vmatprep.subr.mxu0 0.0
    %2447 = vmatpush1.msra.mxu0 0.0
    %2448 = vmatprep.subr.mxu0 0.0
    %2449 = vmatpush1.msra.mxu0 0.0
    %2450 = vmatprep.subr.mxu0 0.0
    %2451 = vmatpush1.msra.mxu0 0.0
    %2452 = vmatprep.subr.mxu0 0.0
    %2453 = vmatpush1.msra.mxu0 0.0
    %2454 = vmatprep.subr.mxu0 0.0
    %2455 = vmatpush1.msra.mxu0 0.0
    %2456 = vmatprep.subr.mxu0 0.0
    %2457 = vmatpush1.msra.mxu0 0.0
    %2458 = vmatprep.subr.mxu0 0.0
    %2459 = vmatpush1.msra.mxu0 0.0
    %2460 = vmatprep.subr.mxu0 0.0
    %2461 = vmatpush1.msra.mxu0 0.0
    %2462 = vmatprep.subr.mxu0 0.0
    %2463 = vmatpush1.msra.mxu0 0.0
    %2464 = vmatprep.subr.mxu0 0.0
    %2465 = vmatpush1.msra.mxu0 0.0
    %2466 = vmatprep.subr.mxu0 0.0
    %2467 = vmatpush1.msra.mxu0 0.0
    %2468 = vmatprep.subr.mxu0 0.0
    %2469 = vmatpush1.msra.mxu0 0.0
    %2470 = vmatprep.subr.mxu0 0.0
    %2471 = vmatpush1.msra.mxu0 0.0
    %2472 = vmatprep.subr.mxu0 0.0
    %2473 = vmatpush1.msra.mxu0 0.0
    %2474 = vmatprep.subr.mxu0 0.0
    %2475 = vmatpush1.msra.mxu0 0.0
    %2476 = vmatprep.subr.mxu0 0.0
    %2477 = vmatpush1.msra.mxu0 0.0
    %2478 = vmatprep.subr.mxu0 0.0
    %2479 = vmatpush1.msra.mxu0 0.0
    %2480 = vmatprep.subr.mxu0 0.0
    %2481 = vmatpush1.msra.mxu0 0.0
    %2482 = vmatprep.subr.mxu0 0.0
    %2483 = vmatpush1.msra.mxu0 0.0
    %2484 = vmatprep.subr.mxu0 0.0
    %2485 = vmatpush1.msra.mxu0 0.0
    %2486 = vmatprep.subr.mxu0 0.0
    %2487 = vmatpush1.msra.mxu0 0.0
    %2488 = vmatprep.subr.mxu0 0.0
    %2489 = vmatpush1.msra.mxu0 0.0
    %2490 = vmatprep.subr.mxu0 0.0
    %2491 = vmatpush1.msra.mxu0 0.0
    %2492 = vmatprep.subr.mxu0 0.0
    %2493 = vmatpush1.msra.mxu0 0.0
    %2494 = vmatprep.mubr.f32.mxu0 0.0
    %2495 = vmatmul.mubr.f32.gmra.mrb[0].mxu0 %v2428
    %v2496 = vpop.f32.mrb[0].mxu0
    %v2497 = vadd.f32 %v2421, %v2496
    %v2498 = vpop.f32.mrb[0].mxu0
    %2499 = vdwg.mxu0
    %v2500 = vadd.f32 %v2497, %v320
    %v2501 = vxor.u32 %v2500, 2147483648
    %v2502 = vmul.f32 %v2501, 1.442695
    %v2503 = vpow.pop %v2502
    %v2504 = vadd.f32 %v2503, 1.0
    %v2505 = vrcp.pop %v2504
    %v2506 = vmul.f32 1.0, %v2505
    %v2507 = vtanh.pop %v2500
    %v2508 = vmul.f32 %v2506, %v2241
    %2510 = vrot.lane.b32.xlu0 %v2507, 32
    %v2511 = vpop.permute.xlu0 %2510
    %v2513 = vmul.f32 %v2506, %v2511
    %2515 = vrot.lane.b32.xlu0 %v2513, 32
    %v2516 = vpop.permute.xlu0 %2515
    %v2518 = vadd.f32 %v2508, %v2516
    %v2519 = vtanh.pop %v2518
    %2521 = vrot.lane.b32.xlu0 %v2519, 32
    %v2522 = vpop.permute.xlu0 %2521
    %v2524 = vmul.f32 %v2506, %v2522
    %v2525 = vld [vmem:[%s9] sm:$0xff]
    %v2526 = vld [vmem:[%s9 + $0x8] sm:$0xff]
    %v2527 = vld [vmem:[%s9 + $0x10] sm:$0xff]
    %v2528 = vld [vmem:[%s9 + $0x18] sm:$0xff]
    %v2529 = vld [vmem:[#allocation10] sm:$0x1]
    %v2531 = vlaneseq
    %v2532 = vshrl.u32 %v2531, 7
    %v2533 = vsub.s32 0, %v2532
    %v2534 = vrot.slane %v2529, %v2533
    %2537 = vrot.lane.b32.xlu0 %v2524, 64
    %v2538 = vpop.permute.xlu0 %2537
    %v2539 = vsel %vm221, %v2538, 0
    %2541 = vmatprep.subr.mxu0 0.0
    %2542 = vmatpush1.msra.mxu0 %v2525
    %2543 = vmatprep.subr.mxu0 0.0
    %2544 = vmatpush1.msra.mxu0 %v2526
    %2545 = vmatprep.subr.mxu0 0.0
    %2546 = vmatpush1.msra.mxu0 %v2527
    %2547 = vmatprep.subr.mxu0 0.0
    %2548 = vmatpush1.msra.mxu0 %v2528
    %2549 = vmatprep.subr.mxu0 0.0
    %2550 = vmatpush1.msra.mxu0 0.0
    %2551 = vmatprep.subr.mxu0 0.0
    %2552 = vmatpush1.msra.mxu0 0.0
    %2553 = vmatprep.subr.mxu0 0.0
    %2554 = vmatpush1.msra.mxu0 0.0
    %2555 = vmatprep.subr.mxu0 0.0
    %2556 = vmatpush1.msra.mxu0 0.0
    %2557 = vmatprep.subr.mxu0 0.0
    %2558 = vmatpush1.msra.mxu0 0.0
    %2559 = vmatprep.subr.mxu0 0.0
    %2560 = vmatpush1.msra.mxu0 0.0
    %2561 = vmatprep.subr.mxu0 0.0
    %2562 = vmatpush1.msra.mxu0 0.0
    %2563 = vmatprep.subr.mxu0 0.0
    %2564 = vmatpush1.msra.mxu0 0.0
    %2565 = vmatprep.subr.mxu0 0.0
    %2566 = vmatpush1.msra.mxu0 0.0
    %2567 = vmatprep.subr.mxu0 0.0
    %2568 = vmatpush1.msra.mxu0 0.0
    %2569 = vmatprep.subr.mxu0 0.0
    %2570 = vmatpush1.msra.mxu0 0.0
    %2571 = vmatprep.subr.mxu0 0.0
    %2572 = vmatpush1.msra.mxu0 0.0
    %2573 = vmatprep.subr.mxu0 0.0
    %2574 = vmatpush1.msra.mxu0 0.0
    %2575 = vmatprep.subr.mxu0 0.0
    %2576 = vmatpush1.msra.mxu0 0.0
    %2577 = vmatprep.subr.mxu0 0.0
    %2578 = vmatpush1.msra.mxu0 0.0
    %2579 = vmatprep.subr.mxu0 0.0
    %2580 = vmatpush1.msra.mxu0 0.0
    %2581 = vmatprep.subr.mxu0 0.0
    %2582 = vmatpush1.msra.mxu0 0.0
    %2583 = vmatprep.subr.mxu0 0.0
    %2584 = vmatpush1.msra.mxu0 0.0
    %2585 = vmatprep.subr.mxu0 0.0
    %2586 = vmatpush1.msra.mxu0 0.0
    %2587 = vmatprep.subr.mxu0 0.0
    %2588 = vmatpush1.msra.mxu0 0.0
    %2589 = vmatprep.subr.mxu0 0.0
    %2590 = vmatpush1.msra.mxu0 0.0
    %2591 = vmatprep.subr.mxu0 0.0
    %2592 = vmatpush1.msra.mxu0 0.0
    %2593 = vmatprep.subr.mxu0 0.0
    %2594 = vmatpush1.msra.mxu0 0.0
    %2595 = vmatprep.subr.mxu0 0.0
    %2596 = vmatpush1.msra.mxu0 0.0
    %2597 = vmatprep.subr.mxu0 0.0
    %2598 = vmatpush1.msra.mxu0 0.0
    %2599 = vmatprep.subr.mxu0 0.0
    %2600 = vmatpush1.msra.mxu0 0.0
    %2601 = vmatprep.subr.mxu0 0.0
    %2602 = vmatpush1.msra.mxu0 0.0
    %2603 = vmatprep.subr.mxu0 0.0
    %2604 = vmatpush1.msra.mxu0 0.0
    %2605 = vmatprep.mubr.f32.mxu0 0.0
    %2606 = vmatmul.mubr.f32.gmra.mrb[0].mxu0 %v2539
    %v2607 = vpop.f32.mrb[0].mxu0
    %v2608 = vadd.f32 %v2534, %v2607
    %v2609 = vpop.f32.mrb[0].mxu0
    %2610 = vdwg.mxu0
    %vm2611 = vcmask 25600
    %2612 = vst.msk [vmem:[#allocation11] sm:$0x3] %vm2611, %v2608
    %2613 = vrot.lane.b32.xlu0 %v2348, 64
    %v2614 = vpop.permute.xlu0 %2613
    %vm2616 = vcmask 261126
    %2617 = vst.msk [vmem:[#allocation12 - $0x6] sm:$0xc0] %vm2616, %v2614
    %s2619 = scalar_lea.vmem [#allocation12], 2
    %vm2620 = vcmask 254976
    %2621 = vst.msk [vmem:[%s2619] sm:$0x3] %vm2620, %v2538
    %2623 = vrot.lane.b32.xlu0 %v2342, 96
    %v2624 = vpop.permute.xlu0 %2623
    %2626 = vst.msk [vmem:[#allocation14 - $0x6] sm:$0xc0] %vm2616, %v2624
    %2628 = vrot.lane.b32.xlu0 %v2518, 96
    %v2629 = vpop.permute.xlu0 %2628
    %s2631 = scalar_lea.vmem [#allocation14], 2
    %2632 = vst.msk [vmem:[%s2631] sm:$0x3] %vm2620, %v2629
    // Predicated region
    $region66: #{spectral_conv_lstm.1} parent=1 // pred_check
      _
    $region67: #{spectral_conv_lstm.1} parent=1 // pred_check_branch
      %2634 = sbr.rel (0) target = $region69
    $region68: #{spectral_conv_lstm.1} parent=1 // pred_region
      %s2636 = ssub.s32 32, 32
      %2637 = vsyncadd [#allocation4], %s2636
      %s2639 = sshll.u32 [#allocation11], 4
      %s2640 = int_to_ptr.vmem [resolvable:$true] %s2639
      %2642 = dma.vmem_to_hbm [thread:$0]  %s2640, 32, %s11, [#allocation4]
    $region69: #{spectral_conv_lstm.1} parent=1 // pred_fallthru
      _
    // Predicated region
    $region70: #{spectral_conv_lstm.1} parent=1 // pred_check
      _
    $region71: #{spectral_conv_lstm.1} parent=1 // pred_check_branch
      %2644 = sbr.rel (0) target = $region73
    $region72: #{spectral_conv_lstm.1} parent=1 // pred_region
      %s2646 = ssub.s32 64, 64
      %2647 = vsyncadd [#allocation13], %s2646
      %s2648 = sshll.u32 [#allocation12], 4
      %s2649 = int_to_ptr.vmem [resolvable:$true] %s2648
      %2654 = dma.vmem_to_hbm [thread:$0]  %s2649, 64, %s12, [#allocation13], 32, 32, 2
    $region73: #{spectral_conv_lstm.1} parent=1 // pred_fallthru
      _
    // Predicated region
    $region74: #{spectral_conv_lstm.1} parent=1 // pred_check
      _
    $region75: #{spectral_conv_lstm.1} parent=1 // pred_check_branch
      %2656 = sbr.rel (0) target = $region77
    $region76: #{spectral_conv_lstm.1} parent=1 // pred_region
      %s2658 = ssub.s32 64, 64
      %2659 = vsyncadd [#allocation13], %s2658
      %s2660 = sshll.u32 [#allocation14], 4
      %s2661 = int_to_ptr.vmem [resolvable:$true] %s2660
      %2666 = dma.vmem_to_hbm [thread:$0]  %s2661, 64, %s13, [#allocation13], 32, 32, 2
    $region77: #{spectral_conv_lstm.1} parent=1 // pred_fallthru
      _
    // Predicated region
    $region78: #{spectral_conv_lstm.1} parent=1 // pred_check
      _
    $region79: #{spectral_conv_lstm.1} parent=1 // pred_check_branch
      %2668 = sbr.rel (0) target = $region81
    $region80: #{spectral_conv_lstm.1} parent=1 // pred_region
      %2669 = dma.done [#allocation4], 32
    $region81: #{spectral_conv_lstm.1} parent=1 // pred_fallthru
      _
    // Predicated region
    $region82: #{spectral_conv_lstm.1} parent=1 // pred_check
      _
    $region83: #{spectral_conv_lstm.1} parent=1 // pred_check_branch
      %2671 = sbr.rel (0) target = $region85
    $region84: #{spectral_conv_lstm.1} parent=1 // pred_region
      %2672 = dma.done [#allocation13], 64
    $region85: #{spectral_conv_lstm.1} parent=1 // pred_fallthru
      _
    // Predicated region
    $region86: #{spectral_conv_lstm.1} parent=1 // pred_check
      _
    $region87: #{spectral_conv_lstm.1} parent=1 // pred_check_branch
      %2674 = sbr.rel (0) target = $region89
    $region88: #{spectral_conv_lstm.1} parent=1 // pred_region
      %2675 = dma.done [#allocation13], 64
    $region89: #{spectral_conv_lstm.1} parent=1 // pred_fallthru
      _
    %2676 = vsyncpa [#allocation3], 1
    %2677 = vsyncpa [#allocation6], 1
    %2678 = vsyncpa [#allocation9], 1
    %2679 = vsyncpa [#allocation4], 1
    %2680 = vsyncpa [#allocation13], 1

</llo_original>
